<compile_context>
chip_gen: v7x
topology: tpu7x:2x2x1
jax: 0.10.0
libtpu: 0.0.40
codegen_flags: <defaults>
</compile_context>

<pallas_src>
import numpy as np
import jax
import jax.numpy as jnp
from jax import lax
from jax.experimental import pallas as pl
from jax.experimental.pallas import tpu as pltpu


def _round_up(x, m):
    return ((x + m - 1) // m) * m


# ----------------------------------------------------------------------------
# Fused kernel: all GRU layers + fc head, single grid step
# ----------------------------------------------------------------------------
def make_fused_kernel(T, Bp, Hp, L):
    """T timesteps, Bp batch rows (padded to 8), Hp per-gate lane width
    (multiple of 128, doubles as the padded feature/contraction dim),
    L layers."""
    G3 = 3 * Hp

    def kernel(x_ref, w_ih_ref, w_hh_ref, b_gi_ref, b_hn_ref,
               wf_ref, bf_ref, o_ref, seq_ref, gi_ref):
        # x_ref   : (T*Bp, Hp)   padded input sequence (layer-0 source)
        # w_ih_ref: (L, Hp, 3Hp) input->hidden weights, gates at lane 0/128/256
        # w_hh_ref: (L, Hp, 3Hp) hidden->hidden weights, same layout
        # b_gi_ref: (L, 1, 3Hp)  b_ih (+ b_hh folded for r,z), gate-padded
        # b_hn_ref: (L, 1, Hp)   b_hh for the n gate (kept separate)
        # wf_ref  : (1, Hp)      folded fc head weight, lane-padded
        # bf_ref  : (1, 1)       folded fc head bias
        # o_ref   : (1, T*Bp)    lane-dense output slab
        # seq_ref : (T*Bp, Hp)   VMEM scratch: layer output sequence (in place)
        # gi_ref  : (T*Bp, 3Hp)  VMEM scratch: hoisted input-side gate pre-acts
        for l in range(L):                       # static layer loop (L small)
            src = x_ref[...] if l == 0 else seq_ref[...]
            w_ih = w_ih_ref[l]                   # (Hp, 3Hp)
            w_hh = w_hh_ref[l]                   # (Hp, 3Hp)
            b_gi = b_gi_ref[l]                   # (1, 3Hp)
            b_hn = b_hn_ref[l]                   # (1, Hp)

            # Hoisted input projection: one big matmul per layer, off the
            # serial path.
            gi_ref[...] = (jnp.dot(src, w_ih,
                                   preferred_element_type=jnp.float32) + b_gi)

            # Recurrence. h lives in vregs; T is small and static ->
            # fully unrolled with sublane-aligned static slices.
            h = jnp.zeros((Bp, Hp), jnp.float32)
            for t in range(T):
                gi = gi_ref[t * Bp:(t + 1) * Bp, :]              # (Bp, 3Hp)
                gh = jnp.dot(h, w_hh,
                             preferred_element_type=jnp.float32)  # (Bp, 3Hp)
                # Gate views are whole-vreg (lane offsets 0, Hp, 2Hp).
                r = jax.nn.sigmoid(gi[:, 0:Hp] + gh[:, 0:Hp])
                z = jax.nn.sigmoid(gi[:, Hp:2 * Hp] + gh[:, Hp:2 * Hp])
                n = jnp.tanh(gi[:, 2 * Hp:3 * Hp]
                             + r * (gh[:, 2 * Hp:3 * Hp] + b_hn))
                h = (1.0 - z) * n + z * h
                # Full (8, Hp) tile store; padded lanes of h are exact zeros.
                seq_ref[t * Bp:(t + 1) * Bp, :] = h

        # Folded fc head (Linear(H,H)->Linear(H,1), no activation between),
        # emitted as a lane-dense (1, T*Bp) slab.
        y = jnp.einsum('oh,nh->on', wf_ref[...], seq_ref[...],
                       preferred_element_type=jnp.float32)        # (1, T*Bp)
        o_ref[...] = y + bf_ref[...]

    return kernel


# ----------------------------------------------------------------------------
# Wrapper
# ----------------------------------------------------------------------------
@jax.jit
def rnn_forward(x, kp):
    """x: (T, B, in_dim) -> (T, B, 1)"""
    T, B, D = x.shape
    L, Hp, G3 = kp["w_ih"].shape
    assert G3 == 3 * Hp
    assert D <= Hp, "input feature dim must fit the padded lane width"
    Bp = _round_up(B, 8)                   # sublane-align per-timestep chunks
    TBp = T * Bp

    x_p = jnp.zeros((T, Bp, Hp), jnp.float32).at[:, :B, :D].set(
        x.astype(jnp.float32))
    x_flat = x_p.reshape(TBp, Hp)

    kernel = make_fused_kernel(T, Bp, Hp, L)
    y = pl.pallas_call(
        kernel,
        out_shape=jax.ShapeDtypeStruct((1, TBp), jnp.float32),
        grid=(1,),
        in_specs=[
            pl.BlockSpec((TBp, Hp), lambda i: (0, 0)),
            pl.BlockSpec((L, Hp, G3), lambda i: (0, 0, 0)),
            pl.BlockSpec((L, Hp, G3), lambda i: (0, 0, 0)),
            pl.BlockSpec((L, 1, G3), lambda i: (0, 0, 0)),
            pl.BlockSpec((L, 1, Hp), lambda i: (0, 0, 0)),
            pl.BlockSpec((1, Hp), lambda i: (0, 0)),
            pl.BlockSpec((1, 1), lambda i: (0, 0)),
        ],
        out_specs=pl.BlockSpec((1, TBp), lambda i: (0, 0)),
        scratch_shapes=[
            pltpu.VMEM((TBp, Hp), jnp.float32),      # resident sequence
            pltpu.VMEM((TBp, G3), jnp.float32),      # hoisted gate pre-acts
        ],
        compiler_params=pltpu.CompilerParams(
            dimension_semantics=("arbitrary",)),
    )(x_flat, kp["w_ih"], kp["w_hh"], kp["b_gi"], kp["b_hn"],
      kp["wf_p"], kp["bf"])
    return y.reshape(T, Bp, 1)[:, :B, :]


# ----------------------------------------------------------------------------
# Parameters: raw PyTorch-layout init + kernel-layout preparation
# ----------------------------------------------------------------------------
def init_params(key, in_dim, hid_dim, n_layers):
    """PyTorch-style uniform(-1/sqrt(H), 1/sqrt(H)); PyTorch weight layouts."""
    bound = 1.0 / np.sqrt(hid_dim)

    def u(k, shape):
        return jax.random.uniform(k, shape, jnp.float32, -bound, bound)

    gru = []
    for layer in range(n_layers):
        d_in = in_dim if layer == 0 else hid_dim
        key, k1, k2, k3, k4 = jax.random.split(key, 5)
        gru.append({
            "w_ih": u(k1, (3 * hid_dim, d_in)),   # gate order (r, z, n)
            "w_hh": u(k2, (3 * hid_dim, hid_dim)),
            "b_ih": u(k3, (3 * hid_dim,)),
            "b_hh": u(k4, (3 * hid_dim,)),
        })
    key, k1, k2, k3, k4 = jax.random.split(key, 5)
    return {
        "gru": gru,
        "fc1_w": u(k1, (hid_dim, hid_dim)),
        "fc1_b": u(k2, (hid_dim,)),
        "fc2_w": u(k3, (1, hid_dim)),
        "fc2_b": u(k4, (1,)),
    }


def prepare_kernel_params(raw, in_dim, hid_dim):
    """Stack/pad/fold raw PyTorch-layout params into the fused-kernel layout.

    Each gate gets its own Hp-lane slot (Hp = multiple of 128) so that every
    in-kernel gate view starts at a 128-lane boundary. Rows beyond the real
    contraction length are zero, so padded lanes of the hidden state remain
    exactly zero throughout the recurrence.
    """
    H = hid_dim
    Hp = _round_up(max(H, in_dim), 128)
    G3 = 3 * Hp
    L = len(raw["gru"])

    w_ih = np.zeros((L, Hp, G3), np.float32)
    w_hh = np.zeros((L, Hp, G3), np.float32)
    b_gi = np.zeros((L, 1, G3), np.float32)
    b_hn = np.zeros((L, 1, Hp), np.float32)
    for i, layer in enumerate(raw["gru"]):
        d_in = in_dim if i == 0 else H
        w_ih_t = np.asarray(layer["w_ih"]).T          # (d_in, 3H)
        w_hh_t = np.asarray(layer["w_hh"]).T          # (H, 3H)
        bi = np.asarray(layer["b_ih"])
        bh = np.asarray(layer["b_hh"])
        for g in range(3):
            w_ih[i, :d_in, g * Hp:g * Hp + H] = w_ih_t[:, g * H:(g + 1) * H]
            w_hh[i, :H,    g * Hp:g * Hp + H] = w_hh_t[:, g * H:(g + 1) * H]
            bg = bi[g * H:(g + 1) * H].copy()
            if g < 2:                                  # fold b_hh into r, z
                bg = bg + bh[g * H:(g + 1) * H]
            b_gi[i, 0, g * Hp:g * Hp + H] = bg
        b_hn[i, 0, :H] = bh[2 * H:3 * H]               # n-gate hidden bias

    # fc head folding: (h @ W1^T + b1) @ W2^T + b2 == h @ (W1^T W2^T) + (b1 W2^T + b2)
    fc1_w = np.asarray(raw["fc1_w"]); fc1_b = np.asarray(raw["fc1_b"])
    fc2_w = np.asarray(raw["fc2_w"]); fc2_b = np.asarray(raw["fc2_b"])
    wf = fc1_w.T @ fc2_w.T                             # (H, 1)
    bf = fc1_b.reshape(1, H) @ fc2_w.T + fc2_b.reshape(1, 1)
    wf_p = np.zeros((1, Hp), np.float32)
    wf_p[0, :H] = wf[:, 0]

    return {
        "w_ih": jnp.asarray(w_ih),                     # (L, Hp, 3Hp)
        "w_hh": jnp.asarray(w_hh),                     # (L, Hp, 3Hp)
        "b_gi": jnp.asarray(b_gi),                     # (L, 1, 3Hp)
        "b_hn": jnp.asarray(b_hn),                     # (L, 1, Hp)
        "wf_p": jnp.asarray(wf_p),                     # (1, Hp)
        "bf": jnp.asarray(bf.astype(np.float32)),      # (1, 1)
    }


# ----------------------------------------------------------------------------
# Pure-JAX reference (faithful, unfolded PyTorch semantics)
# ----------------------------------------------------------------------------
def rnn_reference(x, raw):
    h_seq = x.astype(jnp.float32)
    for layer in raw["gru"]:
        w_ih_t = layer["w_ih"].T
        w_hh_t = layer["w_hh"].T
        b_ih, b_hh = layer["b_ih"], layer["b_hh"]
        H = w_hh_t.shape[0]
        B = h_seq.shape[1]

        def step(h_prev, x_t):
            gi = x_t @ w_ih_t + b_ih
            gh = h_prev @ w_hh_t + b_hh
            r = jax.nn.sigmoid(gi[:, :H] + gh[:, :H])
            z = jax.nn.sigmoid(gi[:, H:2 * H] + gh[:, H:2 * H])
            n = jnp.tanh(gi[:, 2 * H:] + r * gh[:, 2 * H:])
            h_new = (1.0 - z) * n + z * h_prev
            return h_new, h_new

        h0 = jnp.zeros((B, H), jnp.float32)
        _, h_seq = lax.scan(step, h0, h_seq)
    y = h_seq @ raw["fc1_w"].T + raw["fc1_b"]
    y = y @ raw["fc2_w"].T + raw["fc2_b"]
    return y


# ----------------------------------------------------------------------------
if __name__ == "__main__":
    T, B, IN_DIM, HID_DIM, N_LAYERS = 8, 2, 8, 32, 2

    key = jax.random.PRNGKey(0)
    key, xk = jax.random.split(key)
    x = jax.random.normal(xk, (T, B, IN_DIM), dtype=jnp.float32)

    raw_params = init_params(key, IN_DIM, HID_DIM, N_LAYERS)
    kparams = prepare_kernel_params(raw_params, IN_DIM, HID_DIM)

    out = rnn_forward(x, kparams)
    out = jax.block_until_ready(out)
    assert out.shape == (T, B, 1), out.shape

    ref = rnn_reference(x, raw_params)
    np.testing.assert_allclose(np.asarray(out), np.asarray(ref),
                               rtol=1e-4, atol=1e-5)

    print("KERNEL_OK")
</pallas_src>

<mosaic_0001>
module attributes {stable_mosaic.version = 11 : i64} {
  func.func @kernel(%arg0: i32, %arg1: memref<64x128xf32, #tpu.memory_space<vmem>>, %arg2: memref<2x128x384xf32, #tpu.memory_space<vmem>>, %arg3: memref<2x128x384xf32, #tpu.memory_space<vmem>>, %arg4: memref<2x1x384xf32, #tpu.memory_space<vmem>>, %arg5: memref<2x1x128xf32, #tpu.memory_space<vmem>>, %arg6: memref<1x128xf32, #tpu.memory_space<vmem>>, %arg7: memref<1x1xf32, #tpu.memory_space<vmem>>, %arg8: memref<1x64xf32, #tpu.memory_space<vmem>>, %arg9: memref<64x128xf32, #tpu.memory_space<vmem>>, %arg10: memref<64x384xf32, #tpu.memory_space<vmem>>) attributes {dimension_semantics = [#tpu.dimension_semantics<arbitrary>], iteration_bounds = array<i64: 1>, scalar_prefetch = 0 : i64, scratch_operands = 2 : i64, tpu.core_type = #tpu.core_type<tc>, window_params = [{pipeline_mode = #tpu.pipeline_mode<synchronous>, transform_indices = @transform_0, window_bounds = array<i64: 64, 128>}, {pipeline_mode = #tpu.pipeline_mode<synchronous>, transform_indices = @transform_1, window_bounds = array<i64: 2, 128, 384>}, {pipeline_mode = #tpu.pipeline_mode<synchronous>, transform_indices = @transform_2, window_bounds = array<i64: 2, 128, 384>}, {pipeline_mode = #tpu.pipeline_mode<synchronous>, transform_indices = @transform_3, window_bounds = array<i64: 2, 1, 384>}, {pipeline_mode = #tpu.pipeline_mode<synchronous>, transform_indices = @transform_4, window_bounds = array<i64: 2, 1, 128>}, {pipeline_mode = #tpu.pipeline_mode<synchronous>, transform_indices = @transform_5, window_bounds = array<i64: 1, 128>}, {pipeline_mode = #tpu.pipeline_mode<synchronous>, transform_indices = @transform_6, window_bounds = array<i64: 1, 1>}, {pipeline_mode = #tpu.pipeline_mode<synchronous>, transform_indices = @transform_7, window_bounds = array<i64: 1, 64>}]} {
    %c0 = arith.constant 0 : index
    %c0_0 = arith.constant 0 : index
    %0 = vector.load %arg1[%c0, %c0_0] : memref<64x128xf32, #tpu.memory_space<vmem>>, vector<64x128xf32>
    %c0_1 = arith.constant 0 : index
    %c0_2 = arith.constant 0 : index
    %c0_3 = arith.constant 0 : index
    %1 = vector.load %arg2[%c0_1, %c0_2, %c0_3] : memref<2x128x384xf32, #tpu.memory_space<vmem>>, vector<1x128x384xf32>
    %2 = vector.shape_cast %1 : vector<1x128x384xf32> to vector<128x384xf32>
    %c0_4 = arith.constant 0 : index
    %c0_5 = arith.constant 0 : index
    %c0_6 = arith.constant 0 : index
    %3 = vector.load %arg3[%c0_4, %c0_5, %c0_6] : memref<2x128x384xf32, #tpu.memory_space<vmem>>, vector<1x128x384xf32>
    %4 = vector.shape_cast %3 : vector<1x128x384xf32> to vector<128x384xf32>
    %c0_7 = arith.constant 0 : index
    %c0_8 = arith.constant 0 : index
    %c0_9 = arith.constant 0 : index
    %5 = vector.load %arg4[%c0_7, %c0_8, %c0_9] : memref<2x1x384xf32, #tpu.memory_space<vmem>>, vector<1x1x384xf32>
    %6 = vector.shape_cast %5 : vector<1x1x384xf32> to vector<1x384xf32>
    %c0_10 = arith.constant 0 : index
    %c0_11 = arith.constant 0 : index
    %c0_12 = arith.constant 0 : index
    %7 = vector.load %arg5[%c0_10, %c0_11, %c0_12] : memref<2x1x128xf32, #tpu.memory_space<vmem>>, vector<1x1x128xf32>
    %8 = vector.shape_cast %7 : vector<1x1x128xf32> to vector<1x128xf32>
    %cst = arith.constant dense<0.000000e+00> : vector<64x384xf32>
    %9 = tpu.matmul %0, %2, %cst {dimension_numbers = #tpu.dot_dimension_numbers<[1], [0], [0], [1], [0, 0, 1, 1], [], []>} : vector<64x128xf32>, vector<128x384xf32>, vector<64x384xf32> -> vector<64x384xf32>
    %10 = vector.broadcast %6 : vector<1x384xf32> to vector<64x384xf32>
    %11 = arith.addf %9, %10 : vector<64x384xf32>
    %c0_13 = arith.constant 0 : index
    %c0_14 = arith.constant 0 : index
    %12 = vector.load %arg10[%c0_13, %c0_14] : memref<64x384xf32, #tpu.memory_space<vmem>>, vector<64x384xf32>
    tpu.vector_store %arg10[%c0_13, %c0_14], %11 {strides = array<i32>} : memref<64x384xf32, #tpu.memory_space<vmem>>, vector<64x384xf32>,
    %cst_15 = arith.constant 0.000000e+00 : f32
    %13 = vector.broadcast %cst_15 : f32 to vector<8x128xf32>
    %c0_16 = arith.constant 0 : index
    %c0_17 = arith.constant 0 : index
    %14 = vector.load %arg10[%c0_16, %c0_17] : memref<64x384xf32, #tpu.memory_space<vmem>>, vector<8x384xf32>
    %cst_18 = arith.constant dense<0.000000e+00> : vector<8x384xf32>
    %15 = tpu.matmul %13, %4, %cst_18 {dimension_numbers = #tpu.dot_dimension_numbers<[1], [0], [0], [1], [0, 0, 1, 1], [], []>} : vector<8x128xf32>, vector<128x384xf32>, vector<8x384xf32> -> vector<8x384xf32>
    %16 = vector.extract_strided_slice %14 {offsets = [0, 0], sizes = [8, 128], strides = [1, 1]} : vector<8x384xf32> to vector<8x128xf32>
    %17 = vector.extract_strided_slice %15 {offsets = [0, 0], sizes = [8, 128], strides = [1, 1]} : vector<8x384xf32> to vector<8x128xf32>
    %18 = arith.addf %16, %17 : vector<8x128xf32>
    %19 = arith.negf %18 : vector<8x128xf32>
    %20 = math.exp %19 : vector<8x128xf32>
    %cst_19 = arith.constant 1.000000e+00 : f32
    %21 = vector.broadcast %cst_19 : f32 to vector<8x128xf32>
    %22 = arith.addf %21, %20 : vector<8x128xf32>
    %23 = arith.divf %21, %22 : vector<8x128xf32>
    %24 = vector.extract_strided_slice %14 {offsets = [0, 128], sizes = [8, 128], strides = [1, 1]} : vector<8x384xf32> to vector<8x128xf32>
    %25 = vector.extract_strided_slice %15 {offsets = [0, 128], sizes = [8, 128], strides = [1, 1]} : vector<8x384xf32> to vector<8x128xf32>
    %26 = arith.addf %24, %25 : vector<8x128xf32>
    %27 = arith.negf %26 : vector<8x128xf32>
    %28 = math.exp %27 : vector<8x128xf32>
    %cst_20 = arith.constant 1.000000e+00 : f32
    %29 = vector.broadcast %cst_20 : f32 to vector<8x128xf32>
    %30 = arith.addf %29, %28 : vector<8x128xf32>
    %31 = arith.divf %29, %30 : vector<8x128xf32>
    %32 = vector.extract_strided_slice %14 {offsets = [0, 256], sizes = [8, 128], strides = [1, 1]} : vector<8x384xf32> to vector<8x128xf32>
    %33 = vector.extract_strided_slice %15 {offsets = [0, 256], sizes = [8, 128], strides = [1, 1]} : vector<8x384xf32> to vector<8x128xf32>
    %34 = vector.broadcast %8 : vector<1x128xf32> to vector<8x128xf32>
    %35 = arith.addf %33, %34 : vector<8x128xf32>
    %36 = arith.mulf %23, %35 : vector<8x128xf32>
    %37 = arith.addf %32, %36 : vector<8x128xf32>
    %38 = math.tanh %37 : vector<8x128xf32>
    %cst_21 = arith.constant 1.000000e+00 : f32
    %39 = vector.broadcast %cst_21 : f32 to vector<8x128xf32>
    %40 = arith.subf %39, %31 : vector<8x128xf32>
    %41 = arith.mulf %40, %38 : vector<8x128xf32>
    %42 = arith.mulf %31, %13 : vector<8x128xf32>
    %43 = arith.addf %41, %42 : vector<8x128xf32>
    %c0_22 = arith.constant 0 : index
    %c0_23 = arith.constant 0 : index
    %44 = vector.load %arg9[%c0_22, %c0_23] : memref<64x128xf32, #tpu.memory_space<vmem>>, vector<8x128xf32>
    tpu.vector_store %arg9[%c0_22, %c0_23], %43 {strides = array<i32>} : memref<64x128xf32, #tpu.memory_space<vmem>>, vector<8x128xf32>,
    %c8 = arith.constant 8 : index
    %c0_24 = arith.constant 0 : index
    %45 = vector.load %arg10[%c8, %c0_24] : memref<64x384xf32, #tpu.memory_space<vmem>>, vector<8x384xf32>
    %cst_25 = arith.constant dense<0.000000e+00> : vector<8x384xf32>
    %46 = tpu.matmul %43, %4, %cst_25 {dimension_numbers = #tpu.dot_dimension_numbers<[1], [0], [0], [1], [0, 0, 1, 1], [], []>} : vector<8x128xf32>, vector<128x384xf32>, vector<8x384xf32> -> vector<8x384xf32>
    %47 = vector.extract_strided_slice %45 {offsets = [0, 0], sizes = [8, 128], strides = [1, 1]} : vector<8x384xf32> to vector<8x128xf32>
    %48 = vector.extract_strided_slice %46 {offsets = [0, 0], sizes = [8, 128], strides = [1, 1]} : vector<8x384xf32> to vector<8x128xf32>
    %49 = arith.addf %47, %48 : vector<8x128xf32>
    %50 = arith.negf %49 : vector<8x128xf32>
    %51 = math.exp %50 : vector<8x128xf32>
    %cst_26 = arith.constant 1.000000e+00 : f32
    %52 = vector.broadcast %cst_26 : f32 to vector<8x128xf32>
    %53 = arith.addf %52, %51 : vector<8x128xf32>
    %54 = arith.divf %52, %53 : vector<8x128xf32>
    %55 = vector.extract_strided_slice %45 {offsets = [0, 128], sizes = [8, 128], strides = [1, 1]} : vector<8x384xf32> to vector<8x128xf32>
    %56 = vector.extract_strided_slice %46 {offsets = [0, 128], sizes = [8, 128], strides = [1, 1]} : vector<8x384xf32> to vector<8x128xf32>
    %57 = arith.addf %55, %56 : vector<8x128xf32>
    %58 = arith.negf %57 : vector<8x128xf32>
    %59 = math.exp %58 : vector<8x128xf32>
    %cst_27 = arith.constant 1.000000e+00 : f32
    %60 = vector.broadcast %cst_27 : f32 to vector<8x128xf32>
    %61 = arith.addf %60, %59 : vector<8x128xf32>
    %62 = arith.divf %60, %61 : vector<8x128xf32>
    %63 = vector.extract_strided_slice %45 {offsets = [0, 256], sizes = [8, 128], strides = [1, 1]} : vector<8x384xf32> to vector<8x128xf32>
    %64 = vector.extract_strided_slice %46 {offsets = [0, 256], sizes = [8, 128], strides = [1, 1]} : vector<8x384xf32> to vector<8x128xf32>
    %65 = vector.broadcast %8 : vector<1x128xf32> to vector<8x128xf32>
    %66 = arith.addf %64, %65 : vector<8x128xf32>
    %67 = arith.mulf %54, %66 : vector<8x128xf32>
    %68 = arith.addf %63, %67 : vector<8x128xf32>
    %69 = math.tanh %68 : vector<8x128xf32>
    %cst_28 = arith.constant 1.000000e+00 : f32
    %70 = vector.broadcast %cst_28 : f32 to vector<8x128xf32>
    %71 = arith.subf %70, %62 : vector<8x128xf32>
    %72 = arith.mulf %71, %69 : vector<8x128xf32>
    %73 = arith.mulf %62, %43 : vector<8x128xf32>
    %74 = arith.addf %72, %73 : vector<8x128xf32>
    %c8_29 = arith.constant 8 : index
    %c0_30 = arith.constant 0 : index
    %75 = vector.load %arg9[%c8_29, %c0_30] : memref<64x128xf32, #tpu.memory_space<vmem>>, vector<8x128xf32>
    tpu.vector_store %arg9[%c8_29, %c0_30], %74 {strides = array<i32>} : memref<64x128xf32, #tpu.memory_space<vmem>>, vector<8x128xf32>,
    %c16 = arith.constant 16 : index
    %c0_31 = arith.constant 0 : index
    %76 = vector.load %arg10[%c16, %c0_31] : memref<64x384xf32, #tpu.memory_space<vmem>>, vector<8x384xf32>
    %cst_32 = arith.constant dense<0.000000e+00> : vector<8x384xf32>
    %77 = tpu.matmul %74, %4, %cst_32 {dimension_numbers = #tpu.dot_dimension_numbers<[1], [0], [0], [1], [0, 0, 1, 1], [], []>} : vector<8x128xf32>, vector<128x384xf32>, vector<8x384xf32> -> vector<8x384xf32>
    %78 = vector.extract_strided_slice %76 {offsets = [0, 0], sizes = [8, 128], strides = [1, 1]} : vector<8x384xf32> to vector<8x128xf32>
    %79 = vector.extract_strided_slice %77 {offsets = [0, 0], sizes = [8, 128], strides = [1, 1]} : vector<8x384xf32> to vector<8x128xf32>
    %80 = arith.addf %78, %79 : vector<8x128xf32>
    %81 = arith.negf %80 : vector<8x128xf32>
    %82 = math.exp %81 : vector<8x128xf32>
    %cst_33 = arith.constant 1.000000e+00 : f32
    %83 = vector.broadcast %cst_33 : f32 to vector<8x128xf32>
    %84 = arith.addf %83, %82 : vector<8x128xf32>
    %85 = arith.divf %83, %84 : vector<8x128xf32>
    %86 = vector.extract_strided_slice %76 {offsets = [0, 128], sizes = [8, 128], strides = [1, 1]} : vector<8x384xf32> to vector<8x128xf32>
    %87 = vector.extract_strided_slice %77 {offsets = [0, 128], sizes = [8, 128], strides = [1, 1]} : vector<8x384xf32> to vector<8x128xf32>
    %88 = arith.addf %86, %87 : vector<8x128xf32>
    %89 = arith.negf %88 : vector<8x128xf32>
    %90 = math.exp %89 : vector<8x128xf32>
    %cst_34 = arith.constant 1.000000e+00 : f32
    %91 = vector.broadcast %cst_34 : f32 to vector<8x128xf32>
    %92 = arith.addf %91, %90 : vector<8x128xf32>
    %93 = arith.divf %91, %92 : vector<8x128xf32>
    %94 = vector.extract_strided_slice %76 {offsets = [0, 256], sizes = [8, 128], strides = [1, 1]} : vector<8x384xf32> to vector<8x128xf32>
    %95 = vector.extract_strided_slice %77 {offsets = [0, 256], sizes = [8, 128], strides = [1, 1]} : vector<8x384xf32> to vector<8x128xf32>
    %96 = vector.broadcast %8 : vector<1x128xf32> to vector<8x128xf32>
    %97 = arith.addf %95, %96 : vector<8x128xf32>
    %98 = arith.mulf %85, %97 : vector<8x128xf32>
    %99 = arith.addf %94, %98 : vector<8x128xf32>
    %100 = math.tanh %99 : vector<8x128xf32>
    %cst_35 = arith.constant 1.000000e+00 : f32
    %101 = vector.broadcast %cst_35 : f32 to vector<8x128xf32>
    %102 = arith.subf %101, %93 : vector<8x128xf32>
    %103 = arith.mulf %102, %100 : vector<8x128xf32>
    %104 = arith.mulf %93, %74 : vector<8x128xf32>
    %105 = arith.addf %103, %104 : vector<8x128xf32>
    %c16_36 = arith.constant 16 : index
    %c0_37 = arith.constant 0 : index
    %106 = vector.load %arg9[%c16_36, %c0_37] : memref<64x128xf32, #tpu.memory_space<vmem>>, vector<8x128xf32>
    tpu.vector_store %arg9[%c16_36, %c0_37], %105 {strides = array<i32>} : memref<64x128xf32, #tpu.memory_space<vmem>>, vector<8x128xf32>,
    %c24 = arith.constant 24 : index
    %c0_38 = arith.constant 0 : index
    %107 = vector.load %arg10[%c24, %c0_38] : memref<64x384xf32, #tpu.memory_space<vmem>>, vector<8x384xf32>
    %cst_39 = arith.constant dense<0.000000e+00> : vector<8x384xf32>
    %108 = tpu.matmul %105, %4, %cst_39 {dimension_numbers = #tpu.dot_dimension_numbers<[1], [0], [0], [1], [0, 0, 1, 1], [], []>} : vector<8x128xf32>, vector<128x384xf32>, vector<8x384xf32> -> vector<8x384xf32>
    %109 = vector.extract_strided_slice %107 {offsets = [0, 0], sizes = [8, 128], strides = [1, 1]} : vector<8x384xf32> to vector<8x128xf32>
    %110 = vector.extract_strided_slice %108 {offsets = [0, 0], sizes = [8, 128], strides = [1, 1]} : vector<8x384xf32> to vector<8x128xf32>
    %111 = arith.addf %109, %110 : vector<8x128xf32>
    %112 = arith.negf %111 : vector<8x128xf32>
    %113 = math.exp %112 : vector<8x128xf32>
    %cst_40 = arith.constant 1.000000e+00 : f32
    %114 = vector.broadcast %cst_40 : f32 to vector<8x128xf32>
    %115 = arith.addf %114, %113 : vector<8x128xf32>
    %116 = arith.divf %114, %115 : vector<8x128xf32>
    %117 = vector.extract_strided_slice %107 {offsets = [0, 128], sizes = [8, 128], strides = [1, 1]} : vector<8x384xf32> to vector<8x128xf32>
    %118 = vector.extract_strided_slice %108 {offsets = [0, 128], sizes = [8, 128], strides = [1, 1]} : vector<8x384xf32> to vector<8x128xf32>
    %119 = arith.addf %117, %118 : vector<8x128xf32>
    %120 = arith.negf %119 : vector<8x128xf32>
    %121 = math.exp %120 : vector<8x128xf32>
    %cst_41 = arith.constant 1.000000e+00 : f32
    %122 = vector.broadcast %cst_41 : f32 to vector<8x128xf32>
    %123 = arith.addf %122, %121 : vector<8x128xf32>
    %124 = arith.divf %122, %123 : vector<8x128xf32>
    %125 = vector.extract_strided_slice %107 {offsets = [0, 256], sizes = [8, 128], strides = [1, 1]} : vector<8x384xf32> to vector<8x128xf32>
    %126 = vector.extract_strided_slice %108 {offsets = [0, 256], sizes = [8, 128], strides = [1, 1]} : vector<8x384xf32> to vector<8x128xf32>
    %127 = vector.broadcast %8 : vector<1x128xf32> to vector<8x128xf32>
    %128 = arith.addf %126, %127 : vector<8x128xf32>
    %129 = arith.mulf %116, %128 : vector<8x128xf32>
    %130 = arith.addf %125, %129 : vector<8x128xf32>
    %131 = math.tanh %130 : vector<8x128xf32>
    %cst_42 = arith.constant 1.000000e+00 : f32
    %132 = vector.broadcast %cst_42 : f32 to vector<8x128xf32>
    %133 = arith.subf %132, %124 : vector<8x128xf32>
    %134 = arith.mulf %133, %131 : vector<8x128xf32>
    %135 = arith.mulf %124, %105 : vector<8x128xf32>
    %136 = arith.addf %134, %135 : vector<8x128xf32>
    %c24_43 = arith.constant 24 : index
    %c0_44 = arith.constant 0 : index
    %137 = vector.load %arg9[%c24_43, %c0_44] : memref<64x128xf32, #tpu.memory_space<vmem>>, vector<8x128xf32>
    tpu.vector_store %arg9[%c24_43, %c0_44], %136 {strides = array<i32>} : memref<64x128xf32, #tpu.memory_space<vmem>>, vector<8x128xf32>,
    %c32 = arith.constant 32 : index
    %c0_45 = arith.constant 0 : index
    %138 = vector.load %arg10[%c32, %c0_45] : memref<64x384xf32, #tpu.memory_space<vmem>>, vector<8x384xf32>
    %cst_46 = arith.constant dense<0.000000e+00> : vector<8x384xf32>
    %139 = tpu.matmul %136, %4, %cst_46 {dimension_numbers = #tpu.dot_dimension_numbers<[1], [0], [0], [1], [0, 0, 1, 1], [], []>} : vector<8x128xf32>, vector<128x384xf32>, vector<8x384xf32> -> vector<8x384xf32>
    %140 = vector.extract_strided_slice %138 {offsets = [0, 0], sizes = [8, 128], strides = [1, 1]} : vector<8x384xf32> to vector<8x128xf32>
    %141 = vector.extract_strided_slice %139 {offsets = [0, 0], sizes = [8, 128], strides = [1, 1]} : vector<8x384xf32> to vector<8x128xf32>
    %142 = arith.addf %140, %141 : vector<8x128xf32>
    %143 = arith.negf %142 : vector<8x128xf32>
    %144 = math.exp %143 : vector<8x128xf32>
    %cst_47 = arith.constant 1.000000e+00 : f32
    %145 = vector.broadcast %cst_47 : f32 to vector<8x128xf32>
    %146 = arith.addf %145, %144 : vector<8x128xf32>
    %147 = arith.divf %145, %146 : vector<8x128xf32>
    %148 = vector.extract_strided_slice %138 {offsets = [0, 128], sizes = [8, 128], strides = [1, 1]} : vector<8x384xf32> to vector<8x128xf32>
    %149 = vector.extract_strided_slice %139 {offsets = [0, 128], sizes = [8, 128], strides = [1, 1]} : vector<8x384xf32> to vector<8x128xf32>
    %150 = arith.addf %148, %149 : vector<8x128xf32>
    %151 = arith.negf %150 : vector<8x128xf32>
    %152 = math.exp %151 : vector<8x128xf32>
    %cst_48 = arith.constant 1.000000e+00 : f32
    %153 = vector.broadcast %cst_48 : f32 to vector<8x128xf32>
    %154 = arith.addf %153, %152 : vector<8x128xf32>
    %155 = arith.divf %153, %154 : vector<8x128xf32>
    %156 = vector.extract_strided_slice %138 {offsets = [0, 256], sizes = [8, 128], strides = [1, 1]} : vector<8x384xf32> to vector<8x128xf32>
    %157 = vector.extract_strided_slice %139 {offsets = [0, 256], sizes = [8, 128], strides = [1, 1]} : vector<8x384xf32> to vector<8x128xf32>
    %158 = vector.broadcast %8 : vector<1x128xf32> to vector<8x128xf32>
    %159 = arith.addf %157, %158 : vector<8x128xf32>
    %160 = arith.mulf %147, %159 : vector<8x128xf32>
    %161 = arith.addf %156, %160 : vector<8x128xf32>
    %162 = math.tanh %161 : vector<8x128xf32>
    %cst_49 = arith.constant 1.000000e+00 : f32
    %163 = vector.broadcast %cst_49 : f32 to vector<8x128xf32>
    %164 = arith.subf %163, %155 : vector<8x128xf32>
    %165 = arith.mulf %164, %162 : vector<8x128xf32>
    %166 = arith.mulf %155, %136 : vector<8x128xf32>
    %167 = arith.addf %165, %166 : vector<8x128xf32>
    %c32_50 = arith.constant 32 : index
    %c0_51 = arith.constant 0 : index
    %168 = vector.load %arg9[%c32_50, %c0_51] : memref<64x128xf32, #tpu.memory_space<vmem>>, vector<8x128xf32>
    tpu.vector_store %arg9[%c32_50, %c0_51], %167 {strides = array<i32>} : memref<64x128xf32, #tpu.memory_space<vmem>>, vector<8x128xf32>,
    %c40 = arith.constant 40 : index
    %c0_52 = arith.constant 0 : index
    %169 = vector.load %arg10[%c40, %c0_52] : memref<64x384xf32, #tpu.memory_space<vmem>>, vector<8x384xf32>
    %cst_53 = arith.constant dense<0.000000e+00> : vector<8x384xf32>
    %170 = tpu.matmul %167, %4, %cst_53 {dimension_numbers = #tpu.dot_dimension_numbers<[1], [0], [0], [1], [0, 0, 1, 1], [], []>} : vector<8x128xf32>, vector<128x384xf32>, vector<8x384xf32> -> vector<8x384xf32>
    %171 = vector.extract_strided_slice %169 {offsets = [0, 0], sizes = [8, 128], strides = [1, 1]} : vector<8x384xf32> to vector<8x128xf32>
    %172 = vector.extract_strided_slice %170 {offsets = [0, 0], sizes = [8, 128], strides = [1, 1]} : vector<8x384xf32> to vector<8x128xf32>
    %173 = arith.addf %171, %172 : vector<8x128xf32>
    %174 = arith.negf %173 : vector<8x128xf32>
    %175 = math.exp %174 : vector<8x128xf32>
    %cst_54 = arith.constant 1.000000e+00 : f32
    %176 = vector.broadcast %cst_54 : f32 to vector<8x128xf32>
    %177 = arith.addf %176, %175 : vector<8x128xf32>
    %178 = arith.divf %176, %177 : vector<8x128xf32>
    %179 = vector.extract_strided_slice %169 {offsets = [0, 128], sizes = [8, 128], strides = [1, 1]} : vector<8x384xf32> to vector<8x128xf32>
    %180 = vector.extract_strided_slice %170 {offsets = [0, 128], sizes = [8, 128], strides = [1, 1]} : vector<8x384xf32> to vector<8x128xf32>
    %181 = arith.addf %179, %180 : vector<8x128xf32>
    %182 = arith.negf %181 : vector<8x128xf32>
    %183 = math.exp %182 : vector<8x128xf32>
    %cst_55 = arith.constant 1.000000e+00 : f32
    %184 = vector.broadcast %cst_55 : f32 to vector<8x128xf32>
    %185 = arith.addf %184, %183 : vector<8x128xf32>
    %186 = arith.divf %184, %185 : vector<8x128xf32>
    %187 = vector.extract_strided_slice %169 {offsets = [0, 256], sizes = [8, 128], strides = [1, 1]} : vector<8x384xf32> to vector<8x128xf32>
    %188 = vector.extract_strided_slice %170 {offsets = [0, 256], sizes = [8, 128], strides = [1, 1]} : vector<8x384xf32> to vector<8x128xf32>
    %189 = vector.broadcast %8 : vector<1x128xf32> to vector<8x128xf32>
    %190 = arith.addf %188, %189 : vector<8x128xf32>
    %191 = arith.mulf %178, %190 : vector<8x128xf32>
    %192 = arith.addf %187, %191 : vector<8x128xf32>
    %193 = math.tanh %192 : vector<8x128xf32>
    %cst_56 = arith.constant 1.000000e+00 : f32
    %194 = vector.broadcast %cst_56 : f32 to vector<8x128xf32>
    %195 = arith.subf %194, %186 : vector<8x128xf32>
    %196 = arith.mulf %195, %193 : vector<8x128xf32>
    %197 = arith.mulf %186, %167 : vector<8x128xf32>
    %198 = arith.addf %196, %197 : vector<8x128xf32>
    %c40_57 = arith.constant 40 : index
    %c0_58 = arith.constant 0 : index
    %199 = vector.load %arg9[%c40_57, %c0_58] : memref<64x128xf32, #tpu.memory_space<vmem>>, vector<8x128xf32>
    tpu.vector_store %arg9[%c40_57, %c0_58], %198 {strides = array<i32>} : memref<64x128xf32, #tpu.memory_space<vmem>>, vector<8x128xf32>,
    %c48 = arith.constant 48 : index
    %c0_59 = arith.constant 0 : index
    %200 = vector.load %arg10[%c48, %c0_59] : memref<64x384xf32, #tpu.memory_space<vmem>>, vector<8x384xf32>
    %cst_60 = arith.constant dense<0.000000e+00> : vector<8x384xf32>
    %201 = tpu.matmul %198, %4, %cst_60 {dimension_numbers = #tpu.dot_dimension_numbers<[1], [0], [0], [1], [0, 0, 1, 1], [], []>} : vector<8x128xf32>, vector<128x384xf32>, vector<8x384xf32> -> vector<8x384xf32>
    %202 = vector.extract_strided_slice %200 {offsets = [0, 0], sizes = [8, 128], strides = [1, 1]} : vector<8x384xf32> to vector<8x128xf32>
    %203 = vector.extract_strided_slice %201 {offsets = [0, 0], sizes = [8, 128], strides = [1, 1]} : vector<8x384xf32> to vector<8x128xf32>
    %204 = arith.addf %202, %203 : vector<8x128xf32>
    %205 = arith.negf %204 : vector<8x128xf32>
    %206 = math.exp %205 : vector<8x128xf32>
    %cst_61 = arith.constant 1.000000e+00 : f32
    %207 = vector.broadcast %cst_61 : f32 to vector<8x128xf32>
    %208 = arith.addf %207, %206 : vector<8x128xf32>
    %209 = arith.divf %207, %208 : vector<8x128xf32>
    %210 = vector.extract_strided_slice %200 {offsets = [0, 128], sizes = [8, 128], strides = [1, 1]} : vector<8x384xf32> to vector<8x128xf32>
    %211 = vector.extract_strided_slice %201 {offsets = [0, 128], sizes = [8, 128], strides = [1, 1]} : vector<8x384xf32> to vector<8x128xf32>
    %212 = arith.addf %210, %211 : vector<8x128xf32>
    %213 = arith.negf %212 : vector<8x128xf32>
    %214 = math.exp %213 : vector<8x128xf32>
    %cst_62 = arith.constant 1.000000e+00 : f32
    %215 = vector.broadcast %cst_62 : f32 to vector<8x128xf32>
    %216 = arith.addf %215, %214 : vector<8x128xf32>
    %217 = arith.divf %215, %216 : vector<8x128xf32>
    %218 = vector.extract_strided_slice %200 {offsets = [0, 256], sizes = [8, 128], strides = [1, 1]} : vector<8x384xf32> to vector<8x128xf32>
    %219 = vector.extract_strided_slice %201 {offsets = [0, 256], sizes = [8, 128], strides = [1, 1]} : vector<8x384xf32> to vector<8x128xf32>
    %220 = vector.broadcast %8 : vector<1x128xf32> to vector<8x128xf32>
    %221 = arith.addf %219, %220 : vector<8x128xf32>
    %222 = arith.mulf %209, %221 : vector<8x128xf32>
    %223 = arith.addf %218, %222 : vector<8x128xf32>
    %224 = math.tanh %223 : vector<8x128xf32>
    %cst_63 = arith.constant 1.000000e+00 : f32
    %225 = vector.broadcast %cst_63 : f32 to vector<8x128xf32>
    %226 = arith.subf %225, %217 : vector<8x128xf32>
    %227 = arith.mulf %226, %224 : vector<8x128xf32>
    %228 = arith.mulf %217, %198 : vector<8x128xf32>
    %229 = arith.addf %227, %228 : vector<8x128xf32>
    %c48_64 = arith.constant 48 : index
    %c0_65 = arith.constant 0 : index
    %230 = vector.load %arg9[%c48_64, %c0_65] : memref<64x128xf32, #tpu.memory_space<vmem>>, vector<8x128xf32>
    tpu.vector_store %arg9[%c48_64, %c0_65], %229 {strides = array<i32>} : memref<64x128xf32, #tpu.memory_space<vmem>>, vector<8x128xf32>,
    %c56 = arith.constant 56 : index
    %c0_66 = arith.constant 0 : index
    %231 = vector.load %arg10[%c56, %c0_66] : memref<64x384xf32, #tpu.memory_space<vmem>>, vector<8x384xf32>
    %cst_67 = arith.constant dense<0.000000e+00> : vector<8x384xf32>
    %232 = tpu.matmul %229, %4, %cst_67 {dimension_numbers = #tpu.dot_dimension_numbers<[1], [0], [0], [1], [0, 0, 1, 1], [], []>} : vector<8x128xf32>, vector<128x384xf32>, vector<8x384xf32> -> vector<8x384xf32>
    %233 = vector.extract_strided_slice %231 {offsets = [0, 0], sizes = [8, 128], strides = [1, 1]} : vector<8x384xf32> to vector<8x128xf32>
    %234 = vector.extract_strided_slice %232 {offsets = [0, 0], sizes = [8, 128], strides = [1, 1]} : vector<8x384xf32> to vector<8x128xf32>
    %235 = arith.addf %233, %234 : vector<8x128xf32>
    %236 = arith.negf %235 : vector<8x128xf32>
    %237 = math.exp %236 : vector<8x128xf32>
    %cst_68 = arith.constant 1.000000e+00 : f32
    %238 = vector.broadcast %cst_68 : f32 to vector<8x128xf32>
    %239 = arith.addf %238, %237 : vector<8x128xf32>
    %240 = arith.divf %238, %239 : vector<8x128xf32>
    %241 = vector.extract_strided_slice %231 {offsets = [0, 128], sizes = [8, 128], strides = [1, 1]} : vector<8x384xf32> to vector<8x128xf32>
    %242 = vector.extract_strided_slice %232 {offsets = [0, 128], sizes = [8, 128], strides = [1, 1]} : vector<8x384xf32> to vector<8x128xf32>
    %243 = arith.addf %241, %242 : vector<8x128xf32>
    %244 = arith.negf %243 : vector<8x128xf32>
    %245 = math.exp %244 : vector<8x128xf32>
    %cst_69 = arith.constant 1.000000e+00 : f32
    %246 = vector.broadcast %cst_69 : f32 to vector<8x128xf32>
    %247 = arith.addf %246, %245 : vector<8x128xf32>
    %248 = arith.divf %246, %247 : vector<8x128xf32>
    %249 = vector.extract_strided_slice %231 {offsets = [0, 256], sizes = [8, 128], strides = [1, 1]} : vector<8x384xf32> to vector<8x128xf32>
    %250 = vector.extract_strided_slice %232 {offsets = [0, 256], sizes = [8, 128], strides = [1, 1]} : vector<8x384xf32> to vector<8x128xf32>
    %251 = vector.broadcast %8 : vector<1x128xf32> to vector<8x128xf32>
    %252 = arith.addf %250, %251 : vector<8x128xf32>
    %253 = arith.mulf %240, %252 : vector<8x128xf32>
    %254 = arith.addf %249, %253 : vector<8x128xf32>
    %255 = math.tanh %254 : vector<8x128xf32>
    %cst_70 = arith.constant 1.000000e+00 : f32
    %256 = vector.broadcast %cst_70 : f32 to vector<8x128xf32>
    %257 = arith.subf %256, %248 : vector<8x128xf32>
    %258 = arith.mulf %257, %255 : vector<8x128xf32>
    %259 = arith.mulf %248, %229 : vector<8x128xf32>
    %260 = arith.addf %258, %259 : vector<8x128xf32>
    %c56_71 = arith.constant 56 : index
    %c0_72 = arith.constant 0 : index
    %261 = vector.load %arg9[%c56_71, %c0_72] : memref<64x128xf32, #tpu.memory_space<vmem>>, vector<8x128xf32>
    tpu.vector_store %arg9[%c56_71, %c0_72], %260 {strides = array<i32>} : memref<64x128xf32, #tpu.memory_space<vmem>>, vector<8x128xf32>,
    %c0_73 = arith.constant 0 : index
    %c0_74 = arith.constant 0 : index
    %262 = vector.load %arg9[%c0_73, %c0_74] : memref<64x128xf32, #tpu.memory_space<vmem>>, vector<64x128xf32>
    %c1 = arith.constant 1 : index
    %c0_75 = arith.constant 0 : index
    %c0_76 = arith.constant 0 : index
    %263 = vector.load %arg2[%c1, %c0_75, %c0_76] : memref<2x128x384xf32, #tpu.memory_space<vmem>>, vector<1x128x384xf32>
    %264 = vector.shape_cast %263 : vector<1x128x384xf32> to vector<128x384xf32>
    %c1_77 = arith.constant 1 : index
    %c0_78 = arith.constant 0 : index
    %c0_79 = arith.constant 0 : index
    %265 = vector.load %arg3[%c1_77, %c0_78, %c0_79] : memref<2x128x384xf32, #tpu.memory_space<vmem>>, vector<1x128x384xf32>
    %266 = vector.shape_cast %265 : vector<1x128x384xf32> to vector<128x384xf32>
    %c1_80 = arith.constant 1 : index
    %c0_81 = arith.constant 0 : index
    %c0_82 = arith.constant 0 : index
    %267 = vector.load %arg4[%c1_80, %c0_81, %c0_82] : memref<2x1x384xf32, #tpu.memory_space<vmem>>, vector<1x1x384xf32>
    %268 = vector.shape_cast %267 : vector<1x1x384xf32> to vector<1x384xf32>
    %c1_83 = arith.constant 1 : index
    %c0_84 = arith.constant 0 : index
    %c0_85 = arith.constant 0 : index
    %269 = vector.load %arg5[%c1_83, %c0_84, %c0_85] : memref<2x1x128xf32, #tpu.memory_space<vmem>>, vector<1x1x128xf32>
    %270 = vector.shape_cast %269 : vector<1x1x128xf32> to vector<1x128xf32>
    %cst_86 = arith.constant dense<0.000000e+00> : vector<64x384xf32>
    %271 = tpu.matmul %262, %264, %cst_86 {dimension_numbers = #tpu.dot_dimension_numbers<[1], [0], [0], [1], [0, 0, 1, 1], [], []>} : vector<64x128xf32>, vector<128x384xf32>, vector<64x384xf32> -> vector<64x384xf32>
    %272 = vector.broadcast %268 : vector<1x384xf32> to vector<64x384xf32>
    %273 = arith.addf %271, %272 : vector<64x384xf32>
    %c0_87 = arith.constant 0 : index
    %c0_88 = arith.constant 0 : index
    %274 = vector.load %arg10[%c0_87, %c0_88] : memref<64x384xf32, #tpu.memory_space<vmem>>, vector<64x384xf32>
    tpu.vector_store %arg10[%c0_87, %c0_88], %273 {strides = array<i32>} : memref<64x384xf32, #tpu.memory_space<vmem>>, vector<64x384xf32>,
    %cst_89 = arith.constant 0.000000e+00 : f32
    %275 = vector.broadcast %cst_89 : f32 to vector<8x128xf32>
    %c0_90 = arith.constant 0 : index
    %c0_91 = arith.constant 0 : index
    %276 = vector.load %arg10[%c0_90, %c0_91] : memref<64x384xf32, #tpu.memory_space<vmem>>, vector<8x384xf32>
    %cst_92 = arith.constant dense<0.000000e+00> : vector<8x384xf32>
    %277 = tpu.matmul %275, %266, %cst_92 {dimension_numbers = #tpu.dot_dimension_numbers<[1], [0], [0], [1], [0, 0, 1, 1], [], []>} : vector<8x128xf32>, vector<128x384xf32>, vector<8x384xf32> -> vector<8x384xf32>
    %278 = vector.extract_strided_slice %276 {offsets = [0, 0], sizes = [8, 128], strides = [1, 1]} : vector<8x384xf32> to vector<8x128xf32>
    %279 = vector.extract_strided_slice %277 {offsets = [0, 0], sizes = [8, 128], strides = [1, 1]} : vector<8x384xf32> to vector<8x128xf32>
    %280 = arith.addf %278, %279 : vector<8x128xf32>
    %281 = arith.negf %280 : vector<8x128xf32>
    %282 = math.exp %281 : vector<8x128xf32>
    %cst_93 = arith.constant 1.000000e+00 : f32
    %283 = vector.broadcast %cst_93 : f32 to vector<8x128xf32>
    %284 = arith.addf %283, %282 : vector<8x128xf32>
    %285 = arith.divf %283, %284 : vector<8x128xf32>
    %286 = vector.extract_strided_slice %276 {offsets = [0, 128], sizes = [8, 128], strides = [1, 1]} : vector<8x384xf32> to vector<8x128xf32>
    %287 = vector.extract_strided_slice %277 {offsets = [0, 128], sizes = [8, 128], strides = [1, 1]} : vector<8x384xf32> to vector<8x128xf32>
    %288 = arith.addf %286, %287 : vector<8x128xf32>
    %289 = arith.negf %288 : vector<8x128xf32>
    %290 = math.exp %289 : vector<8x128xf32>
    %cst_94 = arith.constant 1.000000e+00 : f32
    %291 = vector.broadcast %cst_94 : f32 to vector<8x128xf32>
    %292 = arith.addf %291, %290 : vector<8x128xf32>
    %293 = arith.divf %291, %292 : vector<8x128xf32>
    %294 = vector.extract_strided_slice %276 {offsets = [0, 256], sizes = [8, 128], strides = [1, 1]} : vector<8x384xf32> to vector<8x128xf32>
    %295 = vector.extract_strided_slice %277 {offsets = [0, 256], sizes = [8, 128], strides = [1, 1]} : vector<8x384xf32> to vector<8x128xf32>
    %296 = vector.broadcast %270 : vector<1x128xf32> to vector<8x128xf32>
    %297 = arith.addf %295, %296 : vector<8x128xf32>
    %298 = arith.mulf %285, %297 : vector<8x128xf32>
    %299 = arith.addf %294, %298 : vector<8x128xf32>
    %300 = math.tanh %299 : vector<8x128xf32>
    %cst_95 = arith.constant 1.000000e+00 : f32
    %301 = vector.broadcast %cst_95 : f32 to vector<8x128xf32>
    %302 = arith.subf %301, %293 : vector<8x128xf32>
    %303 = arith.mulf %302, %300 : vector<8x128xf32>
    %304 = arith.mulf %293, %275 : vector<8x128xf32>
    %305 = arith.addf %303, %304 : vector<8x128xf32>
    %c0_96 = arith.constant 0 : index
    %c0_97 = arith.constant 0 : index
    %306 = vector.load %arg9[%c0_96, %c0_97] : memref<64x128xf32, #tpu.memory_space<vmem>>, vector<8x128xf32>
    tpu.vector_store %arg9[%c0_96, %c0_97], %305 {strides = array<i32>} : memref<64x128xf32, #tpu.memory_space<vmem>>, vector<8x128xf32>,
    %c8_98 = arith.constant 8 : index
    %c0_99 = arith.constant 0 : index
    %307 = vector.load %arg10[%c8_98, %c0_99] : memref<64x384xf32, #tpu.memory_space<vmem>>, vector<8x384xf32>
    %cst_100 = arith.constant dense<0.000000e+00> : vector<8x384xf32>
    %308 = tpu.matmul %305, %266, %cst_100 {dimension_numbers = #tpu.dot_dimension_numbers<[1], [0], [0], [1], [0, 0, 1, 1], [], []>} : vector<8x128xf32>, vector<128x384xf32>, vector<8x384xf32> -> vector<8x384xf32>
    %309 = vector.extract_strided_slice %307 {offsets = [0, 0], sizes = [8, 128], strides = [1, 1]} : vector<8x384xf32> to vector<8x128xf32>
    %310 = vector.extract_strided_slice %308 {offsets = [0, 0], sizes = [8, 128], strides = [1, 1]} : vector<8x384xf32> to vector<8x128xf32>
    %311 = arith.addf %309, %310 : vector<8x128xf32>
    %312 = arith.negf %311 : vector<8x128xf32>
    %313 = math.exp %312 : vector<8x128xf32>
    %cst_101 = arith.constant 1.000000e+00 : f32
    %314 = vector.broadcast %cst_101 : f32 to vector<8x128xf32>
    %315 = arith.addf %314, %313 : vector<8x128xf32>
    %316 = arith.divf %314, %315 : vector<8x128xf32>
    %317 = vector.extract_strided_slice %307 {offsets = [0, 128], sizes = [8, 128], strides = [1, 1]} : vector<8x384xf32> to vector<8x128xf32>
    %318 = vector.extract_strided_slice %308 {offsets = [0, 128], sizes = [8, 128], strides = [1, 1]} : vector<8x384xf32> to vector<8x128xf32>
    %319 = arith.addf %317, %318 : vector<8x128xf32>
    %320 = arith.negf %319 : vector<8x128xf32>
    %321 = math.exp %320 : vector<8x128xf32>
    %cst_102 = arith.constant 1.000000e+00 : f32
    %322 = vector.broadcast %cst_102 : f32 to vector<8x128xf32>
    %323 = arith.addf %322, %321 : vector<8x128xf32>
    %324 = arith.divf %322, %323 : vector<8x128xf32>
    %325 = vector.extract_strided_slice %307 {offsets = [0, 256], sizes = [8, 128], strides = [1, 1]} : vector<8x384xf32> to vector<8x128xf32>
    %326 = vector.extract_strided_slice %308 {offsets = [0, 256], sizes = [8, 128], strides = [1, 1]} : vector<8x384xf32> to vector<8x128xf32>
    %327 = vector.broadcast %270 : vector<1x128xf32> to vector<8x128xf32>
    %328 = arith.addf %326, %327 : vector<8x128xf32>
    %329 = arith.mulf %316, %328 : vector<8x128xf32>
    %330 = arith.addf %325, %329 : vector<8x128xf32>
    %331 = math.tanh %330 : vector<8x128xf32>
    %cst_103 = arith.constant 1.000000e+00 : f32
    %332 = vector.broadcast %cst_103 : f32 to vector<8x128xf32>
    %333 = arith.subf %332, %324 : vector<8x128xf32>
    %334 = arith.mulf %333, %331 : vector<8x128xf32>
    %335 = arith.mulf %324, %305 : vector<8x128xf32>
    %336 = arith.addf %334, %335 : vector<8x128xf32>
    %c8_104 = arith.constant 8 : index
    %c0_105 = arith.constant 0 : index
    %337 = vector.load %arg9[%c8_104, %c0_105] : memref<64x128xf32, #tpu.memory_space<vmem>>, vector<8x128xf32>
    tpu.vector_store %arg9[%c8_104, %c0_105], %336 {strides = array<i32>} : memref<64x128xf32, #tpu.memory_space<vmem>>, vector<8x128xf32>,
    %c16_106 = arith.constant 16 : index
    %c0_107 = arith.constant 0 : index
    %338 = vector.load %arg10[%c16_106, %c0_107] : memref<64x384xf32, #tpu.memory_space<vmem>>, vector<8x384xf32>
    %cst_108 = arith.constant dense<0.000000e+00> : vector<8x384xf32>
    %339 = tpu.matmul %336, %266, %cst_108 {dimension_numbers = #tpu.dot_dimension_numbers<[1], [0], [0], [1], [0, 0, 1, 1], [], []>} : vector<8x128xf32>, vector<128x384xf32>, vector<8x384xf32> -> vector<8x384xf32>
    %340 = vector.extract_strided_slice %338 {offsets = [0, 0], sizes = [8, 128], strides = [1, 1]} : vector<8x384xf32> to vector<8x128xf32>
    %341 = vector.extract_strided_slice %339 {offsets = [0, 0], sizes = [8, 128], strides = [1, 1]} : vector<8x384xf32> to vector<8x128xf32>
    %342 = arith.addf %340, %341 : vector<8x128xf32>
    %343 = arith.negf %342 : vector<8x128xf32>
    %344 = math.exp %343 : vector<8x128xf32>
    %cst_109 = arith.constant 1.000000e+00 : f32
    %345 = vector.broadcast %cst_109 : f32 to vector<8x128xf32>
    %346 = arith.addf %345, %344 : vector<8x128xf32>
    %347 = arith.divf %345, %346 : vector<8x128xf32>
    %348 = vector.extract_strided_slice %338 {offsets = [0, 128], sizes = [8, 128], strides = [1, 1]} : vector<8x384xf32> to vector<8x128xf32>
    %349 = vector.extract_strided_slice %339 {offsets = [0, 128], sizes = [8, 128], strides = [1, 1]} : vector<8x384xf32> to vector<8x128xf32>
    %350 = arith.addf %348, %349 : vector<8x128xf32>
    %351 = arith.negf %350 : vector<8x128xf32>
    %352 = math.exp %351 : vector<8x128xf32>
    %cst_110 = arith.constant 1.000000e+00 : f32
    %353 = vector.broadcast %cst_110 : f32 to vector<8x128xf32>
    %354 = arith.addf %353, %352 : vector<8x128xf32>
    %355 = arith.divf %353, %354 : vector<8x128xf32>
    %356 = vector.extract_strided_slice %338 {offsets = [0, 256], sizes = [8, 128], strides = [1, 1]} : vector<8x384xf32> to vector<8x128xf32>
    %357 = vector.extract_strided_slice %339 {offsets = [0, 256], sizes = [8, 128], strides = [1, 1]} : vector<8x384xf32> to vector<8x128xf32>
    %358 = vector.broadcast %270 : vector<1x128xf32> to vector<8x128xf32>
    %359 = arith.addf %357, %358 : vector<8x128xf32>
    %360 = arith.mulf %347, %359 : vector<8x128xf32>
    %361 = arith.addf %356, %360 : vector<8x128xf32>
    %362 = math.tanh %361 : vector<8x128xf32>
    %cst_111 = arith.constant 1.000000e+00 : f32
    %363 = vector.broadcast %cst_111 : f32 to vector<8x128xf32>
    %364 = arith.subf %363, %355 : vector<8x128xf32>
    %365 = arith.mulf %364, %362 : vector<8x128xf32>
    %366 = arith.mulf %355, %336 : vector<8x128xf32>
    %367 = arith.addf %365, %366 : vector<8x128xf32>
    %c16_112 = arith.constant 16 : index
    %c0_113 = arith.constant 0 : index
    %368 = vector.load %arg9[%c16_112, %c0_113] : memref<64x128xf32, #tpu.memory_space<vmem>>, vector<8x128xf32>
    tpu.vector_store %arg9[%c16_112, %c0_113], %367 {strides = array<i32>} : memref<64x128xf32, #tpu.memory_space<vmem>>, vector<8x128xf32>,
    %c24_114 = arith.constant 24 : index
    %c0_115 = arith.constant 0 : index
    %369 = vector.load %arg10[%c24_114, %c0_115] : memref<64x384xf32, #tpu.memory_space<vmem>>, vector<8x384xf32>
    %cst_116 = arith.constant dense<0.000000e+00> : vector<8x384xf32>
    %370 = tpu.matmul %367, %266, %cst_116 {dimension_numbers = #tpu.dot_dimension_numbers<[1], [0], [0], [1], [0, 0, 1, 1], [], []>} : vector<8x128xf32>, vector<128x384xf32>, vector<8x384xf32> -> vector<8x384xf32>
    %371 = vector.extract_strided_slice %369 {offsets = [0, 0], sizes = [8, 128], strides = [1, 1]} : vector<8x384xf32> to vector<8x128xf32>
    %372 = vector.extract_strided_slice %370 {offsets = [0, 0], sizes = [8, 128], strides = [1, 1]} : vector<8x384xf32> to vector<8x128xf32>
    %373 = arith.addf %371, %372 : vector<8x128xf32>
    %374 = arith.negf %373 : vector<8x128xf32>
    %375 = math.exp %374 : vector<8x128xf32>
    %cst_117 = arith.constant 1.000000e+00 : f32
    %376 = vector.broadcast %cst_117 : f32 to vector<8x128xf32>
    %377 = arith.addf %376, %375 : vector<8x128xf32>
    %378 = arith.divf %376, %377 : vector<8x128xf32>
    %379 = vector.extract_strided_slice %369 {offsets = [0, 128], sizes = [8, 128], strides = [1, 1]} : vector<8x384xf32> to vector<8x128xf32>
    %380 = vector.extract_strided_slice %370 {offsets = [0, 128], sizes = [8, 128], strides = [1, 1]} : vector<8x384xf32> to vector<8x128xf32>
    %381 = arith.addf %379, %380 : vector<8x128xf32>
    %382 = arith.negf %381 : vector<8x128xf32>
    %383 = math.exp %382 : vector<8x128xf32>
    %cst_118 = arith.constant 1.000000e+00 : f32
    %384 = vector.broadcast %cst_118 : f32 to vector<8x128xf32>
    %385 = arith.addf %384, %383 : vector<8x128xf32>
    %386 = arith.divf %384, %385 : vector<8x128xf32>
    %387 = vector.extract_strided_slice %369 {offsets = [0, 256], sizes = [8, 128], strides = [1, 1]} : vector<8x384xf32> to vector<8x128xf32>
    %388 = vector.extract_strided_slice %370 {offsets = [0, 256], sizes = [8, 128], strides = [1, 1]} : vector<8x384xf32> to vector<8x128xf32>
    %389 = vector.broadcast %270 : vector<1x128xf32> to vector<8x128xf32>
    %390 = arith.addf %388, %389 : vector<8x128xf32>
    %391 = arith.mulf %378, %390 : vector<8x128xf32>
    %392 = arith.addf %387, %391 : vector<8x128xf32>
    %393 = math.tanh %392 : vector<8x128xf32>
    %cst_119 = arith.constant 1.000000e+00 : f32
    %394 = vector.broadcast %cst_119 : f32 to vector<8x128xf32>
    %395 = arith.subf %394, %386 : vector<8x128xf32>
    %396 = arith.mulf %395, %393 : vector<8x128xf32>
    %397 = arith.mulf %386, %367 : vector<8x128xf32>
    %398 = arith.addf %396, %397 : vector<8x128xf32>
    %c24_120 = arith.constant 24 : index
    %c0_121 = arith.constant 0 : index
    %399 = vector.load %arg9[%c24_120, %c0_121] : memref<64x128xf32, #tpu.memory_space<vmem>>, vector<8x128xf32>
    tpu.vector_store %arg9[%c24_120, %c0_121], %398 {strides = array<i32>} : memref<64x128xf32, #tpu.memory_space<vmem>>, vector<8x128xf32>,
    %c32_122 = arith.constant 32 : index
    %c0_123 = arith.constant 0 : index
    %400 = vector.load %arg10[%c32_122, %c0_123] : memref<64x384xf32, #tpu.memory_space<vmem>>, vector<8x384xf32>
    %cst_124 = arith.constant dense<0.000000e+00> : vector<8x384xf32>
    %401 = tpu.matmul %398, %266, %cst_124 {dimension_numbers = #tpu.dot_dimension_numbers<[1], [0], [0], [1], [0, 0, 1, 1], [], []>} : vector<8x128xf32>, vector<128x384xf32>, vector<8x384xf32> -> vector<8x384xf32>
    %402 = vector.extract_strided_slice %400 {offsets = [0, 0], sizes = [8, 128], strides = [1, 1]} : vector<8x384xf32> to vector<8x128xf32>
    %403 = vector.extract_strided_slice %401 {offsets = [0, 0], sizes = [8, 128], strides = [1, 1]} : vector<8x384xf32> to vector<8x128xf32>
    %404 = arith.addf %402, %403 : vector<8x128xf32>
    %405 = arith.negf %404 : vector<8x128xf32>
    %406 = math.exp %405 : vector<8x128xf32>
    %cst_125 = arith.constant 1.000000e+00 : f32
    %407 = vector.broadcast %cst_125 : f32 to vector<8x128xf32>
    %408 = arith.addf %407, %406 : vector<8x128xf32>
    %409 = arith.divf %407, %408 : vector<8x128xf32>
    %410 = vector.extract_strided_slice %400 {offsets = [0, 128], sizes = [8, 128], strides = [1, 1]} : vector<8x384xf32> to vector<8x128xf32>
    %411 = vector.extract_strided_slice %401 {offsets = [0, 128], sizes = [8, 128], strides = [1, 1]} : vector<8x384xf32> to vector<8x128xf32>
    %412 = arith.addf %410, %411 : vector<8x128xf32>
    %413 = arith.negf %412 : vector<8x128xf32>
    %414 = math.exp %413 : vector<8x128xf32>
    %cst_126 = arith.constant 1.000000e+00 : f32
    %415 = vector.broadcast %cst_126 : f32 to vector<8x128xf32>
    %416 = arith.addf %415, %414 : vector<8x128xf32>
    %417 = arith.divf %415, %416 : vector<8x128xf32>
    %418 = vector.extract_strided_slice %400 {offsets = [0, 256], sizes = [8, 128], strides = [1, 1]} : vector<8x384xf32> to vector<8x128xf32>
    %419 = vector.extract_strided_slice %401 {offsets = [0, 256], sizes = [8, 128], strides = [1, 1]} : vector<8x384xf32> to vector<8x128xf32>
    %420 = vector.broadcast %270 : vector<1x128xf32> to vector<8x128xf32>
    %421 = arith.addf %419, %420 : vector<8x128xf32>
    %422 = arith.mulf %409, %421 : vector<8x128xf32>
    %423 = arith.addf %418, %422 : vector<8x128xf32>
    %424 = math.tanh %423 : vector<8x128xf32>
    %cst_127 = arith.constant 1.000000e+00 : f32
    %425 = vector.broadcast %cst_127 : f32 to vector<8x128xf32>
    %426 = arith.subf %425, %417 : vector<8x128xf32>
    %427 = arith.mulf %426, %424 : vector<8x128xf32>
    %428 = arith.mulf %417, %398 : vector<8x128xf32>
    %429 = arith.addf %427, %428 : vector<8x128xf32>
    %c32_128 = arith.constant 32 : index
    %c0_129 = arith.constant 0 : index
    %430 = vector.load %arg9[%c32_128, %c0_129] : memref<64x128xf32, #tpu.memory_space<vmem>>, vector<8x128xf32>
    tpu.vector_store %arg9[%c32_128, %c0_129], %429 {strides = array<i32>} : memref<64x128xf32, #tpu.memory_space<vmem>>, vector<8x128xf32>,
    %c40_130 = arith.constant 40 : index
    %c0_131 = arith.constant 0 : index
    %431 = vector.load %arg10[%c40_130, %c0_131] : memref<64x384xf32, #tpu.memory_space<vmem>>, vector<8x384xf32>
    %cst_132 = arith.constant dense<0.000000e+00> : vector<8x384xf32>
    %432 = tpu.matmul %429, %266, %cst_132 {dimension_numbers = #tpu.dot_dimension_numbers<[1], [0], [0], [1], [0, 0, 1, 1], [], []>} : vector<8x128xf32>, vector<128x384xf32>, vector<8x384xf32> -> vector<8x384xf32>
    %433 = vector.extract_strided_slice %431 {offsets = [0, 0], sizes = [8, 128], strides = [1, 1]} : vector<8x384xf32> to vector<8x128xf32>
    %434 = vector.extract_strided_slice %432 {offsets = [0, 0], sizes = [8, 128], strides = [1, 1]} : vector<8x384xf32> to vector<8x128xf32>
    %435 = arith.addf %433, %434 : vector<8x128xf32>
    %436 = arith.negf %435 : vector<8x128xf32>
    %437 = math.exp %436 : vector<8x128xf32>
    %cst_133 = arith.constant 1.000000e+00 : f32
    %438 = vector.broadcast %cst_133 : f32 to vector<8x128xf32>
    %439 = arith.addf %438, %437 : vector<8x128xf32>
    %440 = arith.divf %438, %439 : vector<8x128xf32>
    %441 = vector.extract_strided_slice %431 {offsets = [0, 128], sizes = [8, 128], strides = [1, 1]} : vector<8x384xf32> to vector<8x128xf32>
    %442 = vector.extract_strided_slice %432 {offsets = [0, 128], sizes = [8, 128], strides = [1, 1]} : vector<8x384xf32> to vector<8x128xf32>
    %443 = arith.addf %441, %442 : vector<8x128xf32>
    %444 = arith.negf %443 : vector<8x128xf32>
    %445 = math.exp %444 : vector<8x128xf32>
    %cst_134 = arith.constant 1.000000e+00 : f32
    %446 = vector.broadcast %cst_134 : f32 to vector<8x128xf32>
    %447 = arith.addf %446, %445 : vector<8x128xf32>
    %448 = arith.divf %446, %447 : vector<8x128xf32>
    %449 = vector.extract_strided_slice %431 {offsets = [0, 256], sizes = [8, 128], strides = [1, 1]} : vector<8x384xf32> to vector<8x128xf32>
    %450 = vector.extract_strided_slice %432 {offsets = [0, 256], sizes = [8, 128], strides = [1, 1]} : vector<8x384xf32> to vector<8x128xf32>
    %451 = vector.broadcast %270 : vector<1x128xf32> to vector<8x128xf32>
    %452 = arith.addf %450, %451 : vector<8x128xf32>
    %453 = arith.mulf %440, %452 : vector<8x128xf32>
    %454 = arith.addf %449, %453 : vector<8x128xf32>
    %455 = math.tanh %454 : vector<8x128xf32>
    %cst_135 = arith.constant 1.000000e+00 : f32
    %456 = vector.broadcast %cst_135 : f32 to vector<8x128xf32>
    %457 = arith.subf %456, %448 : vector<8x128xf32>
    %458 = arith.mulf %457, %455 : vector<8x128xf32>
    %459 = arith.mulf %448, %429 : vector<8x128xf32>
    %460 = arith.addf %458, %459 : vector<8x128xf32>
    %c40_136 = arith.constant 40 : index
    %c0_137 = arith.constant 0 : index
    %461 = vector.load %arg9[%c40_136, %c0_137] : memref<64x128xf32, #tpu.memory_space<vmem>>, vector<8x128xf32>
    tpu.vector_store %arg9[%c40_136, %c0_137], %460 {strides = array<i32>} : memref<64x128xf32, #tpu.memory_space<vmem>>, vector<8x128xf32>,
    %c48_138 = arith.constant 48 : index
    %c0_139 = arith.constant 0 : index
    %462 = vector.load %arg10[%c48_138, %c0_139] : memref<64x384xf32, #tpu.memory_space<vmem>>, vector<8x384xf32>
    %cst_140 = arith.constant dense<0.000000e+00> : vector<8x384xf32>
    %463 = tpu.matmul %460, %266, %cst_140 {dimension_numbers = #tpu.dot_dimension_numbers<[1], [0], [0], [1], [0, 0, 1, 1], [], []>} : vector<8x128xf32>, vector<128x384xf32>, vector<8x384xf32> -> vector<8x384xf32>
    %464 = vector.extract_strided_slice %462 {offsets = [0, 0], sizes = [8, 128], strides = [1, 1]} : vector<8x384xf32> to vector<8x128xf32>
    %465 = vector.extract_strided_slice %463 {offsets = [0, 0], sizes = [8, 128], strides = [1, 1]} : vector<8x384xf32> to vector<8x128xf32>
    %466 = arith.addf %464, %465 : vector<8x128xf32>
    %467 = arith.negf %466 : vector<8x128xf32>
    %468 = math.exp %467 : vector<8x128xf32>
    %cst_141 = arith.constant 1.000000e+00 : f32
    %469 = vector.broadcast %cst_141 : f32 to vector<8x128xf32>
    %470 = arith.addf %469, %468 : vector<8x128xf32>
    %471 = arith.divf %469, %470 : vector<8x128xf32>
    %472 = vector.extract_strided_slice %462 {offsets = [0, 128], sizes = [8, 128], strides = [1, 1]} : vector<8x384xf32> to vector<8x128xf32>
    %473 = vector.extract_strided_slice %463 {offsets = [0, 128], sizes = [8, 128], strides = [1, 1]} : vector<8x384xf32> to vector<8x128xf32>
    %474 = arith.addf %472, %473 : vector<8x128xf32>
    %475 = arith.negf %474 : vector<8x128xf32>
    %476 = math.exp %475 : vector<8x128xf32>
    %cst_142 = arith.constant 1.000000e+00 : f32
    %477 = vector.broadcast %cst_142 : f32 to vector<8x128xf32>
    %478 = arith.addf %477, %476 : vector<8x128xf32>
    %479 = arith.divf %477, %478 : vector<8x128xf32>
    %480 = vector.extract_strided_slice %462 {offsets = [0, 256], sizes = [8, 128], strides = [1, 1]} : vector<8x384xf32> to vector<8x128xf32>
    %481 = vector.extract_strided_slice %463 {offsets = [0, 256], sizes = [8, 128], strides = [1, 1]} : vector<8x384xf32> to vector<8x128xf32>
    %482 = vector.broadcast %270 : vector<1x128xf32> to vector<8x128xf32>
    %483 = arith.addf %481, %482 : vector<8x128xf32>
    %484 = arith.mulf %471, %483 : vector<8x128xf32>
    %485 = arith.addf %480, %484 : vector<8x128xf32>
    %486 = math.tanh %485 : vector<8x128xf32>
    %cst_143 = arith.constant 1.000000e+00 : f32
    %487 = vector.broadcast %cst_143 : f32 to vector<8x128xf32>
    %488 = arith.subf %487, %479 : vector<8x128xf32>
    %489 = arith.mulf %488, %486 : vector<8x128xf32>
    %490 = arith.mulf %479, %460 : vector<8x128xf32>
    %491 = arith.addf %489, %490 : vector<8x128xf32>
    %c48_144 = arith.constant 48 : index
    %c0_145 = arith.constant 0 : index
    %492 = vector.load %arg9[%c48_144, %c0_145] : memref<64x128xf32, #tpu.memory_space<vmem>>, vector<8x128xf32>
    tpu.vector_store %arg9[%c48_144, %c0_145], %491 {strides = array<i32>} : memref<64x128xf32, #tpu.memory_space<vmem>>, vector<8x128xf32>,
    %c56_146 = arith.constant 56 : index
    %c0_147 = arith.constant 0 : index
    %493 = vector.load %arg10[%c56_146, %c0_147] : memref<64x384xf32, #tpu.memory_space<vmem>>, vector<8x384xf32>
    %cst_148 = arith.constant dense<0.000000e+00> : vector<8x384xf32>
    %494 = tpu.matmul %491, %266, %cst_148 {dimension_numbers = #tpu.dot_dimension_numbers<[1], [0], [0], [1], [0, 0, 1, 1], [], []>} : vector<8x128xf32>, vector<128x384xf32>, vector<8x384xf32> -> vector<8x384xf32>
    %495 = vector.extract_strided_slice %493 {offsets = [0, 0], sizes = [8, 128], strides = [1, 1]} : vector<8x384xf32> to vector<8x128xf32>
    %496 = vector.extract_strided_slice %494 {offsets = [0, 0], sizes = [8, 128], strides = [1, 1]} : vector<8x384xf32> to vector<8x128xf32>
    %497 = arith.addf %495, %496 : vector<8x128xf32>
    %498 = arith.negf %497 : vector<8x128xf32>
    %499 = math.exp %498 : vector<8x128xf32>
    %cst_149 = arith.constant 1.000000e+00 : f32
    %500 = vector.broadcast %cst_149 : f32 to vector<8x128xf32>
    %501 = arith.addf %500, %499 : vector<8x128xf32>
    %502 = arith.divf %500, %501 : vector<8x128xf32>
    %503 = vector.extract_strided_slice %493 {offsets = [0, 128], sizes = [8, 128], strides = [1, 1]} : vector<8x384xf32> to vector<8x128xf32>
    %504 = vector.extract_strided_slice %494 {offsets = [0, 128], sizes = [8, 128], strides = [1, 1]} : vector<8x384xf32> to vector<8x128xf32>
    %505 = arith.addf %503, %504 : vector<8x128xf32>
    %506 = arith.negf %505 : vector<8x128xf32>
    %507 = math.exp %506 : vector<8x128xf32>
    %cst_150 = arith.constant 1.000000e+00 : f32
    %508 = vector.broadcast %cst_150 : f32 to vector<8x128xf32>
    %509 = arith.addf %508, %507 : vector<8x128xf32>
    %510 = arith.divf %508, %509 : vector<8x128xf32>
    %511 = vector.extract_strided_slice %493 {offsets = [0, 256], sizes = [8, 128], strides = [1, 1]} : vector<8x384xf32> to vector<8x128xf32>
    %512 = vector.extract_strided_slice %494 {offsets = [0, 256], sizes = [8, 128], strides = [1, 1]} : vector<8x384xf32> to vector<8x128xf32>
    %513 = vector.broadcast %270 : vector<1x128xf32> to vector<8x128xf32>
    %514 = arith.addf %512, %513 : vector<8x128xf32>
    %515 = arith.mulf %502, %514 : vector<8x128xf32>
    %516 = arith.addf %511, %515 : vector<8x128xf32>
    %517 = math.tanh %516 : vector<8x128xf32>
    %cst_151 = arith.constant 1.000000e+00 : f32
    %518 = vector.broadcast %cst_151 : f32 to vector<8x128xf32>
    %519 = arith.subf %518, %510 : vector<8x128xf32>
    %520 = arith.mulf %519, %517 : vector<8x128xf32>
    %521 = arith.mulf %510, %491 : vector<8x128xf32>
    %522 = arith.addf %520, %521 : vector<8x128xf32>
    %c56_152 = arith.constant 56 : index
    %c0_153 = arith.constant 0 : index
    %523 = vector.load %arg9[%c56_152, %c0_153] : memref<64x128xf32, #tpu.memory_space<vmem>>, vector<8x128xf32>
    tpu.vector_store %arg9[%c56_152, %c0_153], %522 {strides = array<i32>} : memref<64x128xf32, #tpu.memory_space<vmem>>, vector<8x128xf32>,
    %c0_154 = arith.constant 0 : index
    %c0_155 = arith.constant 0 : index
    %524 = vector.load %arg6[%c0_154, %c0_155] : memref<1x128xf32, #tpu.memory_space<vmem>>, vector<1x128xf32>
    %c0_156 = arith.constant 0 : index
    %c0_157 = arith.constant 0 : index
    %525 = vector.load %arg9[%c0_156, %c0_157] : memref<64x128xf32, #tpu.memory_space<vmem>>, vector<64x128xf32>
    "tpu.trace_start"() <{level = 10 : i32, message = "oh,nh->on"}> : () -> ()
    %cst_158 = arith.constant dense<0.000000e+00> : vector<1x64xf32>
    %526 = tpu.matmul %524, %525, %cst_158 {dimension_numbers = #tpu.dot_dimension_numbers<[1], [1], [0], [0], [0, 0, 1, 0], [], []>} : vector<1x128xf32>, vector<64x128xf32>, vector<1x64xf32> -> vector<1x64xf32>
    "tpu.trace_stop"() : () -> ()
    %c0_159 = arith.constant 0 : index
    %c0_160 = arith.constant 0 : index
    %527 = vector.load %arg7[%c0_159, %c0_160] : memref<1x1xf32, #tpu.memory_space<vmem>>, vector<1x1xf32>
    %528 = vector.broadcast %527 : vector<1x1xf32> to vector<1x64xf32>
    %529 = arith.addf %526, %528 : vector<1x64xf32>
    %c0_161 = arith.constant 0 : index
    %c0_162 = arith.constant 0 : index
    %530 = vector.load %arg8[%c0_161, %c0_162] : memref<1x64xf32, #tpu.memory_space<vmem>>, vector<1x64xf32>
    tpu.vector_store %arg8[%c0_161, %c0_162], %529 {strides = array<i32>} : memref<1x64xf32, #tpu.memory_space<vmem>>, vector<1x64xf32>,
    return
  }
  func.func @transform_0(%arg0: i32) -> (i32, i32) {
    %c0_i32 = arith.constant 0 : i32
    %c0_i32_0 = arith.constant 0 : i32
    %c0_i32_1 = arith.constant 0 : i32
    return %c0_i32, %c0_i32_0 : i32, i32
  }
  func.func @transform_1(%arg0: i32) -> (i32, i32, i32) {
    %c0_i32 = arith.constant 0 : i32
    %c0_i32_0 = arith.constant 0 : i32
    %c0_i32_1 = arith.constant 0 : i32
    %c0_i32_2 = arith.constant 0 : i32
    return %c0_i32, %c0_i32_0, %c0_i32_1 : i32, i32, i32
  }
  func.func @transform_2(%arg0: i32) -> (i32, i32, i32) {
    %c0_i32 = arith.constant 0 : i32
    %c0_i32_0 = arith.constant 0 : i32
    %c0_i32_1 = arith.constant 0 : i32
    %c0_i32_2 = arith.constant 0 : i32
    return %c0_i32, %c0_i32_0, %c0_i32_1 : i32, i32, i32
  }
  func.func @transform_3(%arg0: i32) -> (i32, i32, i32) {
    %c0_i32 = arith.constant 0 : i32
    %c0_i32_0 = arith.constant 0 : i32
    %c0_i32_1 = arith.constant 0 : i32
    %c0_i32_2 = arith.constant 0 : i32
    return %c0_i32, %c0_i32_0, %c0_i32_1 : i32, i32, i32
  }
  func.func @transform_4(%arg0: i32) -> (i32, i32, i32) {
    %c0_i32 = arith.constant 0 : i32
    %c0_i32_0 = arith.constant 0 : i32
    %c0_i32_1 = arith.constant 0 : i32
    %c0_i32_2 = arith.constant 0 : i32
    return %c0_i32, %c0_i32_0, %c0_i32_1 : i32, i32, i32
  }
  func.func @transform_5(%arg0: i32) -> (i32, i32) {
    %c0_i32 = arith.constant 0 : i32
    %c0_i32_0 = arith.constant 0 : i32
    %c0_i32_1 = arith.constant 0 : i32
    return %c0_i32, %c0_i32_0 : i32, i32
  }
  func.func @transform_6(%arg0: i32) -> (i32, i32) {
    %c0_i32 = arith.constant 0 : i32
    %c0_i32_0 = arith.constant 0 : i32
    %c0_i32_1 = arith.constant 0 : i32
    return %c0_i32, %c0_i32_0 : i32, i32
  }
  func.func @transform_7(%arg0: i32) -> (i32, i32) {
    %c0_i32 = arith.constant 0 : i32
    %c0_i32_0 = arith.constant 0 : i32
    %c0_i32_1 = arith.constant 0 : i32
    return %c0_i32, %c0_i32_0 : i32, i32
  }
}

</mosaic_0001>

<llo_original>
// kernel: rnn_forward.1
$region0: #{rnn_forward.1}
  #allocation0 [shape = 'u32[]', space=smem, size = 0x4, offset = 0x4, fixed_abs, tag = 'smem constant byte address 0x4 - core index']
  #allocation1 [shape = 'u32[144,128]{1,0:T(1,128)}', space=vmem, size = 0x12000, scoped, tag = 'internal scratch']
  #allocation2 [shape = 'f32[64,128]{1,0:T(8,128)}', space=vmem, size = 0x8000, scoped, tag = 'scratch operand']
  #allocation3 [shape = 'f32[64,384]{1,0:T(8,128)}', space=vmem, size = 0x18000, scoped, tag = 'scratch operand']
  #allocation4 [shape = 'f32[1,1]{1,0:T(1,128)S(1)}', space=vmem, size = 0x200, scoped, tag = 'scoped memory for rnn_forward.1']
  %s0 = inlined_call_operand.vmem [shape: f32[64,128], index: 0, kind: input, shape index: {}]
  %s1 = inlined_call_operand.hbm [shape: f32[2,128,384], index: 1, kind: input, shape index: {}]
  %s2 = inlined_call_operand.hbm [shape: f32[2,128,384], index: 2, kind: input, shape index: {}]
  %s3 = inlined_call_operand.vmem [shape: f32[2,1,384], index: 3, kind: input, shape index: {}]
  %s4 = inlined_call_operand.vmem [shape: f32[2,1,128], index: 4, kind: input, shape index: {}]
  %s5 = inlined_call_operand.vmem [shape: f32[1,128], index: 5, kind: input, shape index: {}]
  %s6 = inlined_call_operand.<no memory space> [shape: f32[1,1], index: 6, kind: input, shape index: {}]
  %s7 = inlined_call_operand.vmem [shape: f32[1,64], index: 7, kind: output, shape index: {}]
  %s8 = sld [smem:[#allocation0]]
  $region46: #{rnn_forward.1} parent=0
    _
  %s10 = ssub.s32 1, %s8
  %s11 = scalar_select 0, %s10, %s8
  %v12 = vstv %s6
  %13 = vst [vmem:[#allocation4] sm:$0x1] %v12
  $region1: #{rnn_forward.1} parent=0
    #allocation5 [shape = 'u8[393216]{0}', space=vmem, size = 0x60000, scoped, tag = 'input window, operand 1, single buffered']
    #allocation6 [shape = 's32[1]{0}', space=sflag, size = 0x4, scoped, tag = 'scoped memory for rnn_forward.1']
    #allocation7 [shape = 'u8[393216]{0}', space=vmem, size = 0x60000, scoped, tag = 'input window, operand 2, single buffered']
    #allocation8 [shape = 's32[1]{0}', space=sflag, size = 0x4, scoped, tag = 'scoped memory for rnn_forward.1']
    %14 = vsyncpa [#allocation6], 0
    %15 = vsyncpa [#allocation8], 0
    // Predicated region
    $region2: #{rnn_forward.1} parent=1 // pred_check
      _
    $region3: #{rnn_forward.1} parent=1 // pred_check_branch
      %17 = sbr.rel (0) target = $region5
    $region4: #{rnn_forward.1} parent=1 // pred_region
      _
    $region5: #{rnn_forward.1} parent=1 // pred_fallthru
      _
    // Predicated region
    $region6: #{rnn_forward.1} parent=1 // pred_check
      _
    $region7: #{rnn_forward.1} parent=1 // pred_check_branch
      %19 = sbr.rel (0) target = $region9
    $region8: #{rnn_forward.1} parent=1 // pred_region
      %s21 = ssub.s32 12288, 12288
      %22 = vsyncadd [#allocation6], %s21
      %s23 = sshll.u32 [#allocation5], 4
      %s24 = int_to_ptr.vmem [resolvable:$true] %s23
      %29 = dma.hbm_to_vmem [thread:$0]  %s1, 12288, %s24, [#allocation6], 384, 384, 24
    $region9: #{rnn_forward.1} parent=1 // pred_fallthru
      _
    // Predicated region
    $region10: #{rnn_forward.1} parent=1 // pred_check
      _
    $region11: #{rnn_forward.1} parent=1 // pred_check_branch
      %31 = sbr.rel (0) target = $region13
    $region12: #{rnn_forward.1} parent=1 // pred_region
      %s33 = ssub.s32 12288, 12288
      %34 = vsyncadd [#allocation8], %s33
      %s35 = sshll.u32 [#allocation7], 4
      %s36 = int_to_ptr.vmem [resolvable:$true] %s35
      %41 = dma.hbm_to_vmem [thread:$0]  %s2, 12288, %s36, [#allocation8], 384, 384, 24
    $region13: #{rnn_forward.1} parent=1 // pred_fallthru
      _
    // Predicated region
    $region14: #{rnn_forward.1} parent=1 // pred_check
      _
    $region15: #{rnn_forward.1} parent=1 // pred_check_branch
      %43 = sbr.rel (0) target = $region17
    $region16: #{rnn_forward.1} parent=1 // pred_region
      _
    $region17: #{rnn_forward.1} parent=1 // pred_fallthru
      _
    // Predicated region
    $region18: #{rnn_forward.1} parent=1 // pred_check
      _
    $region19: #{rnn_forward.1} parent=1 // pred_check_branch
      %45 = sbr.rel (0) target = $region21
    $region20: #{rnn_forward.1} parent=1 // pred_region
      _
    $region21: #{rnn_forward.1} parent=1 // pred_fallthru
      _
    // Predicated region
    $region22: #{rnn_forward.1} parent=1 // pred_check
      _
    $region23: #{rnn_forward.1} parent=1 // pred_check_branch
      %47 = sbr.rel (0) target = $region25
    $region24: #{rnn_forward.1} parent=1 // pred_region
      _
    $region25: #{rnn_forward.1} parent=1 // pred_fallthru
      _
    // Predicated region
    $region26: #{rnn_forward.1} parent=1 // pred_check
      _
    $region27: #{rnn_forward.1} parent=1 // pred_check_branch
      %49 = sbr.rel (0) target = $region29
    $region28: #{rnn_forward.1} parent=1 // pred_region
      _
    $region29: #{rnn_forward.1} parent=1 // pred_fallthru
      _
    // Predicated region
    $region30: #{rnn_forward.1} parent=1 // pred_check
      _
    $region31: #{rnn_forward.1} parent=1 // pred_check_branch
      %51 = sbr.rel (0) target = $region33
    $region32: #{rnn_forward.1} parent=1 // pred_region
      %52 = dma.done [#allocation6], 12288
    $region33: #{rnn_forward.1} parent=1 // pred_fallthru
      _
    // Predicated region
    $region34: #{rnn_forward.1} parent=1 // pred_check
      _
    $region35: #{rnn_forward.1} parent=1 // pred_check_branch
      %54 = sbr.rel (0) target = $region37
    $region36: #{rnn_forward.1} parent=1 // pred_region
      %55 = dma.done [#allocation8], 12288
    $region37: #{rnn_forward.1} parent=1 // pred_fallthru
      _
    %v56 = vld [vmem:[%s0] sm:$0xff]
    %v57 = vld [vmem:[%s0 + $0x8] sm:$0xff]
    %v58 = vld [vmem:[%s0 + $0x10] sm:$0xff]
    %v59 = vld [vmem:[%s0 + $0x18] sm:$0xff]
    %v60 = vld [vmem:[%s0 + $0x20] sm:$0xff]
    %v61 = vld [vmem:[%s0 + $0x28] sm:$0xff]
    %v62 = vld [vmem:[%s0 + $0x30] sm:$0xff]
    %v63 = vld [vmem:[%s0 + $0x38] sm:$0xff]
    %v64 = vld [vmem:[#allocation5] sm:$0xff]
    %v65 = vld [vmem:[#allocation5 + $0x8] sm:$0xff]
    %v66 = vld [vmem:[#allocation5 + $0x10] sm:$0xff]
    %v67 = vld [vmem:[#allocation5 + $0x18] sm:$0xff]
    %v68 = vld [vmem:[#allocation5 + $0x20] sm:$0xff]
    %v69 = vld [vmem:[#allocation5 + $0x28] sm:$0xff]
    %v70 = vld [vmem:[#allocation5 + $0x30] sm:$0xff]
    %v71 = vld [vmem:[#allocation5 + $0x38] sm:$0xff]
    %v72 = vld [vmem:[#allocation5 + $0x40] sm:$0xff]
    %v73 = vld [vmem:[#allocation5 + $0x48] sm:$0xff]
    %v74 = vld [vmem:[#allocation5 + $0x50] sm:$0xff]
    %v75 = vld [vmem:[#allocation5 + $0x58] sm:$0xff]
    %v76 = vld [vmem:[#allocation5 + $0x60] sm:$0xff]
    %v77 = vld [vmem:[#allocation5 + $0x68] sm:$0xff]
    %v78 = vld [vmem:[#allocation5 + $0x70] sm:$0xff]
    %v79 = vld [vmem:[#allocation5 + $0x78] sm:$0xff]
    %v80 = vld [vmem:[#allocation5 + $0x80] sm:$0xff]
    %v81 = vld [vmem:[#allocation5 + $0x88] sm:$0xff]
    %v82 = vld [vmem:[#allocation5 + $0x90] sm:$0xff]
    %v83 = vld [vmem:[#allocation5 + $0x98] sm:$0xff]
    %v84 = vld [vmem:[#allocation5 + $0xa0] sm:$0xff]
    %v85 = vld [vmem:[#allocation5 + $0xa8] sm:$0xff]
    %v86 = vld [vmem:[#allocation5 + $0xb0] sm:$0xff]
    %v87 = vld [vmem:[#allocation5 + $0xb8] sm:$0xff]
    %v88 = vld [vmem:[#allocation5 + $0xc0] sm:$0xff]
    %v89 = vld [vmem:[#allocation5 + $0xc8] sm:$0xff]
    %v90 = vld [vmem:[#allocation5 + $0xd0] sm:$0xff]
    %v91 = vld [vmem:[#allocation5 + $0xd8] sm:$0xff]
    %v92 = vld [vmem:[#allocation5 + $0xe0] sm:$0xff]
    %v93 = vld [vmem:[#allocation5 + $0xe8] sm:$0xff]
    %v94 = vld [vmem:[#allocation5 + $0xf0] sm:$0xff]
    %v95 = vld [vmem:[#allocation5 + $0xf8] sm:$0xff]
    %v96 = vld [vmem:[#allocation5 + $0x100] sm:$0xff]
    %v97 = vld [vmem:[#allocation5 + $0x108] sm:$0xff]
    %v98 = vld [vmem:[#allocation5 + $0x110] sm:$0xff]
    %v99 = vld [vmem:[#allocation5 + $0x118] sm:$0xff]
    %v100 = vld [vmem:[#allocation5 + $0x120] sm:$0xff]
    %v101 = vld [vmem:[#allocation5 + $0x128] sm:$0xff]
    %v102 = vld [vmem:[#allocation5 + $0x130] sm:$0xff]
    %v103 = vld [vmem:[#allocation5 + $0x138] sm:$0xff]
    %v104 = vld [vmem:[#allocation5 + $0x140] sm:$0xff]
    %v105 = vld [vmem:[#allocation5 + $0x148] sm:$0xff]
    %v106 = vld [vmem:[#allocation5 + $0x150] sm:$0xff]
    %v107 = vld [vmem:[#allocation5 + $0x158] sm:$0xff]
    %v108 = vld [vmem:[#allocation5 + $0x160] sm:$0xff]
    %v109 = vld [vmem:[#allocation5 + $0x168] sm:$0xff]
    %v110 = vld [vmem:[#allocation5 + $0x170] sm:$0xff]
    %v111 = vld [vmem:[#allocation5 + $0x178] sm:$0xff]
    %v112 = vld [vmem:[#allocation7] sm:$0xff]
    %v113 = vld [vmem:[#allocation7 + $0x8] sm:$0xff]
    %v114 = vld [vmem:[#allocation7 + $0x10] sm:$0xff]
    %v115 = vld [vmem:[#allocation7 + $0x18] sm:$0xff]
    %v116 = vld [vmem:[#allocation7 + $0x20] sm:$0xff]
    %v117 = vld [vmem:[#allocation7 + $0x28] sm:$0xff]
    %v118 = vld [vmem:[#allocation7 + $0x30] sm:$0xff]
    %v119 = vld [vmem:[#allocation7 + $0x38] sm:$0xff]
    %v120 = vld [vmem:[#allocation7 + $0x40] sm:$0xff]
    %v121 = vld [vmem:[#allocation7 + $0x48] sm:$0xff]
    %v122 = vld [vmem:[#allocation7 + $0x50] sm:$0xff]
    %v123 = vld [vmem:[#allocation7 + $0x58] sm:$0xff]
    %v124 = vld [vmem:[#allocation7 + $0x60] sm:$0xff]
    %v125 = vld [vmem:[#allocation7 + $0x68] sm:$0xff]
    %v126 = vld [vmem:[#allocation7 + $0x70] sm:$0xff]
    %v127 = vld [vmem:[#allocation7 + $0x78] sm:$0xff]
    %v128 = vld [vmem:[#allocation7 + $0x80] sm:$0xff]
    %v129 = vld [vmem:[#allocation7 + $0x88] sm:$0xff]
    %v130 = vld [vmem:[#allocation7 + $0x90] sm:$0xff]
    %v131 = vld [vmem:[#allocation7 + $0x98] sm:$0xff]
    %v132 = vld [vmem:[#allocation7 + $0xa0] sm:$0xff]
    %v133 = vld [vmem:[#allocation7 + $0xa8] sm:$0xff]
    %v134 = vld [vmem:[#allocation7 + $0xb0] sm:$0xff]
    %v135 = vld [vmem:[#allocation7 + $0xb8] sm:$0xff]
    %v136 = vld [vmem:[#allocation7 + $0xc0] sm:$0xff]
    %v137 = vld [vmem:[#allocation7 + $0xc8] sm:$0xff]
    %v138 = vld [vmem:[#allocation7 + $0xd0] sm:$0xff]
    %v139 = vld [vmem:[#allocation7 + $0xd8] sm:$0xff]
    %v140 = vld [vmem:[#allocation7 + $0xe0] sm:$0xff]
    %v141 = vld [vmem:[#allocation7 + $0xe8] sm:$0xff]
    %v142 = vld [vmem:[#allocation7 + $0xf0] sm:$0xff]
    %v143 = vld [vmem:[#allocation7 + $0xf8] sm:$0xff]
    %v144 = vld [vmem:[#allocation7 + $0x100] sm:$0xff]
    %v145 = vld [vmem:[#allocation7 + $0x108] sm:$0xff]
    %v146 = vld [vmem:[#allocation7 + $0x110] sm:$0xff]
    %v147 = vld [vmem:[#allocation7 + $0x118] sm:$0xff]
    %v148 = vld [vmem:[#allocation7 + $0x120] sm:$0xff]
    %v149 = vld [vmem:[#allocation7 + $0x128] sm:$0xff]
    %v150 = vld [vmem:[#allocation7 + $0x130] sm:$0xff]
    %v151 = vld [vmem:[#allocation7 + $0x138] sm:$0xff]
    %v152 = vld [vmem:[#allocation7 + $0x140] sm:$0xff]
    %v153 = vld [vmem:[#allocation7 + $0x148] sm:$0xff]
    %v154 = vld [vmem:[#allocation7 + $0x150] sm:$0xff]
    %v155 = vld [vmem:[#allocation7 + $0x158] sm:$0xff]
    %v156 = vld [vmem:[#allocation7 + $0x160] sm:$0xff]
    %v157 = vld [vmem:[#allocation7 + $0x168] sm:$0xff]
    %v158 = vld [vmem:[#allocation7 + $0x170] sm:$0xff]
    %v159 = vld [vmem:[#allocation7 + $0x178] sm:$0xff]
    %v160 = vld [vmem:[%s3] sm:$0x7]
    %v161 = vld [vmem:[%s4] sm:$0x1]
    %v163 = vlaneseq
    %v164 = vshrl.u32 %v163, 7
    %v165 = vsub.s32 0, %v164
    %v166 = vrot.slane %v160, %v165
    %v167 = vlaneseq
    %v168 = vshrl.u32 %v167, 7
    %v169 = vsub.s32 1, %v168
    %v170 = vrot.slane %v160, %v169
    %v171 = vlaneseq
    %v172 = vshrl.u32 %v171, 7
    %v173 = vsub.s32 2, %v172
    %v174 = vrot.slane %v160, %v173
    %178 = vmatprep.subr.mxu0 %v65
    %179 = vmatpush1.msra.mxu0 %v64
    %180 = vmatprep.subr.mxu0 %v68
    %181 = vmatpush1.msra.mxu0 %v67
    %182 = vmatprep.subr.mxu0 %v71
    %183 = vmatpush1.msra.mxu0 %v70
    %184 = vmatprep.subr.mxu0 %v74
    %185 = vmatpush1.msra.mxu0 %v73
    %186 = vmatprep.subr.mxu0 %v77
    %187 = vmatpush1.msra.mxu0 %v76
    %188 = vmatprep.subr.mxu0 %v80
    %189 = vmatpush1.msra.mxu0 %v79
    %190 = vmatprep.subr.mxu0 %v83
    %191 = vmatpush1.msra.mxu0 %v82
    %192 = vmatprep.subr.mxu0 %v86
    %193 = vmatpush1.msra.mxu0 %v85
    %194 = vmatprep.subr.mxu0 %v89
    %195 = vmatpush1.msra.mxu0 %v88
    %196 = vmatprep.subr.mxu0 %v92
    %197 = vmatpush1.msra.mxu0 %v91
    %198 = vmatprep.subr.mxu0 %v95
    %199 = vmatpush1.msra.mxu0 %v94
    %200 = vmatprep.subr.mxu0 %v98
    %201 = vmatpush1.msra.mxu0 %v97
    %202 = vmatprep.subr.mxu0 %v101
    %203 = vmatpush1.msra.mxu0 %v100
    %204 = vmatprep.subr.mxu0 %v104
    %205 = vmatpush1.msra.mxu0 %v103
    %206 = vmatprep.subr.mxu0 %v107
    %207 = vmatpush1.msra.mxu0 %v106
    %208 = vmatprep.subr.mxu0 %v110
    %209 = vmatpush1.msra.mxu0 %v109
    %210 = vmatprep.subr.mxu0 0.0
    %211 = vmatpush1.msra.mxu0 0.0
    %212 = vmatprep.subr.mxu0 0.0
    %213 = vmatpush1.msra.mxu0 0.0
    %214 = vmatprep.subr.mxu0 0.0
    %215 = vmatpush1.msra.mxu0 0.0
    %216 = vmatprep.subr.mxu0 0.0
    %217 = vmatpush1.msra.mxu0 0.0
    %218 = vmatprep.subr.mxu0 0.0
    %219 = vmatpush1.msra.mxu0 0.0
    %220 = vmatprep.subr.mxu0 0.0
    %221 = vmatpush1.msra.mxu0 0.0
    %222 = vmatprep.subr.mxu0 0.0
    %223 = vmatpush1.msra.mxu0 0.0
    %224 = vmatprep.subr.mxu0 0.0
    %225 = vmatpush1.msra.mxu0 0.0
    %226 = vmatprep.subr.mxu0 0.0
    %227 = vmatpush1.msra.mxu0 0.0
    %228 = vmatprep.subr.mxu0 0.0
    %229 = vmatpush1.msra.mxu0 0.0
    %230 = vmatprep.subr.mxu0 0.0
    %231 = vmatpush1.msra.mxu0 0.0
    %232 = vmatprep.subr.mxu0 0.0
    %233 = vmatpush1.msra.mxu0 0.0
    %234 = vmatprep.subr.mxu0 0.0
    %235 = vmatpush1.msra.mxu0 0.0
    %236 = vmatprep.subr.mxu0 0.0
    %237 = vmatpush1.msra.mxu0 0.0
    %238 = vmatprep.subr.mxu0 0.0
    %239 = vmatpush1.msra.mxu0 0.0
    %240 = vmatprep.subr.mxu0 0.0
    %241 = vmatpush1.msra.mxu0 0.0
    %242 = vmatprep.mubr.f32.mxu0 0.0
    %243 = vmatmul.mubr.f32.gmra.mrb[0].mxu0 %v56
    %v244 = vpop.f32.mrb[0].mxu0
    %v245 = vadd.f32 %v166, %v244
    %v246 = vpop.f32.mrb[0].mxu0
    %v247 = vadd.f32 %v170, %v246
    %248 = vmatprep.mubr.f32.mxu0 0.0
    %249 = vmatmul.mubr.f32.gmra.mrb[0].mxu0 %v57
    %v250 = vpop.f32.mrb[0].mxu0
    %v251 = vadd.f32 %v166, %v250
    %v252 = vpop.f32.mrb[0].mxu0
    %v253 = vadd.f32 %v170, %v252
    %254 = vmatprep.mubr.f32.mxu0 0.0
    %255 = vmatmul.mubr.f32.gmra.mrb[0].mxu0 %v58
    %v256 = vpop.f32.mrb[0].mxu0
    %v257 = vadd.f32 %v166, %v256
    %v258 = vpop.f32.mrb[0].mxu0
    %v259 = vadd.f32 %v170, %v258
    %260 = vmatprep.mubr.f32.mxu0 0.0
    %261 = vmatmul.mubr.f32.gmra.mrb[0].mxu0 %v59
    %v262 = vpop.f32.mrb[0].mxu0
    %v263 = vadd.f32 %v166, %v262
    %v264 = vpop.f32.mrb[0].mxu0
    %v265 = vadd.f32 %v170, %v264
    %266 = vmatprep.mubr.f32.mxu0 0.0
    %267 = vmatmul.mubr.f32.gmra.mrb[0].mxu0 %v60
    %v268 = vpop.f32.mrb[0].mxu0
    %v269 = vadd.f32 %v166, %v268
    %v270 = vpop.f32.mrb[0].mxu0
    %v271 = vadd.f32 %v170, %v270
    %272 = vmatprep.mubr.f32.mxu0 0.0
    %273 = vmatmul.mubr.f32.gmra.mrb[0].mxu0 %v61
    %v274 = vpop.f32.mrb[0].mxu0
    %v275 = vadd.f32 %v166, %v274
    %v276 = vpop.f32.mrb[0].mxu0
    %v277 = vadd.f32 %v170, %v276
    %278 = vmatprep.mubr.f32.mxu0 0.0
    %279 = vmatmul.mubr.f32.gmra.mrb[0].mxu0 %v62
    %v280 = vpop.f32.mrb[0].mxu0
    %v281 = vadd.f32 %v166, %v280
    %v282 = vpop.f32.mrb[0].mxu0
    %v283 = vadd.f32 %v170, %v282
    %284 = vmatprep.mubr.f32.mxu0 0.0
    %285 = vmatmul.mubr.f32.gmra.mrb[0].mxu0 %v63
    %v286 = vpop.f32.mrb[0].mxu0
    %v287 = vadd.f32 %v166, %v286
    %v288 = vpop.f32.mrb[0].mxu0
    %v289 = vadd.f32 %v170, %v288
    %290 = vdwg.mxu0
    %291 = vmatprep.subr.mxu0 0.0
    %292 = vmatpush1.msra.mxu0 %v66
    %293 = vmatprep.subr.mxu0 0.0
    %294 = vmatpush1.msra.mxu0 %v69
    %295 = vmatprep.subr.mxu0 0.0
    %296 = vmatpush1.msra.mxu0 %v72
    %297 = vmatprep.subr.mxu0 0.0
    %298 = vmatpush1.msra.mxu0 %v75
    %299 = vmatprep.subr.mxu0 0.0
    %300 = vmatpush1.msra.mxu0 %v78
    %301 = vmatprep.subr.mxu0 0.0
    %302 = vmatpush1.msra.mxu0 %v81
    %303 = vmatprep.subr.mxu0 0.0
    %304 = vmatpush1.msra.mxu0 %v84
    %305 = vmatprep.subr.mxu0 0.0
    %306 = vmatpush1.msra.mxu0 %v87
    %307 = vmatprep.subr.mxu0 0.0
    %308 = vmatpush1.msra.mxu0 %v90
    %309 = vmatprep.subr.mxu0 0.0
    %310 = vmatpush1.msra.mxu0 %v93
    %311 = vmatprep.subr.mxu0 0.0
    %312 = vmatpush1.msra.mxu0 %v96
    %313 = vmatprep.subr.mxu0 0.0
    %314 = vmatpush1.msra.mxu0 %v99
    %315 = vmatprep.subr.mxu0 0.0
    %316 = vmatpush1.msra.mxu0 %v102
    %317 = vmatprep.subr.mxu0 0.0
    %318 = vmatpush1.msra.mxu0 %v105
    %319 = vmatprep.subr.mxu0 0.0
    %320 = vmatpush1.msra.mxu0 %v108
    %321 = vmatprep.subr.mxu0 0.0
    %322 = vmatpush1.msra.mxu0 %v111
    %323 = vmatprep.subr.mxu0 0.0
    %324 = vmatpush1.msra.mxu0 0.0
    %325 = vmatprep.subr.mxu0 0.0
    %326 = vmatpush1.msra.mxu0 0.0
    %327 = vmatprep.subr.mxu0 0.0
    %328 = vmatpush1.msra.mxu0 0.0
    %329 = vmatprep.subr.mxu0 0.0
    %330 = vmatpush1.msra.mxu0 0.0
    %331 = vmatprep.subr.mxu0 0.0
    %332 = vmatpush1.msra.mxu0 0.0
    %333 = vmatprep.subr.mxu0 0.0
    %334 = vmatpush1.msra.mxu0 0.0
    %335 = vmatprep.subr.mxu0 0.0
    %336 = vmatpush1.msra.mxu0 0.0
    %337 = vmatprep.subr.mxu0 0.0
    %338 = vmatpush1.msra.mxu0 0.0
    %339 = vmatprep.subr.mxu0 0.0
    %340 = vmatpush1.msra.mxu0 0.0
    %341 = vmatprep.subr.mxu0 0.0
    %342 = vmatpush1.msra.mxu0 0.0
    %343 = vmatprep.subr.mxu0 0.0
    %344 = vmatpush1.msra.mxu0 0.0
    %345 = vmatprep.subr.mxu0 0.0
    %346 = vmatpush1.msra.mxu0 0.0
    %347 = vmatprep.subr.mxu0 0.0
    %348 = vmatpush1.msra.mxu0 0.0
    %349 = vmatprep.subr.mxu0 0.0
    %350 = vmatpush1.msra.mxu0 0.0
    %351 = vmatprep.subr.mxu0 0.0
    %352 = vmatpush1.msra.mxu0 0.0
    %353 = vmatprep.subr.mxu0 0.0
    %354 = vmatpush1.msra.mxu0 0.0
    %355 = vmatprep.mubr.f32.mxu0 0.0
    %356 = vmatmul.mubr.f32.gmra.mrb[0].mxu0 %v56
    %v357 = vpop.f32.mrb[0].mxu0
    %v358 = vadd.f32 %v174, %v357
    %v359 = vpop.f32.mrb[0].mxu0
    %360 = vmatprep.mubr.f32.mxu0 0.0
    %361 = vmatmul.mubr.f32.gmra.mrb[0].mxu0 %v57
    %v362 = vpop.f32.mrb[0].mxu0
    %v363 = vadd.f32 %v174, %v362
    %v364 = vpop.f32.mrb[0].mxu0
    %365 = vmatprep.mubr.f32.mxu0 0.0
    %366 = vmatmul.mubr.f32.gmra.mrb[0].mxu0 %v58
    %v367 = vpop.f32.mrb[0].mxu0
    %v368 = vadd.f32 %v174, %v367
    %v369 = vpop.f32.mrb[0].mxu0
    %370 = vmatprep.mubr.f32.mxu0 0.0
    %371 = vmatmul.mubr.f32.gmra.mrb[0].mxu0 %v59
    %v372 = vpop.f32.mrb[0].mxu0
    %v373 = vadd.f32 %v174, %v372
    %v374 = vpop.f32.mrb[0].mxu0
    %375 = vmatprep.mubr.f32.mxu0 0.0
    %376 = vmatmul.mubr.f32.gmra.mrb[0].mxu0 %v60
    %v377 = vpop.f32.mrb[0].mxu0
    %v378 = vadd.f32 %v174, %v377
    %v379 = vpop.f32.mrb[0].mxu0
    %380 = vmatprep.mubr.f32.mxu0 0.0
    %381 = vmatmul.mubr.f32.gmra.mrb[0].mxu0 %v61
    %v382 = vpop.f32.mrb[0].mxu0
    %v383 = vadd.f32 %v174, %v382
    %v384 = vpop.f32.mrb[0].mxu0
    %385 = vmatprep.mubr.f32.mxu0 0.0
    %386 = vmatmul.mubr.f32.gmra.mrb[0].mxu0 %v62
    %v387 = vpop.f32.mrb[0].mxu0
    %v388 = vadd.f32 %v174, %v387
    %v389 = vpop.f32.mrb[0].mxu0
    %390 = vmatprep.mubr.f32.mxu0 0.0
    %391 = vmatmul.mubr.f32.gmra.mrb[0].mxu0 %v63
    %v392 = vpop.f32.mrb[0].mxu0
    %v393 = vadd.f32 %v174, %v392
    %v394 = vpop.f32.mrb[0].mxu0
    %395 = vdwg.mxu0
    %396 = vst [vmem:[#allocation3] sm:$0xff] %v245
    %397 = vst [vmem:[#allocation3 + $0x8] sm:$0xff] %v247
    %398 = vst [vmem:[#allocation3 + $0x10] sm:$0xff] %v358
    %399 = vst [vmem:[#allocation3 + $0x18] sm:$0xff] %v251
    %400 = vst [vmem:[#allocation3 + $0x20] sm:$0xff] %v253
    %401 = vst [vmem:[#allocation3 + $0x28] sm:$0xff] %v363
    %402 = vst [vmem:[#allocation3 + $0x30] sm:$0xff] %v257
    %403 = vst [vmem:[#allocation3 + $0x38] sm:$0xff] %v259
    %404 = vst [vmem:[#allocation3 + $0x40] sm:$0xff] %v368
    %405 = vst [vmem:[#allocation3 + $0x48] sm:$0xff] %v263
    %406 = vst [vmem:[#allocation3 + $0x50] sm:$0xff] %v265
    %407 = vst [vmem:[#allocation3 + $0x58] sm:$0xff] %v373
    %408 = vst [vmem:[#allocation3 + $0x60] sm:$0xff] %v269
    %409 = vst [vmem:[#allocation3 + $0x68] sm:$0xff] %v271
    %410 = vst [vmem:[#allocation3 + $0x70] sm:$0xff] %v378
    %411 = vst [vmem:[#allocation3 + $0x78] sm:$0xff] %v275
    %412 = vst [vmem:[#allocation3 + $0x80] sm:$0xff] %v277
    %413 = vst [vmem:[#allocation3 + $0x88] sm:$0xff] %v383
    %414 = vst [vmem:[#allocation3 + $0x90] sm:$0xff] %v281
    %415 = vst [vmem:[#allocation3 + $0x98] sm:$0xff] %v283
    %416 = vst [vmem:[#allocation3 + $0xa0] sm:$0xff] %v388
    %417 = vst [vmem:[#allocation3 + $0xa8] sm:$0xff] %v287
    %418 = vst [vmem:[#allocation3 + $0xb0] sm:$0xff] %v289
    %419 = vst [vmem:[#allocation3 + $0xb8] sm:$0xff] %v393
    %v420 = vld [vmem:[#allocation3] sm:$0xff]
    %v421 = vld [vmem:[#allocation3 + $0x8] sm:$0xff]
    %v422 = vld [vmem:[#allocation3 + $0x10] sm:$0xff]
    %423 = vmatprep.subr.mxu0 %v113
    %424 = vmatpush1.msra.mxu0 %v112
    %425 = vmatprep.subr.mxu0 %v116
    %426 = vmatpush1.msra.mxu0 %v115
    %427 = vmatprep.subr.mxu0 %v119
    %428 = vmatpush1.msra.mxu0 %v118
    %429 = vmatprep.subr.mxu0 %v122
    %430 = vmatpush1.msra.mxu0 %v121
    %431 = vmatprep.subr.mxu0 %v125
    %432 = vmatpush1.msra.mxu0 %v124
    %433 = vmatprep.subr.mxu0 %v128
    %434 = vmatpush1.msra.mxu0 %v127
    %435 = vmatprep.subr.mxu0 %v131
    %436 = vmatpush1.msra.mxu0 %v130
    %437 = vmatprep.subr.mxu0 %v134
    %438 = vmatpush1.msra.mxu0 %v133
    %439 = vmatprep.subr.mxu0 %v137
    %440 = vmatpush1.msra.mxu0 %v136
    %441 = vmatprep.subr.mxu0 %v140
    %442 = vmatpush1.msra.mxu0 %v139
    %443 = vmatprep.subr.mxu0 %v143
    %444 = vmatpush1.msra.mxu0 %v142
    %445 = vmatprep.subr.mxu0 %v146
    %446 = vmatpush1.msra.mxu0 %v145
    %447 = vmatprep.subr.mxu0 %v149
    %448 = vmatpush1.msra.mxu0 %v148
    %449 = vmatprep.subr.mxu0 %v152
    %450 = vmatpush1.msra.mxu0 %v151
    %451 = vmatprep.subr.mxu0 %v155
    %452 = vmatpush1.msra.mxu0 %v154
    %453 = vmatprep.subr.mxu0 %v158
    %454 = vmatpush1.msra.mxu0 %v157
    %455 = vmatprep.subr.mxu0 0.0
    %456 = vmatpush1.msra.mxu0 0.0
    %457 = vmatprep.subr.mxu0 0.0
    %458 = vmatpush1.msra.mxu0 0.0
    %459 = vmatprep.subr.mxu0 0.0
    %460 = vmatpush1.msra.mxu0 0.0
    %461 = vmatprep.subr.mxu0 0.0
    %462 = vmatpush1.msra.mxu0 0.0
    %463 = vmatprep.subr.mxu0 0.0
    %464 = vmatpush1.msra.mxu0 0.0
    %465 = vmatprep.subr.mxu0 0.0
    %466 = vmatpush1.msra.mxu0 0.0
    %467 = vmatprep.subr.mxu0 0.0
    %468 = vmatpush1.msra.mxu0 0.0
    %469 = vmatprep.subr.mxu0 0.0
    %470 = vmatpush1.msra.mxu0 0.0
    %471 = vmatprep.subr.mxu0 0.0
    %472 = vmatpush1.msra.mxu0 0.0
    %473 = vmatprep.subr.mxu0 0.0
    %474 = vmatpush1.msra.mxu0 0.0
    %475 = vmatprep.subr.mxu0 0.0
    %476 = vmatpush1.msra.mxu0 0.0
    %477 = vmatprep.subr.mxu0 0.0
    %478 = vmatpush1.msra.mxu0 0.0
    %479 = vmatprep.subr.mxu0 0.0
    %480 = vmatpush1.msra.mxu0 0.0
    %481 = vmatprep.subr.mxu0 0.0
    %482 = vmatpush1.msra.mxu0 0.0
    %483 = vmatprep.subr.mxu0 0.0
    %484 = vmatpush1.msra.mxu0 0.0
    %485 = vmatprep.subr.mxu0 0.0
    %486 = vmatpush1.msra.mxu0 0.0
    %487 = vmatprep.mubr.f32.mxu0 0.0
    %488 = vmatmul.mubr.f32.gmra.mrb[0].mxu0 0.0
    %v489 = vpop.f32.mrb[0].mxu0
    %v490 = vadd.f32 0.0, %v489
    %v491 = vpop.f32.mrb[0].mxu0
    %v492 = vadd.f32 0.0, %v491
    %493 = vdwg.mxu0
    %494 = vmatprep.subr.mxu0 0.0
    %495 = vmatpush1.msra.mxu0 %v114
    %496 = vmatprep.subr.mxu0 0.0
    %497 = vmatpush1.msra.mxu0 %v117
    %498 = vmatprep.subr.mxu0 0.0
    %499 = vmatpush1.msra.mxu0 %v120
    %500 = vmatprep.subr.mxu0 0.0
    %501 = vmatpush1.msra.mxu0 %v123
    %502 = vmatprep.subr.mxu0 0.0
    %503 = vmatpush1.msra.mxu0 %v126
    %504 = vmatprep.subr.mxu0 0.0
    %505 = vmatpush1.msra.mxu0 %v129
    %506 = vmatprep.subr.mxu0 0.0
    %507 = vmatpush1.msra.mxu0 %v132
    %508 = vmatprep.subr.mxu0 0.0
    %509 = vmatpush1.msra.mxu0 %v135
    %510 = vmatprep.subr.mxu0 0.0
    %511 = vmatpush1.msra.mxu0 %v138
    %512 = vmatprep.subr.mxu0 0.0
    %513 = vmatpush1.msra.mxu0 %v141
    %514 = vmatprep.subr.mxu0 0.0
    %515 = vmatpush1.msra.mxu0 %v144
    %516 = vmatprep.subr.mxu0 0.0
    %517 = vmatpush1.msra.mxu0 %v147
    %518 = vmatprep.subr.mxu0 0.0
    %519 = vmatpush1.msra.mxu0 %v150
    %520 = vmatprep.subr.mxu0 0.0
    %521 = vmatpush1.msra.mxu0 %v153
    %522 = vmatprep.subr.mxu0 0.0
    %523 = vmatpush1.msra.mxu0 %v156
    %524 = vmatprep.subr.mxu0 0.0
    %525 = vmatpush1.msra.mxu0 %v159
    %526 = vmatprep.subr.mxu0 0.0
    %527 = vmatpush1.msra.mxu0 0.0
    %528 = vmatprep.subr.mxu0 0.0
    %529 = vmatpush1.msra.mxu0 0.0
    %530 = vmatprep.subr.mxu0 0.0
    %531 = vmatpush1.msra.mxu0 0.0
    %532 = vmatprep.subr.mxu0 0.0
    %533 = vmatpush1.msra.mxu0 0.0
    %534 = vmatprep.subr.mxu0 0.0
    %535 = vmatpush1.msra.mxu0 0.0
    %536 = vmatprep.subr.mxu0 0.0
    %537 = vmatpush1.msra.mxu0 0.0
    %538 = vmatprep.subr.mxu0 0.0
    %539 = vmatpush1.msra.mxu0 0.0
    %540 = vmatprep.subr.mxu0 0.0
    %541 = vmatpush1.msra.mxu0 0.0
    %542 = vmatprep.subr.mxu0 0.0
    %543 = vmatpush1.msra.mxu0 0.0
    %544 = vmatprep.subr.mxu0 0.0
    %545 = vmatpush1.msra.mxu0 0.0
    %546 = vmatprep.subr.mxu0 0.0
    %547 = vmatpush1.msra.mxu0 0.0
    %548 = vmatprep.subr.mxu0 0.0
    %549 = vmatpush1.msra.mxu0 0.0
    %550 = vmatprep.subr.mxu0 0.0
    %551 = vmatpush1.msra.mxu0 0.0
    %552 = vmatprep.subr.mxu0 0.0
    %553 = vmatpush1.msra.mxu0 0.0
    %554 = vmatprep.subr.mxu0 0.0
    %555 = vmatpush1.msra.mxu0 0.0
    %556 = vmatprep.subr.mxu0 0.0
    %557 = vmatpush1.msra.mxu0 0.0
    %558 = vmatprep.mubr.f32.mxu0 0.0
    %559 = vmatmul.mubr.f32.gmra.mrb[0].mxu0 0.0
    %v560 = vpop.f32.mrb[0].mxu0
    %v561 = vadd.f32 0.0, %v560
    %v562 = vpop.f32.mrb[0].mxu0
    %563 = vdwg.mxu0
    %v564 = vadd.f32 %v420, %v490
    %v565 = vxor.u32 %v564, 2147483648
    %v566 = vmul.f32 %v565, 1.442695
    %v567 = vpow.pop %v566
    %v568 = vadd.f32 %v567, 1.0
    %v569 = vrcp.pop %v568
    %v570 = vmul.f32 1.0, %v569
    %v571 = vadd.f32 %v421, %v492
    %v572 = vxor.u32 %v571, 2147483648
    %v573 = vmul.f32 %v572, 1.442695
    %v574 = vpow.pop %v573
    %v575 = vadd.f32 %v574, 1.0
    %v576 = vrcp.pop %v575
    %v577 = vmul.f32 1.0, %v576
    %v579 = vlaneseq
    %v580 = vshrl.u32 %v579, 7
    %v581 = vsub.s32 0, %v580
    %v582 = vrot.slane %v161, %v581
    %v584 = vadd.f32 %v561, %v582
    %v585 = vmul.f32 %v570, %v584
    %v586 = vadd.f32 %v422, %v585
    %v587 = vtanh.pop %v586
    %v588 = vsub.f32 1.0, %v577
    %v589 = vmul.f32 %v588, %v587
    %v590 = vmul.f32 %v577, 0.0
    %v591 = vadd.f32 %v589, %v590
    %592 = vst [vmem:[#allocation2] sm:$0xff] %v591
    %v593 = vld [vmem:[#allocation3 + $0x18] sm:$0xff]
    %v594 = vld [vmem:[#allocation3 + $0x20] sm:$0xff]
    %v595 = vld [vmem:[#allocation3 + $0x28] sm:$0xff]
    %596 = vmatprep.subr.mxu0 %v113
    %597 = vmatpush1.msra.mxu0 %v112
    %598 = vmatprep.subr.mxu0 %v116
    %599 = vmatpush1.msra.mxu0 %v115
    %600 = vmatprep.subr.mxu0 %v119
    %601 = vmatpush1.msra.mxu0 %v118
    %602 = vmatprep.subr.mxu0 %v122
    %603 = vmatpush1.msra.mxu0 %v121
    %604 = vmatprep.subr.mxu0 %v125
    %605 = vmatpush1.msra.mxu0 %v124
    %606 = vmatprep.subr.mxu0 %v128
    %607 = vmatpush1.msra.mxu0 %v127
    %608 = vmatprep.subr.mxu0 %v131
    %609 = vmatpush1.msra.mxu0 %v130
    %610 = vmatprep.subr.mxu0 %v134
    %611 = vmatpush1.msra.mxu0 %v133
    %612 = vmatprep.subr.mxu0 %v137
    %613 = vmatpush1.msra.mxu0 %v136
    %614 = vmatprep.subr.mxu0 %v140
    %615 = vmatpush1.msra.mxu0 %v139
    %616 = vmatprep.subr.mxu0 %v143
    %617 = vmatpush1.msra.mxu0 %v142
    %618 = vmatprep.subr.mxu0 %v146
    %619 = vmatpush1.msra.mxu0 %v145
    %620 = vmatprep.subr.mxu0 %v149
    %621 = vmatpush1.msra.mxu0 %v148
    %622 = vmatprep.subr.mxu0 %v152
    %623 = vmatpush1.msra.mxu0 %v151
    %624 = vmatprep.subr.mxu0 %v155
    %625 = vmatpush1.msra.mxu0 %v154
    %626 = vmatprep.subr.mxu0 %v158
    %627 = vmatpush1.msra.mxu0 %v157
    %628 = vmatprep.subr.mxu0 0.0
    %629 = vmatpush1.msra.mxu0 0.0
    %630 = vmatprep.subr.mxu0 0.0
    %631 = vmatpush1.msra.mxu0 0.0
    %632 = vmatprep.subr.mxu0 0.0
    %633 = vmatpush1.msra.mxu0 0.0
    %634 = vmatprep.subr.mxu0 0.0
    %635 = vmatpush1.msra.mxu0 0.0
    %636 = vmatprep.subr.mxu0 0.0
    %637 = vmatpush1.msra.mxu0 0.0
    %638 = vmatprep.subr.mxu0 0.0
    %639 = vmatpush1.msra.mxu0 0.0
    %640 = vmatprep.subr.mxu0 0.0
    %641 = vmatpush1.msra.mxu0 0.0
    %642 = vmatprep.subr.mxu0 0.0
    %643 = vmatpush1.msra.mxu0 0.0
    %644 = vmatprep.subr.mxu0 0.0
    %645 = vmatpush1.msra.mxu0 0.0
    %646 = vmatprep.subr.mxu0 0.0
    %647 = vmatpush1.msra.mxu0 0.0
    %648 = vmatprep.subr.mxu0 0.0
    %649 = vmatpush1.msra.mxu0 0.0
    %650 = vmatprep.subr.mxu0 0.0
    %651 = vmatpush1.msra.mxu0 0.0
    %652 = vmatprep.subr.mxu0 0.0
    %653 = vmatpush1.msra.mxu0 0.0
    %654 = vmatprep.subr.mxu0 0.0
    %655 = vmatpush1.msra.mxu0 0.0
    %656 = vmatprep.subr.mxu0 0.0
    %657 = vmatpush1.msra.mxu0 0.0
    %658 = vmatprep.subr.mxu0 0.0
    %659 = vmatpush1.msra.mxu0 0.0
    %660 = vmatprep.mubr.f32.mxu0 0.0
    %661 = vmatmul.mubr.f32.gmra.mrb[0].mxu0 %v591
    %v662 = vpop.f32.mrb[0].mxu0
    %v663 = vadd.f32 0.0, %v662
    %v664 = vpop.f32.mrb[0].mxu0
    %v665 = vadd.f32 0.0, %v664
    %666 = vdwg.mxu0
    %667 = vmatprep.subr.mxu0 0.0
    %668 = vmatpush1.msra.mxu0 %v114
    %669 = vmatprep.subr.mxu0 0.0
    %670 = vmatpush1.msra.mxu0 %v117
    %671 = vmatprep.subr.mxu0 0.0
    %672 = vmatpush1.msra.mxu0 %v120
    %673 = vmatprep.subr.mxu0 0.0
    %674 = vmatpush1.msra.mxu0 %v123
    %675 = vmatprep.subr.mxu0 0.0
    %676 = vmatpush1.msra.mxu0 %v126
    %677 = vmatprep.subr.mxu0 0.0
    %678 = vmatpush1.msra.mxu0 %v129
    %679 = vmatprep.subr.mxu0 0.0
    %680 = vmatpush1.msra.mxu0 %v132
    %681 = vmatprep.subr.mxu0 0.0
    %682 = vmatpush1.msra.mxu0 %v135
    %683 = vmatprep.subr.mxu0 0.0
    %684 = vmatpush1.msra.mxu0 %v138
    %685 = vmatprep.subr.mxu0 0.0
    %686 = vmatpush1.msra.mxu0 %v141
    %687 = vmatprep.subr.mxu0 0.0
    %688 = vmatpush1.msra.mxu0 %v144
    %689 = vmatprep.subr.mxu0 0.0
    %690 = vmatpush1.msra.mxu0 %v147
    %691 = vmatprep.subr.mxu0 0.0
    %692 = vmatpush1.msra.mxu0 %v150
    %693 = vmatprep.subr.mxu0 0.0
    %694 = vmatpush1.msra.mxu0 %v153
    %695 = vmatprep.subr.mxu0 0.0
    %696 = vmatpush1.msra.mxu0 %v156
    %697 = vmatprep.subr.mxu0 0.0
    %698 = vmatpush1.msra.mxu0 %v159
    %699 = vmatprep.subr.mxu0 0.0
    %700 = vmatpush1.msra.mxu0 0.0
    %701 = vmatprep.subr.mxu0 0.0
    %702 = vmatpush1.msra.mxu0 0.0
    %703 = vmatprep.subr.mxu0 0.0
    %704 = vmatpush1.msra.mxu0 0.0
    %705 = vmatprep.subr.mxu0 0.0
    %706 = vmatpush1.msra.mxu0 0.0
    %707 = vmatprep.subr.mxu0 0.0
    %708 = vmatpush1.msra.mxu0 0.0
    %709 = vmatprep.subr.mxu0 0.0
    %710 = vmatpush1.msra.mxu0 0.0
    %711 = vmatprep.subr.mxu0 0.0
    %712 = vmatpush1.msra.mxu0 0.0
    %713 = vmatprep.subr.mxu0 0.0
    %714 = vmatpush1.msra.mxu0 0.0
    %715 = vmatprep.subr.mxu0 0.0
    %716 = vmatpush1.msra.mxu0 0.0
    %717 = vmatprep.subr.mxu0 0.0
    %718 = vmatpush1.msra.mxu0 0.0
    %719 = vmatprep.subr.mxu0 0.0
    %720 = vmatpush1.msra.mxu0 0.0
    %721 = vmatprep.subr.mxu0 0.0
    %722 = vmatpush1.msra.mxu0 0.0
    %723 = vmatprep.subr.mxu0 0.0
    %724 = vmatpush1.msra.mxu0 0.0
    %725 = vmatprep.subr.mxu0 0.0
    %726 = vmatpush1.msra.mxu0 0.0
    %727 = vmatprep.subr.mxu0 0.0
    %728 = vmatpush1.msra.mxu0 0.0
    %729 = vmatprep.subr.mxu0 0.0
    %730 = vmatpush1.msra.mxu0 0.0
    %731 = vmatprep.mubr.f32.mxu0 0.0
    %732 = vmatmul.mubr.f32.gmra.mrb[0].mxu0 %v591
    %v733 = vpop.f32.mrb[0].mxu0
    %v734 = vadd.f32 0.0, %v733
    %v735 = vpop.f32.mrb[0].mxu0
    %736 = vdwg.mxu0
    %v737 = vadd.f32 %v593, %v663
    %v738 = vxor.u32 %v737, 2147483648
    %v739 = vmul.f32 %v738, 1.442695
    %v740 = vpow.pop %v739
    %v741 = vadd.f32 %v740, 1.0
    %v742 = vrcp.pop %v741
    %v743 = vmul.f32 1.0, %v742
    %v744 = vadd.f32 %v594, %v665
    %v745 = vxor.u32 %v744, 2147483648
    %v746 = vmul.f32 %v745, 1.442695
    %v747 = vpow.pop %v746
    %v748 = vadd.f32 %v747, 1.0
    %v749 = vrcp.pop %v748
    %v750 = vmul.f32 1.0, %v749
    %v751 = vadd.f32 %v734, %v582
    %v752 = vmul.f32 %v743, %v751
    %v753 = vadd.f32 %v595, %v752
    %v754 = vtanh.pop %v753
    %v755 = vsub.f32 1.0, %v750
    %v756 = vmul.f32 %v755, %v754
    %v757 = vmul.f32 %v750, %v591
    %v758 = vadd.f32 %v756, %v757
    %759 = vst [vmem:[#allocation2 + $0x8] sm:$0xff] %v758
    %v760 = vld [vmem:[#allocation3 + $0x30] sm:$0xff]
    %v761 = vld [vmem:[#allocation3 + $0x38] sm:$0xff]
    %v762 = vld [vmem:[#allocation3 + $0x40] sm:$0xff]
    %763 = vmatprep.subr.mxu0 %v113
    %764 = vmatpush1.msra.mxu0 %v112
    %765 = vmatprep.subr.mxu0 %v116
    %766 = vmatpush1.msra.mxu0 %v115
    %767 = vmatprep.subr.mxu0 %v119
    %768 = vmatpush1.msra.mxu0 %v118
    %769 = vmatprep.subr.mxu0 %v122
    %770 = vmatpush1.msra.mxu0 %v121
    %771 = vmatprep.subr.mxu0 %v125
    %772 = vmatpush1.msra.mxu0 %v124
    %773 = vmatprep.subr.mxu0 %v128
    %774 = vmatpush1.msra.mxu0 %v127
    %775 = vmatprep.subr.mxu0 %v131
    %776 = vmatpush1.msra.mxu0 %v130
    %777 = vmatprep.subr.mxu0 %v134
    %778 = vmatpush1.msra.mxu0 %v133
    %779 = vmatprep.subr.mxu0 %v137
    %780 = vmatpush1.msra.mxu0 %v136
    %781 = vmatprep.subr.mxu0 %v140
    %782 = vmatpush1.msra.mxu0 %v139
    %783 = vmatprep.subr.mxu0 %v143
    %784 = vmatpush1.msra.mxu0 %v142
    %785 = vmatprep.subr.mxu0 %v146
    %786 = vmatpush1.msra.mxu0 %v145
    %787 = vmatprep.subr.mxu0 %v149
    %788 = vmatpush1.msra.mxu0 %v148
    %789 = vmatprep.subr.mxu0 %v152
    %790 = vmatpush1.msra.mxu0 %v151
    %791 = vmatprep.subr.mxu0 %v155
    %792 = vmatpush1.msra.mxu0 %v154
    %793 = vmatprep.subr.mxu0 %v158
    %794 = vmatpush1.msra.mxu0 %v157
    %795 = vmatprep.subr.mxu0 0.0
    %796 = vmatpush1.msra.mxu0 0.0
    %797 = vmatprep.subr.mxu0 0.0
    %798 = vmatpush1.msra.mxu0 0.0
    %799 = vmatprep.subr.mxu0 0.0
    %800 = vmatpush1.msra.mxu0 0.0
    %801 = vmatprep.subr.mxu0 0.0
    %802 = vmatpush1.msra.mxu0 0.0
    %803 = vmatprep.subr.mxu0 0.0
    %804 = vmatpush1.msra.mxu0 0.0
    %805 = vmatprep.subr.mxu0 0.0
    %806 = vmatpush1.msra.mxu0 0.0
    %807 = vmatprep.subr.mxu0 0.0
    %808 = vmatpush1.msra.mxu0 0.0
    %809 = vmatprep.subr.mxu0 0.0
    %810 = vmatpush1.msra.mxu0 0.0
    %811 = vmatprep.subr.mxu0 0.0
    %812 = vmatpush1.msra.mxu0 0.0
    %813 = vmatprep.subr.mxu0 0.0
    %814 = vmatpush1.msra.mxu0 0.0
    %815 = vmatprep.subr.mxu0 0.0
    %816 = vmatpush1.msra.mxu0 0.0
    %817 = vmatprep.subr.mxu0 0.0
    %818 = vmatpush1.msra.mxu0 0.0
    %819 = vmatprep.subr.mxu0 0.0
    %820 = vmatpush1.msra.mxu0 0.0
    %821 = vmatprep.subr.mxu0 0.0
    %822 = vmatpush1.msra.mxu0 0.0
    %823 = vmatprep.subr.mxu0 0.0
    %824 = vmatpush1.msra.mxu0 0.0
    %825 = vmatprep.subr.mxu0 0.0
    %826 = vmatpush1.msra.mxu0 0.0
    %827 = vmatprep.mubr.f32.mxu0 0.0
    %828 = vmatmul.mubr.f32.gmra.mrb[0].mxu0 %v758
    %v829 = vpop.f32.mrb[0].mxu0
    %v830 = vadd.f32 0.0, %v829
    %v831 = vpop.f32.mrb[0].mxu0
    %v832 = vadd.f32 0.0, %v831
    %833 = vdwg.mxu0
    %834 = vmatprep.subr.mxu0 0.0
    %835 = vmatpush1.msra.mxu0 %v114
    %836 = vmatprep.subr.mxu0 0.0
    %837 = vmatpush1.msra.mxu0 %v117
    %838 = vmatprep.subr.mxu0 0.0
    %839 = vmatpush1.msra.mxu0 %v120
    %840 = vmatprep.subr.mxu0 0.0
    %841 = vmatpush1.msra.mxu0 %v123
    %842 = vmatprep.subr.mxu0 0.0
    %843 = vmatpush1.msra.mxu0 %v126
    %844 = vmatprep.subr.mxu0 0.0
    %845 = vmatpush1.msra.mxu0 %v129
    %846 = vmatprep.subr.mxu0 0.0
    %847 = vmatpush1.msra.mxu0 %v132
    %848 = vmatprep.subr.mxu0 0.0
    %849 = vmatpush1.msra.mxu0 %v135
    %850 = vmatprep.subr.mxu0 0.0
    %851 = vmatpush1.msra.mxu0 %v138
    %852 = vmatprep.subr.mxu0 0.0
    %853 = vmatpush1.msra.mxu0 %v141
    %854 = vmatprep.subr.mxu0 0.0
    %855 = vmatpush1.msra.mxu0 %v144
    %856 = vmatprep.subr.mxu0 0.0
    %857 = vmatpush1.msra.mxu0 %v147
    %858 = vmatprep.subr.mxu0 0.0
    %859 = vmatpush1.msra.mxu0 %v150
    %860 = vmatprep.subr.mxu0 0.0
    %861 = vmatpush1.msra.mxu0 %v153
    %862 = vmatprep.subr.mxu0 0.0
    %863 = vmatpush1.msra.mxu0 %v156
    %864 = vmatprep.subr.mxu0 0.0
    %865 = vmatpush1.msra.mxu0 %v159
    %866 = vmatprep.subr.mxu0 0.0
    %867 = vmatpush1.msra.mxu0 0.0
    %868 = vmatprep.subr.mxu0 0.0
    %869 = vmatpush1.msra.mxu0 0.0
    %870 = vmatprep.subr.mxu0 0.0
    %871 = vmatpush1.msra.mxu0 0.0
    %872 = vmatprep.subr.mxu0 0.0
    %873 = vmatpush1.msra.mxu0 0.0
    %874 = vmatprep.subr.mxu0 0.0
    %875 = vmatpush1.msra.mxu0 0.0
    %876 = vmatprep.subr.mxu0 0.0
    %877 = vmatpush1.msra.mxu0 0.0
    %878 = vmatprep.subr.mxu0 0.0
    %879 = vmatpush1.msra.mxu0 0.0
    %880 = vmatprep.subr.mxu0 0.0
    %881 = vmatpush1.msra.mxu0 0.0
    %882 = vmatprep.subr.mxu0 0.0
    %883 = vmatpush1.msra.mxu0 0.0
    %884 = vmatprep.subr.mxu0 0.0
    %885 = vmatpush1.msra.mxu0 0.0
    %886 = vmatprep.subr.mxu0 0.0
    %887 = vmatpush1.msra.mxu0 0.0
    %888 = vmatprep.subr.mxu0 0.0
    %889 = vmatpush1.msra.mxu0 0.0
    %890 = vmatprep.subr.mxu0 0.0
    %891 = vmatpush1.msra.mxu0 0.0
    %892 = vmatprep.subr.mxu0 0.0
    %893 = vmatpush1.msra.mxu0 0.0
    %894 = vmatprep.subr.mxu0 0.0
    %895 = vmatpush1.msra.mxu0 0.0
    %896 = vmatprep.subr.mxu0 0.0
    %897 = vmatpush1.msra.mxu0 0.0
    %898 = vmatprep.mubr.f32.mxu0 0.0
    %899 = vmatmul.mubr.f32.gmra.mrb[0].mxu0 %v758
    %v900 = vpop.f32.mrb[0].mxu0
    %v901 = vadd.f32 0.0, %v900
    %v902 = vpop.f32.mrb[0].mxu0
    %903 = vdwg.mxu0
    %v904 = vadd.f32 %v760, %v830
    %v905 = vxor.u32 %v904, 2147483648
    %v906 = vmul.f32 %v905, 1.442695
    %v907 = vpow.pop %v906
    %v908 = vadd.f32 %v907, 1.0
    %v909 = vrcp.pop %v908
    %v910 = vmul.f32 1.0, %v909
    %v911 = vadd.f32 %v761, %v832
    %v912 = vxor.u32 %v911, 2147483648
    %v913 = vmul.f32 %v912, 1.442695
    %v914 = vpow.pop %v913
    %v915 = vadd.f32 %v914, 1.0
    %v916 = vrcp.pop %v915
    %v917 = vmul.f32 1.0, %v916
    %v918 = vadd.f32 %v901, %v582
    %v919 = vmul.f32 %v910, %v918
    %v920 = vadd.f32 %v762, %v919
    %v921 = vtanh.pop %v920
    %v922 = vsub.f32 1.0, %v917
    %v923 = vmul.f32 %v922, %v921
    %v924 = vmul.f32 %v917, %v758
    %v925 = vadd.f32 %v923, %v924
    %926 = vst [vmem:[#allocation2 + $0x10] sm:$0xff] %v925
    %v927 = vld [vmem:[#allocation3 + $0x48] sm:$0xff]
    %v928 = vld [vmem:[#allocation3 + $0x50] sm:$0xff]
    %v929 = vld [vmem:[#allocation3 + $0x58] sm:$0xff]
    %930 = vmatprep.subr.mxu0 %v113
    %931 = vmatpush1.msra.mxu0 %v112
    %932 = vmatprep.subr.mxu0 %v116
    %933 = vmatpush1.msra.mxu0 %v115
    %934 = vmatprep.subr.mxu0 %v119
    %935 = vmatpush1.msra.mxu0 %v118
    %936 = vmatprep.subr.mxu0 %v122
    %937 = vmatpush1.msra.mxu0 %v121
    %938 = vmatprep.subr.mxu0 %v125
    %939 = vmatpush1.msra.mxu0 %v124
    %940 = vmatprep.subr.mxu0 %v128
    %941 = vmatpush1.msra.mxu0 %v127
    %942 = vmatprep.subr.mxu0 %v131
    %943 = vmatpush1.msra.mxu0 %v130
    %944 = vmatprep.subr.mxu0 %v134
    %945 = vmatpush1.msra.mxu0 %v133
    %946 = vmatprep.subr.mxu0 %v137
    %947 = vmatpush1.msra.mxu0 %v136
    %948 = vmatprep.subr.mxu0 %v140
    %949 = vmatpush1.msra.mxu0 %v139
    %950 = vmatprep.subr.mxu0 %v143
    %951 = vmatpush1.msra.mxu0 %v142
    %952 = vmatprep.subr.mxu0 %v146
    %953 = vmatpush1.msra.mxu0 %v145
    %954 = vmatprep.subr.mxu0 %v149
    %955 = vmatpush1.msra.mxu0 %v148
    %956 = vmatprep.subr.mxu0 %v152
    %957 = vmatpush1.msra.mxu0 %v151
    %958 = vmatprep.subr.mxu0 %v155
    %959 = vmatpush1.msra.mxu0 %v154
    %960 = vmatprep.subr.mxu0 %v158
    %961 = vmatpush1.msra.mxu0 %v157
    %962 = vmatprep.subr.mxu0 0.0
    %963 = vmatpush1.msra.mxu0 0.0
    %964 = vmatprep.subr.mxu0 0.0
    %965 = vmatpush1.msra.mxu0 0.0
    %966 = vmatprep.subr.mxu0 0.0
    %967 = vmatpush1.msra.mxu0 0.0
    %968 = vmatprep.subr.mxu0 0.0
    %969 = vmatpush1.msra.mxu0 0.0
    %970 = vmatprep.subr.mxu0 0.0
    %971 = vmatpush1.msra.mxu0 0.0
    %972 = vmatprep.subr.mxu0 0.0
    %973 = vmatpush1.msra.mxu0 0.0
    %974 = vmatprep.subr.mxu0 0.0
    %975 = vmatpush1.msra.mxu0 0.0
    %976 = vmatprep.subr.mxu0 0.0
    %977 = vmatpush1.msra.mxu0 0.0
    %978 = vmatprep.subr.mxu0 0.0
    %979 = vmatpush1.msra.mxu0 0.0
    %980 = vmatprep.subr.mxu0 0.0
    %981 = vmatpush1.msra.mxu0 0.0
    %982 = vmatprep.subr.mxu0 0.0
    %983 = vmatpush1.msra.mxu0 0.0
    %984 = vmatprep.subr.mxu0 0.0
    %985 = vmatpush1.msra.mxu0 0.0
    %986 = vmatprep.subr.mxu0 0.0
    %987 = vmatpush1.msra.mxu0 0.0
    %988 = vmatprep.subr.mxu0 0.0
    %989 = vmatpush1.msra.mxu0 0.0
    %990 = vmatprep.subr.mxu0 0.0
    %991 = vmatpush1.msra.mxu0 0.0
    %992 = vmatprep.subr.mxu0 0.0
    %993 = vmatpush1.msra.mxu0 0.0
    %994 = vmatprep.mubr.f32.mxu0 0.0
    %995 = vmatmul.mubr.f32.gmra.mrb[0].mxu0 %v925
    %v996 = vpop.f32.mrb[0].mxu0
    %v997 = vadd.f32 0.0, %v996
    %v998 = vpop.f32.mrb[0].mxu0
    %v999 = vadd.f32 0.0, %v998
    %1000 = vdwg.mxu0
    %1001 = vmatprep.subr.mxu0 0.0
    %1002 = vmatpush1.msra.mxu0 %v114
    %1003 = vmatprep.subr.mxu0 0.0
    %1004 = vmatpush1.msra.mxu0 %v117
    %1005 = vmatprep.subr.mxu0 0.0
    %1006 = vmatpush1.msra.mxu0 %v120
    %1007 = vmatprep.subr.mxu0 0.0
    %1008 = vmatpush1.msra.mxu0 %v123
    %1009 = vmatprep.subr.mxu0 0.0
    %1010 = vmatpush1.msra.mxu0 %v126
    %1011 = vmatprep.subr.mxu0 0.0
    %1012 = vmatpush1.msra.mxu0 %v129
    %1013 = vmatprep.subr.mxu0 0.0
    %1014 = vmatpush1.msra.mxu0 %v132
    %1015 = vmatprep.subr.mxu0 0.0
    %1016 = vmatpush1.msra.mxu0 %v135
    %1017 = vmatprep.subr.mxu0 0.0
    %1018 = vmatpush1.msra.mxu0 %v138
    %1019 = vmatprep.subr.mxu0 0.0
    %1020 = vmatpush1.msra.mxu0 %v141
    %1021 = vmatprep.subr.mxu0 0.0
    %1022 = vmatpush1.msra.mxu0 %v144
    %1023 = vmatprep.subr.mxu0 0.0
    %1024 = vmatpush1.msra.mxu0 %v147
    %1025 = vmatprep.subr.mxu0 0.0
    %1026 = vmatpush1.msra.mxu0 %v150
    %1027 = vmatprep.subr.mxu0 0.0
    %1028 = vmatpush1.msra.mxu0 %v153
    %1029 = vmatprep.subr.mxu0 0.0
    %1030 = vmatpush1.msra.mxu0 %v156
    %1031 = vmatprep.subr.mxu0 0.0
    %1032 = vmatpush1.msra.mxu0 %v159
    %1033 = vmatprep.subr.mxu0 0.0
    %1034 = vmatpush1.msra.mxu0 0.0
    %1035 = vmatprep.subr.mxu0 0.0
    %1036 = vmatpush1.msra.mxu0 0.0
    %1037 = vmatprep.subr.mxu0 0.0
    %1038 = vmatpush1.msra.mxu0 0.0
    %1039 = vmatprep.subr.mxu0 0.0
    %1040 = vmatpush1.msra.mxu0 0.0
    %1041 = vmatprep.subr.mxu0 0.0
    %1042 = vmatpush1.msra.mxu0 0.0
    %1043 = vmatprep.subr.mxu0 0.0
    %1044 = vmatpush1.msra.mxu0 0.0
    %1045 = vmatprep.subr.mxu0 0.0
    %1046 = vmatpush1.msra.mxu0 0.0
    %1047 = vmatprep.subr.mxu0 0.0
    %1048 = vmatpush1.msra.mxu0 0.0
    %1049 = vmatprep.subr.mxu0 0.0
    %1050 = vmatpush1.msra.mxu0 0.0
    %1051 = vmatprep.subr.mxu0 0.0
    %1052 = vmatpush1.msra.mxu0 0.0
    %1053 = vmatprep.subr.mxu0 0.0
    %1054 = vmatpush1.msra.mxu0 0.0
    %1055 = vmatprep.subr.mxu0 0.0
    %1056 = vmatpush1.msra.mxu0 0.0
    %1057 = vmatprep.subr.mxu0 0.0
    %1058 = vmatpush1.msra.mxu0 0.0
    %1059 = vmatprep.subr.mxu0 0.0
    %1060 = vmatpush1.msra.mxu0 0.0
    %1061 = vmatprep.subr.mxu0 0.0
    %1062 = vmatpush1.msra.mxu0 0.0
    %1063 = vmatprep.subr.mxu0 0.0
    %1064 = vmatpush1.msra.mxu0 0.0
    %1065 = vmatprep.mubr.f32.mxu0 0.0
    %1066 = vmatmul.mubr.f32.gmra.mrb[0].mxu0 %v925
    %v1067 = vpop.f32.mrb[0].mxu0
    %v1068 = vadd.f32 0.0, %v1067
    %v1069 = vpop.f32.mrb[0].mxu0
    %1070 = vdwg.mxu0
    %v1071 = vadd.f32 %v927, %v997
    %v1072 = vxor.u32 %v1071, 2147483648
    %v1073 = vmul.f32 %v1072, 1.442695
    %v1074 = vpow.pop %v1073
    %v1075 = vadd.f32 %v1074, 1.0
    %v1076 = vrcp.pop %v1075
    %v1077 = vmul.f32 1.0, %v1076
    %v1078 = vadd.f32 %v928, %v999
    %v1079 = vxor.u32 %v1078, 2147483648
    %v1080 = vmul.f32 %v1079, 1.442695
    %v1081 = vpow.pop %v1080
    %v1082 = vadd.f32 %v1081, 1.0
    %v1083 = vrcp.pop %v1082
    %v1084 = vmul.f32 1.0, %v1083
    %v1085 = vadd.f32 %v1068, %v582
    %v1086 = vmul.f32 %v1077, %v1085
    %v1087 = vadd.f32 %v929, %v1086
    %v1088 = vtanh.pop %v1087
    %v1089 = vsub.f32 1.0, %v1084
    %v1090 = vmul.f32 %v1089, %v1088
    %v1091 = vmul.f32 %v1084, %v925
    %v1092 = vadd.f32 %v1090, %v1091
    %1093 = vst [vmem:[#allocation2 + $0x18] sm:$0xff] %v1092
    %v1094 = vld [vmem:[#allocation3 + $0x60] sm:$0xff]
    %v1095 = vld [vmem:[#allocation3 + $0x68] sm:$0xff]
    %v1096 = vld [vmem:[#allocation3 + $0x70] sm:$0xff]
    %1097 = vmatprep.subr.mxu0 %v113
    %1098 = vmatpush1.msra.mxu0 %v112
    %1099 = vmatprep.subr.mxu0 %v116
    %1100 = vmatpush1.msra.mxu0 %v115
    %1101 = vmatprep.subr.mxu0 %v119
    %1102 = vmatpush1.msra.mxu0 %v118
    %1103 = vmatprep.subr.mxu0 %v122
    %1104 = vmatpush1.msra.mxu0 %v121
    %1105 = vmatprep.subr.mxu0 %v125
    %1106 = vmatpush1.msra.mxu0 %v124
    %1107 = vmatprep.subr.mxu0 %v128
    %1108 = vmatpush1.msra.mxu0 %v127
    %1109 = vmatprep.subr.mxu0 %v131
    %1110 = vmatpush1.msra.mxu0 %v130
    %1111 = vmatprep.subr.mxu0 %v134
    %1112 = vmatpush1.msra.mxu0 %v133
    %1113 = vmatprep.subr.mxu0 %v137
    %1114 = vmatpush1.msra.mxu0 %v136
    %1115 = vmatprep.subr.mxu0 %v140
    %1116 = vmatpush1.msra.mxu0 %v139
    %1117 = vmatprep.subr.mxu0 %v143
    %1118 = vmatpush1.msra.mxu0 %v142
    %1119 = vmatprep.subr.mxu0 %v146
    %1120 = vmatpush1.msra.mxu0 %v145
    %1121 = vmatprep.subr.mxu0 %v149
    %1122 = vmatpush1.msra.mxu0 %v148
    %1123 = vmatprep.subr.mxu0 %v152
    %1124 = vmatpush1.msra.mxu0 %v151
    %1125 = vmatprep.subr.mxu0 %v155
    %1126 = vmatpush1.msra.mxu0 %v154
    %1127 = vmatprep.subr.mxu0 %v158
    %1128 = vmatpush1.msra.mxu0 %v157
    %1129 = vmatprep.subr.mxu0 0.0
    %1130 = vmatpush1.msra.mxu0 0.0
    %1131 = vmatprep.subr.mxu0 0.0
    %1132 = vmatpush1.msra.mxu0 0.0
    %1133 = vmatprep.subr.mxu0 0.0
    %1134 = vmatpush1.msra.mxu0 0.0
    %1135 = vmatprep.subr.mxu0 0.0
    %1136 = vmatpush1.msra.mxu0 0.0
    %1137 = vmatprep.subr.mxu0 0.0
    %1138 = vmatpush1.msra.mxu0 0.0
    %1139 = vmatprep.subr.mxu0 0.0
    %1140 = vmatpush1.msra.mxu0 0.0
    %1141 = vmatprep.subr.mxu0 0.0
    %1142 = vmatpush1.msra.mxu0 0.0
    %1143 = vmatprep.subr.mxu0 0.0
    %1144 = vmatpush1.msra.mxu0 0.0
    %1145 = vmatprep.subr.mxu0 0.0
    %1146 = vmatpush1.msra.mxu0 0.0
    %1147 = vmatprep.subr.mxu0 0.0
    %1148 = vmatpush1.msra.mxu0 0.0
    %1149 = vmatprep.subr.mxu0 0.0
    %1150 = vmatpush1.msra.mxu0 0.0
    %1151 = vmatprep.subr.mxu0 0.0
    %1152 = vmatpush1.msra.mxu0 0.0
    %1153 = vmatprep.subr.mxu0 0.0
    %1154 = vmatpush1.msra.mxu0 0.0
    %1155 = vmatprep.subr.mxu0 0.0
    %1156 = vmatpush1.msra.mxu0 0.0
    %1157 = vmatprep.subr.mxu0 0.0
    %1158 = vmatpush1.msra.mxu0 0.0
    %1159 = vmatprep.subr.mxu0 0.0
    %1160 = vmatpush1.msra.mxu0 0.0
    %1161 = vmatprep.mubr.f32.mxu0 0.0
    %1162 = vmatmul.mubr.f32.gmra.mrb[0].mxu0 %v1092
    %v1163 = vpop.f32.mrb[0].mxu0
    %v1164 = vadd.f32 0.0, %v1163
    %v1165 = vpop.f32.mrb[0].mxu0
    %v1166 = vadd.f32 0.0, %v1165
    %1167 = vdwg.mxu0
    %1168 = vmatprep.subr.mxu0 0.0
    %1169 = vmatpush1.msra.mxu0 %v114
    %1170 = vmatprep.subr.mxu0 0.0
    %1171 = vmatpush1.msra.mxu0 %v117
    %1172 = vmatprep.subr.mxu0 0.0
    %1173 = vmatpush1.msra.mxu0 %v120
    %1174 = vmatprep.subr.mxu0 0.0
    %1175 = vmatpush1.msra.mxu0 %v123
    %1176 = vmatprep.subr.mxu0 0.0
    %1177 = vmatpush1.msra.mxu0 %v126
    %1178 = vmatprep.subr.mxu0 0.0
    %1179 = vmatpush1.msra.mxu0 %v129
    %1180 = vmatprep.subr.mxu0 0.0
    %1181 = vmatpush1.msra.mxu0 %v132
    %1182 = vmatprep.subr.mxu0 0.0
    %1183 = vmatpush1.msra.mxu0 %v135
    %1184 = vmatprep.subr.mxu0 0.0
    %1185 = vmatpush1.msra.mxu0 %v138
    %1186 = vmatprep.subr.mxu0 0.0
    %1187 = vmatpush1.msra.mxu0 %v141
    %1188 = vmatprep.subr.mxu0 0.0
    %1189 = vmatpush1.msra.mxu0 %v144
    %1190 = vmatprep.subr.mxu0 0.0
    %1191 = vmatpush1.msra.mxu0 %v147
    %1192 = vmatprep.subr.mxu0 0.0
    %1193 = vmatpush1.msra.mxu0 %v150
    %1194 = vmatprep.subr.mxu0 0.0
    %1195 = vmatpush1.msra.mxu0 %v153
    %1196 = vmatprep.subr.mxu0 0.0
    %1197 = vmatpush1.msra.mxu0 %v156
    %1198 = vmatprep.subr.mxu0 0.0
    %1199 = vmatpush1.msra.mxu0 %v159
    %1200 = vmatprep.subr.mxu0 0.0
    %1201 = vmatpush1.msra.mxu0 0.0
    %1202 = vmatprep.subr.mxu0 0.0
    %1203 = vmatpush1.msra.mxu0 0.0
    %1204 = vmatprep.subr.mxu0 0.0
    %1205 = vmatpush1.msra.mxu0 0.0
    %1206 = vmatprep.subr.mxu0 0.0
    %1207 = vmatpush1.msra.mxu0 0.0
    %1208 = vmatprep.subr.mxu0 0.0
    %1209 = vmatpush1.msra.mxu0 0.0
    %1210 = vmatprep.subr.mxu0 0.0
    %1211 = vmatpush1.msra.mxu0 0.0
    %1212 = vmatprep.subr.mxu0 0.0
    %1213 = vmatpush1.msra.mxu0 0.0
    %1214 = vmatprep.subr.mxu0 0.0
    %1215 = vmatpush1.msra.mxu0 0.0
    %1216 = vmatprep.subr.mxu0 0.0
    %1217 = vmatpush1.msra.mxu0 0.0
    %1218 = vmatprep.subr.mxu0 0.0
    %1219 = vmatpush1.msra.mxu0 0.0
    %1220 = vmatprep.subr.mxu0 0.0
    %1221 = vmatpush1.msra.mxu0 0.0
    %1222 = vmatprep.subr.mxu0 0.0
    %1223 = vmatpush1.msra.mxu0 0.0
    %1224 = vmatprep.subr.mxu0 0.0
    %1225 = vmatpush1.msra.mxu0 0.0
    %1226 = vmatprep.subr.mxu0 0.0
    %1227 = vmatpush1.msra.mxu0 0.0
    %1228 = vmatprep.subr.mxu0 0.0
    %1229 = vmatpush1.msra.mxu0 0.0
    %1230 = vmatprep.subr.mxu0 0.0
    %1231 = vmatpush1.msra.mxu0 0.0
    %1232 = vmatprep.mubr.f32.mxu0 0.0
    %1233 = vmatmul.mubr.f32.gmra.mrb[0].mxu0 %v1092
    %v1234 = vpop.f32.mrb[0].mxu0
    %v1235 = vadd.f32 0.0, %v1234
    %v1236 = vpop.f32.mrb[0].mxu0
    %1237 = vdwg.mxu0
    %v1238 = vadd.f32 %v1094, %v1164
    %v1239 = vxor.u32 %v1238, 2147483648
    %v1240 = vmul.f32 %v1239, 1.442695
    %v1241 = vpow.pop %v1240
    %v1242 = vadd.f32 %v1241, 1.0
    %v1243 = vrcp.pop %v1242
    %v1244 = vmul.f32 1.0, %v1243
    %v1245 = vadd.f32 %v1095, %v1166
    %v1246 = vxor.u32 %v1245, 2147483648
    %v1247 = vmul.f32 %v1246, 1.442695
    %v1248 = vpow.pop %v1247
    %v1249 = vadd.f32 %v1248, 1.0
    %v1250 = vrcp.pop %v1249
    %v1251 = vmul.f32 1.0, %v1250
    %v1252 = vadd.f32 %v1235, %v582
    %v1253 = vmul.f32 %v1244, %v1252
    %v1254 = vadd.f32 %v1096, %v1253
    %v1255 = vtanh.pop %v1254
    %v1256 = vsub.f32 1.0, %v1251
    %v1257 = vmul.f32 %v1256, %v1255
    %v1258 = vmul.f32 %v1251, %v1092
    %v1259 = vadd.f32 %v1257, %v1258
    %1260 = vst [vmem:[#allocation2 + $0x20] sm:$0xff] %v1259
    %v1261 = vld [vmem:[#allocation3 + $0x78] sm:$0xff]
    %v1262 = vld [vmem:[#allocation3 + $0x80] sm:$0xff]
    %v1263 = vld [vmem:[#allocation3 + $0x88] sm:$0xff]
    %1264 = vmatprep.subr.mxu0 %v113
    %1265 = vmatpush1.msra.mxu0 %v112
    %1266 = vmatprep.subr.mxu0 %v116
    %1267 = vmatpush1.msra.mxu0 %v115
    %1268 = vmatprep.subr.mxu0 %v119
    %1269 = vmatpush1.msra.mxu0 %v118
    %1270 = vmatprep.subr.mxu0 %v122
    %1271 = vmatpush1.msra.mxu0 %v121
    %1272 = vmatprep.subr.mxu0 %v125
    %1273 = vmatpush1.msra.mxu0 %v124
    %1274 = vmatprep.subr.mxu0 %v128
    %1275 = vmatpush1.msra.mxu0 %v127
    %1276 = vmatprep.subr.mxu0 %v131
    %1277 = vmatpush1.msra.mxu0 %v130
    %1278 = vmatprep.subr.mxu0 %v134
    %1279 = vmatpush1.msra.mxu0 %v133
    %1280 = vmatprep.subr.mxu0 %v137
    %1281 = vmatpush1.msra.mxu0 %v136
    %1282 = vmatprep.subr.mxu0 %v140
    %1283 = vmatpush1.msra.mxu0 %v139
    %1284 = vmatprep.subr.mxu0 %v143
    %1285 = vmatpush1.msra.mxu0 %v142
    %1286 = vmatprep.subr.mxu0 %v146
    %1287 = vmatpush1.msra.mxu0 %v145
    %1288 = vmatprep.subr.mxu0 %v149
    %1289 = vmatpush1.msra.mxu0 %v148
    %1290 = vmatprep.subr.mxu0 %v152
    %1291 = vmatpush1.msra.mxu0 %v151
    %1292 = vmatprep.subr.mxu0 %v155
    %1293 = vmatpush1.msra.mxu0 %v154
    %1294 = vmatprep.subr.mxu0 %v158
    %1295 = vmatpush1.msra.mxu0 %v157
    %1296 = vmatprep.subr.mxu0 0.0
    %1297 = vmatpush1.msra.mxu0 0.0
    %1298 = vmatprep.subr.mxu0 0.0
    %1299 = vmatpush1.msra.mxu0 0.0
    %1300 = vmatprep.subr.mxu0 0.0
    %1301 = vmatpush1.msra.mxu0 0.0
    %1302 = vmatprep.subr.mxu0 0.0
    %1303 = vmatpush1.msra.mxu0 0.0
    %1304 = vmatprep.subr.mxu0 0.0
    %1305 = vmatpush1.msra.mxu0 0.0
    %1306 = vmatprep.subr.mxu0 0.0
    %1307 = vmatpush1.msra.mxu0 0.0
    %1308 = vmatprep.subr.mxu0 0.0
    %1309 = vmatpush1.msra.mxu0 0.0
    %1310 = vmatprep.subr.mxu0 0.0
    %1311 = vmatpush1.msra.mxu0 0.0
    %1312 = vmatprep.subr.mxu0 0.0
    %1313 = vmatpush1.msra.mxu0 0.0
    %1314 = vmatprep.subr.mxu0 0.0
    %1315 = vmatpush1.msra.mxu0 0.0
    %1316 = vmatprep.subr.mxu0 0.0
    %1317 = vmatpush1.msra.mxu0 0.0
    %1318 = vmatprep.subr.mxu0 0.0
    %1319 = vmatpush1.msra.mxu0 0.0
    %1320 = vmatprep.subr.mxu0 0.0
    %1321 = vmatpush1.msra.mxu0 0.0
    %1322 = vmatprep.subr.mxu0 0.0
    %1323 = vmatpush1.msra.mxu0 0.0
    %1324 = vmatprep.subr.mxu0 0.0
    %1325 = vmatpush1.msra.mxu0 0.0
    %1326 = vmatprep.subr.mxu0 0.0
    %1327 = vmatpush1.msra.mxu0 0.0
    %1328 = vmatprep.mubr.f32.mxu0 0.0
    %1329 = vmatmul.mubr.f32.gmra.mrb[0].mxu0 %v1259
    %v1330 = vpop.f32.mrb[0].mxu0
    %v1331 = vadd.f32 0.0, %v1330
    %v1332 = vpop.f32.mrb[0].mxu0
    %v1333 = vadd.f32 0.0, %v1332
    %1334 = vdwg.mxu0
    %1335 = vmatprep.subr.mxu0 0.0
    %1336 = vmatpush1.msra.mxu0 %v114
    %1337 = vmatprep.subr.mxu0 0.0
    %1338 = vmatpush1.msra.mxu0 %v117
    %1339 = vmatprep.subr.mxu0 0.0
    %1340 = vmatpush1.msra.mxu0 %v120
    %1341 = vmatprep.subr.mxu0 0.0
    %1342 = vmatpush1.msra.mxu0 %v123
    %1343 = vmatprep.subr.mxu0 0.0
    %1344 = vmatpush1.msra.mxu0 %v126
    %1345 = vmatprep.subr.mxu0 0.0
    %1346 = vmatpush1.msra.mxu0 %v129
    %1347 = vmatprep.subr.mxu0 0.0
    %1348 = vmatpush1.msra.mxu0 %v132
    %1349 = vmatprep.subr.mxu0 0.0
    %1350 = vmatpush1.msra.mxu0 %v135
    %1351 = vmatprep.subr.mxu0 0.0
    %1352 = vmatpush1.msra.mxu0 %v138
    %1353 = vmatprep.subr.mxu0 0.0
    %1354 = vmatpush1.msra.mxu0 %v141
    %1355 = vmatprep.subr.mxu0 0.0
    %1356 = vmatpush1.msra.mxu0 %v144
    %1357 = vmatprep.subr.mxu0 0.0
    %1358 = vmatpush1.msra.mxu0 %v147
    %1359 = vmatprep.subr.mxu0 0.0
    %1360 = vmatpush1.msra.mxu0 %v150
    %1361 = vmatprep.subr.mxu0 0.0
    %1362 = vmatpush1.msra.mxu0 %v153
    %1363 = vmatprep.subr.mxu0 0.0
    %1364 = vmatpush1.msra.mxu0 %v156
    %1365 = vmatprep.subr.mxu0 0.0
    %1366 = vmatpush1.msra.mxu0 %v159
    %1367 = vmatprep.subr.mxu0 0.0
    %1368 = vmatpush1.msra.mxu0 0.0
    %1369 = vmatprep.subr.mxu0 0.0
    %1370 = vmatpush1.msra.mxu0 0.0
    %1371 = vmatprep.subr.mxu0 0.0
    %1372 = vmatpush1.msra.mxu0 0.0
    %1373 = vmatprep.subr.mxu0 0.0
    %1374 = vmatpush1.msra.mxu0 0.0
    %1375 = vmatprep.subr.mxu0 0.0
    %1376 = vmatpush1.msra.mxu0 0.0
    %1377 = vmatprep.subr.mxu0 0.0
    %1378 = vmatpush1.msra.mxu0 0.0
    %1379 = vmatprep.subr.mxu0 0.0
    %1380 = vmatpush1.msra.mxu0 0.0
    %1381 = vmatprep.subr.mxu0 0.0
    %1382 = vmatpush1.msra.mxu0 0.0
    %1383 = vmatprep.subr.mxu0 0.0
    %1384 = vmatpush1.msra.mxu0 0.0
    %1385 = vmatprep.subr.mxu0 0.0
    %1386 = vmatpush1.msra.mxu0 0.0
    %1387 = vmatprep.subr.mxu0 0.0
    %1388 = vmatpush1.msra.mxu0 0.0
    %1389 = vmatprep.subr.mxu0 0.0
    %1390 = vmatpush1.msra.mxu0 0.0
    %1391 = vmatprep.subr.mxu0 0.0
    %1392 = vmatpush1.msra.mxu0 0.0
    %1393 = vmatprep.subr.mxu0 0.0
    %1394 = vmatpush1.msra.mxu0 0.0
    %1395 = vmatprep.subr.mxu0 0.0
    %1396 = vmatpush1.msra.mxu0 0.0
    %1397 = vmatprep.subr.mxu0 0.0
    %1398 = vmatpush1.msra.mxu0 0.0
    %1399 = vmatprep.mubr.f32.mxu0 0.0
    %1400 = vmatmul.mubr.f32.gmra.mrb[0].mxu0 %v1259
    %v1401 = vpop.f32.mrb[0].mxu0
    %v1402 = vadd.f32 0.0, %v1401
    %v1403 = vpop.f32.mrb[0].mxu0
    %1404 = vdwg.mxu0
    %v1405 = vadd.f32 %v1261, %v1331
    %v1406 = vxor.u32 %v1405, 2147483648
    %v1407 = vmul.f32 %v1406, 1.442695
    %v1408 = vpow.pop %v1407
    %v1409 = vadd.f32 %v1408, 1.0
    %v1410 = vrcp.pop %v1409
    %v1411 = vmul.f32 1.0, %v1410
    %v1412 = vadd.f32 %v1262, %v1333
    %v1413 = vxor.u32 %v1412, 2147483648
    %v1414 = vmul.f32 %v1413, 1.442695
    %v1415 = vpow.pop %v1414
    %v1416 = vadd.f32 %v1415, 1.0
    %v1417 = vrcp.pop %v1416
    %v1418 = vmul.f32 1.0, %v1417
    %v1419 = vadd.f32 %v1402, %v582
    %v1420 = vmul.f32 %v1411, %v1419
    %v1421 = vadd.f32 %v1263, %v1420
    %v1422 = vtanh.pop %v1421
    %v1423 = vsub.f32 1.0, %v1418
    %v1424 = vmul.f32 %v1423, %v1422
    %v1425 = vmul.f32 %v1418, %v1259
    %v1426 = vadd.f32 %v1424, %v1425
    %1427 = vst [vmem:[#allocation2 + $0x28] sm:$0xff] %v1426
    %v1428 = vld [vmem:[#allocation3 + $0x90] sm:$0xff]
    %v1429 = vld [vmem:[#allocation3 + $0x98] sm:$0xff]
    %v1430 = vld [vmem:[#allocation3 + $0xa0] sm:$0xff]
    %1431 = vmatprep.subr.mxu0 %v113
    %1432 = vmatpush1.msra.mxu0 %v112
    %1433 = vmatprep.subr.mxu0 %v116
    %1434 = vmatpush1.msra.mxu0 %v115
    %1435 = vmatprep.subr.mxu0 %v119
    %1436 = vmatpush1.msra.mxu0 %v118
    %1437 = vmatprep.subr.mxu0 %v122
    %1438 = vmatpush1.msra.mxu0 %v121
    %1439 = vmatprep.subr.mxu0 %v125
    %1440 = vmatpush1.msra.mxu0 %v124
    %1441 = vmatprep.subr.mxu0 %v128
    %1442 = vmatpush1.msra.mxu0 %v127
    %1443 = vmatprep.subr.mxu0 %v131
    %1444 = vmatpush1.msra.mxu0 %v130
    %1445 = vmatprep.subr.mxu0 %v134
    %1446 = vmatpush1.msra.mxu0 %v133
    %1447 = vmatprep.subr.mxu0 %v137
    %1448 = vmatpush1.msra.mxu0 %v136
    %1449 = vmatprep.subr.mxu0 %v140
    %1450 = vmatpush1.msra.mxu0 %v139
    %1451 = vmatprep.subr.mxu0 %v143
    %1452 = vmatpush1.msra.mxu0 %v142
    %1453 = vmatprep.subr.mxu0 %v146
    %1454 = vmatpush1.msra.mxu0 %v145
    %1455 = vmatprep.subr.mxu0 %v149
    %1456 = vmatpush1.msra.mxu0 %v148
    %1457 = vmatprep.subr.mxu0 %v152
    %1458 = vmatpush1.msra.mxu0 %v151
    %1459 = vmatprep.subr.mxu0 %v155
    %1460 = vmatpush1.msra.mxu0 %v154
    %1461 = vmatprep.subr.mxu0 %v158
    %1462 = vmatpush1.msra.mxu0 %v157
    %1463 = vmatprep.subr.mxu0 0.0
    %1464 = vmatpush1.msra.mxu0 0.0
    %1465 = vmatprep.subr.mxu0 0.0
    %1466 = vmatpush1.msra.mxu0 0.0
    %1467 = vmatprep.subr.mxu0 0.0
    %1468 = vmatpush1.msra.mxu0 0.0
    %1469 = vmatprep.subr.mxu0 0.0
    %1470 = vmatpush1.msra.mxu0 0.0
    %1471 = vmatprep.subr.mxu0 0.0
    %1472 = vmatpush1.msra.mxu0 0.0
    %1473 = vmatprep.subr.mxu0 0.0
    %1474 = vmatpush1.msra.mxu0 0.0
    %1475 = vmatprep.subr.mxu0 0.0
    %1476 = vmatpush1.msra.mxu0 0.0
    %1477 = vmatprep.subr.mxu0 0.0
    %1478 = vmatpush1.msra.mxu0 0.0
    %1479 = vmatprep.subr.mxu0 0.0
    %1480 = vmatpush1.msra.mxu0 0.0
    %1481 = vmatprep.subr.mxu0 0.0
    %1482 = vmatpush1.msra.mxu0 0.0
    %1483 = vmatprep.subr.mxu0 0.0
    %1484 = vmatpush1.msra.mxu0 0.0
    %1485 = vmatprep.subr.mxu0 0.0
    %1486 = vmatpush1.msra.mxu0 0.0
    %1487 = vmatprep.subr.mxu0 0.0
    %1488 = vmatpush1.msra.mxu0 0.0
    %1489 = vmatprep.subr.mxu0 0.0
    %1490 = vmatpush1.msra.mxu0 0.0
    %1491 = vmatprep.subr.mxu0 0.0
    %1492 = vmatpush1.msra.mxu0 0.0
    %1493 = vmatprep.subr.mxu0 0.0
    %1494 = vmatpush1.msra.mxu0 0.0
    %1495 = vmatprep.mubr.f32.mxu0 0.0
    %1496 = vmatmul.mubr.f32.gmra.mrb[0].mxu0 %v1426
    %v1497 = vpop.f32.mrb[0].mxu0
    %v1498 = vadd.f32 0.0, %v1497
    %v1499 = vpop.f32.mrb[0].mxu0
    %v1500 = vadd.f32 0.0, %v1499
    %1501 = vdwg.mxu0
    %1502 = vmatprep.subr.mxu0 0.0
    %1503 = vmatpush1.msra.mxu0 %v114
    %1504 = vmatprep.subr.mxu0 0.0
    %1505 = vmatpush1.msra.mxu0 %v117
    %1506 = vmatprep.subr.mxu0 0.0
    %1507 = vmatpush1.msra.mxu0 %v120
    %1508 = vmatprep.subr.mxu0 0.0
    %1509 = vmatpush1.msra.mxu0 %v123
    %1510 = vmatprep.subr.mxu0 0.0
    %1511 = vmatpush1.msra.mxu0 %v126
    %1512 = vmatprep.subr.mxu0 0.0
    %1513 = vmatpush1.msra.mxu0 %v129
    %1514 = vmatprep.subr.mxu0 0.0
    %1515 = vmatpush1.msra.mxu0 %v132
    %1516 = vmatprep.subr.mxu0 0.0
    %1517 = vmatpush1.msra.mxu0 %v135
    %1518 = vmatprep.subr.mxu0 0.0
    %1519 = vmatpush1.msra.mxu0 %v138
    %1520 = vmatprep.subr.mxu0 0.0
    %1521 = vmatpush1.msra.mxu0 %v141
    %1522 = vmatprep.subr.mxu0 0.0
    %1523 = vmatpush1.msra.mxu0 %v144
    %1524 = vmatprep.subr.mxu0 0.0
    %1525 = vmatpush1.msra.mxu0 %v147
    %1526 = vmatprep.subr.mxu0 0.0
    %1527 = vmatpush1.msra.mxu0 %v150
    %1528 = vmatprep.subr.mxu0 0.0
    %1529 = vmatpush1.msra.mxu0 %v153
    %1530 = vmatprep.subr.mxu0 0.0
    %1531 = vmatpush1.msra.mxu0 %v156
    %1532 = vmatprep.subr.mxu0 0.0
    %1533 = vmatpush1.msra.mxu0 %v159
    %1534 = vmatprep.subr.mxu0 0.0
    %1535 = vmatpush1.msra.mxu0 0.0
    %1536 = vmatprep.subr.mxu0 0.0
    %1537 = vmatpush1.msra.mxu0 0.0
    %1538 = vmatprep.subr.mxu0 0.0
    %1539 = vmatpush1.msra.mxu0 0.0
    %1540 = vmatprep.subr.mxu0 0.0
    %1541 = vmatpush1.msra.mxu0 0.0
    %1542 = vmatprep.subr.mxu0 0.0
    %1543 = vmatpush1.msra.mxu0 0.0
    %1544 = vmatprep.subr.mxu0 0.0
    %1545 = vmatpush1.msra.mxu0 0.0
    %1546 = vmatprep.subr.mxu0 0.0
    %1547 = vmatpush1.msra.mxu0 0.0
    %1548 = vmatprep.subr.mxu0 0.0
    %1549 = vmatpush1.msra.mxu0 0.0
    %1550 = vmatprep.subr.mxu0 0.0
    %1551 = vmatpush1.msra.mxu0 0.0
    %1552 = vmatprep.subr.mxu0 0.0
    %1553 = vmatpush1.msra.mxu0 0.0
    %1554 = vmatprep.subr.mxu0 0.0
    %1555 = vmatpush1.msra.mxu0 0.0
    %1556 = vmatprep.subr.mxu0 0.0
    %1557 = vmatpush1.msra.mxu0 0.0
    %1558 = vmatprep.subr.mxu0 0.0
    %1559 = vmatpush1.msra.mxu0 0.0
    %1560 = vmatprep.subr.mxu0 0.0
    %1561 = vmatpush1.msra.mxu0 0.0
    %1562 = vmatprep.subr.mxu0 0.0
    %1563 = vmatpush1.msra.mxu0 0.0
    %1564 = vmatprep.subr.mxu0 0.0
    %1565 = vmatpush1.msra.mxu0 0.0
    %1566 = vmatprep.mubr.f32.mxu0 0.0
    %1567 = vmatmul.mubr.f32.gmra.mrb[0].mxu0 %v1426
    %v1568 = vpop.f32.mrb[0].mxu0
    %v1569 = vadd.f32 0.0, %v1568
    %v1570 = vpop.f32.mrb[0].mxu0
    %1571 = vdwg.mxu0
    %v1572 = vadd.f32 %v1428, %v1498
    %v1573 = vxor.u32 %v1572, 2147483648
    %v1574 = vmul.f32 %v1573, 1.442695
    %v1575 = vpow.pop %v1574
    %v1576 = vadd.f32 %v1575, 1.0
    %v1577 = vrcp.pop %v1576
    %v1578 = vmul.f32 1.0, %v1577
    %v1579 = vadd.f32 %v1429, %v1500
    %v1580 = vxor.u32 %v1579, 2147483648
    %v1581 = vmul.f32 %v1580, 1.442695
    %v1582 = vpow.pop %v1581
    %v1583 = vadd.f32 %v1582, 1.0
    %v1584 = vrcp.pop %v1583
    %v1585 = vmul.f32 1.0, %v1584
    %v1586 = vadd.f32 %v1569, %v582
    %v1587 = vmul.f32 %v1578, %v1586
    %v1588 = vadd.f32 %v1430, %v1587
    %v1589 = vtanh.pop %v1588
    %v1590 = vsub.f32 1.0, %v1585
    %v1591 = vmul.f32 %v1590, %v1589
    %v1592 = vmul.f32 %v1585, %v1426
    %v1593 = vadd.f32 %v1591, %v1592
    %1594 = vst [vmem:[#allocation2 + $0x30] sm:$0xff] %v1593
    %v1595 = vld [vmem:[#allocation3 + $0xa8] sm:$0xff]
    %v1596 = vld [vmem:[#allocation3 + $0xb0] sm:$0xff]
    %v1597 = vld [vmem:[#allocation3 + $0xb8] sm:$0xff]
    %1598 = vmatprep.subr.mxu0 %v113
    %1599 = vmatpush1.msra.mxu0 %v112
    %1600 = vmatprep.subr.mxu0 %v116
    %1601 = vmatpush1.msra.mxu0 %v115
    %1602 = vmatprep.subr.mxu0 %v119
    %1603 = vmatpush1.msra.mxu0 %v118
    %1604 = vmatprep.subr.mxu0 %v122
    %1605 = vmatpush1.msra.mxu0 %v121
    %1606 = vmatprep.subr.mxu0 %v125
    %1607 = vmatpush1.msra.mxu0 %v124
    %1608 = vmatprep.subr.mxu0 %v128
    %1609 = vmatpush1.msra.mxu0 %v127
    %1610 = vmatprep.subr.mxu0 %v131
    %1611 = vmatpush1.msra.mxu0 %v130
    %1612 = vmatprep.subr.mxu0 %v134
    %1613 = vmatpush1.msra.mxu0 %v133
    %1614 = vmatprep.subr.mxu0 %v137
    %1615 = vmatpush1.msra.mxu0 %v136
    %1616 = vmatprep.subr.mxu0 %v140
    %1617 = vmatpush1.msra.mxu0 %v139
    %1618 = vmatprep.subr.mxu0 %v143
    %1619 = vmatpush1.msra.mxu0 %v142
    %1620 = vmatprep.subr.mxu0 %v146
    %1621 = vmatpush1.msra.mxu0 %v145
    %1622 = vmatprep.subr.mxu0 %v149
    %1623 = vmatpush1.msra.mxu0 %v148
    %1624 = vmatprep.subr.mxu0 %v152
    %1625 = vmatpush1.msra.mxu0 %v151
    %1626 = vmatprep.subr.mxu0 %v155
    %1627 = vmatpush1.msra.mxu0 %v154
    %1628 = vmatprep.subr.mxu0 %v158
    %1629 = vmatpush1.msra.mxu0 %v157
    %1630 = vmatprep.subr.mxu0 0.0
    %1631 = vmatpush1.msra.mxu0 0.0
    %1632 = vmatprep.subr.mxu0 0.0
    %1633 = vmatpush1.msra.mxu0 0.0
    %1634 = vmatprep.subr.mxu0 0.0
    %1635 = vmatpush1.msra.mxu0 0.0
    %1636 = vmatprep.subr.mxu0 0.0
    %1637 = vmatpush1.msra.mxu0 0.0
    %1638 = vmatprep.subr.mxu0 0.0
    %1639 = vmatpush1.msra.mxu0 0.0
    %1640 = vmatprep.subr.mxu0 0.0
    %1641 = vmatpush1.msra.mxu0 0.0
    %1642 = vmatprep.subr.mxu0 0.0
    %1643 = vmatpush1.msra.mxu0 0.0
    %1644 = vmatprep.subr.mxu0 0.0
    %1645 = vmatpush1.msra.mxu0 0.0
    %1646 = vmatprep.subr.mxu0 0.0
    %1647 = vmatpush1.msra.mxu0 0.0
    %1648 = vmatprep.subr.mxu0 0.0
    %1649 = vmatpush1.msra.mxu0 0.0
    %1650 = vmatprep.subr.mxu0 0.0
    %1651 = vmatpush1.msra.mxu0 0.0
    %1652 = vmatprep.subr.mxu0 0.0
    %1653 = vmatpush1.msra.mxu0 0.0
    %1654 = vmatprep.subr.mxu0 0.0
    %1655 = vmatpush1.msra.mxu0 0.0
    %1656 = vmatprep.subr.mxu0 0.0
    %1657 = vmatpush1.msra.mxu0 0.0
    %1658 = vmatprep.subr.mxu0 0.0
    %1659 = vmatpush1.msra.mxu0 0.0
    %1660 = vmatprep.subr.mxu0 0.0
    %1661 = vmatpush1.msra.mxu0 0.0
    %1662 = vmatprep.mubr.f32.mxu0 0.0
    %1663 = vmatmul.mubr.f32.gmra.mrb[0].mxu0 %v1593
    %v1664 = vpop.f32.mrb[0].mxu0
    %v1665 = vadd.f32 0.0, %v1664
    %v1666 = vpop.f32.mrb[0].mxu0
    %v1667 = vadd.f32 0.0, %v1666
    %1668 = vdwg.mxu0
    %1669 = vmatprep.subr.mxu0 0.0
    %1670 = vmatpush1.msra.mxu0 %v114
    %1671 = vmatprep.subr.mxu0 0.0
    %1672 = vmatpush1.msra.mxu0 %v117
    %1673 = vmatprep.subr.mxu0 0.0
    %1674 = vmatpush1.msra.mxu0 %v120
    %1675 = vmatprep.subr.mxu0 0.0
    %1676 = vmatpush1.msra.mxu0 %v123
    %1677 = vmatprep.subr.mxu0 0.0
    %1678 = vmatpush1.msra.mxu0 %v126
    %1679 = vmatprep.subr.mxu0 0.0
    %1680 = vmatpush1.msra.mxu0 %v129
    %1681 = vmatprep.subr.mxu0 0.0
    %1682 = vmatpush1.msra.mxu0 %v132
    %1683 = vmatprep.subr.mxu0 0.0
    %1684 = vmatpush1.msra.mxu0 %v135
    %1685 = vmatprep.subr.mxu0 0.0
    %1686 = vmatpush1.msra.mxu0 %v138
    %1687 = vmatprep.subr.mxu0 0.0
    %1688 = vmatpush1.msra.mxu0 %v141
    %1689 = vmatprep.subr.mxu0 0.0
    %1690 = vmatpush1.msra.mxu0 %v144
    %1691 = vmatprep.subr.mxu0 0.0
    %1692 = vmatpush1.msra.mxu0 %v147
    %1693 = vmatprep.subr.mxu0 0.0
    %1694 = vmatpush1.msra.mxu0 %v150
    %1695 = vmatprep.subr.mxu0 0.0
    %1696 = vmatpush1.msra.mxu0 %v153
    %1697 = vmatprep.subr.mxu0 0.0
    %1698 = vmatpush1.msra.mxu0 %v156
    %1699 = vmatprep.subr.mxu0 0.0
    %1700 = vmatpush1.msra.mxu0 %v159
    %1701 = vmatprep.subr.mxu0 0.0
    %1702 = vmatpush1.msra.mxu0 0.0
    %1703 = vmatprep.subr.mxu0 0.0
    %1704 = vmatpush1.msra.mxu0 0.0
    %1705 = vmatprep.subr.mxu0 0.0
    %1706 = vmatpush1.msra.mxu0 0.0
    %1707 = vmatprep.subr.mxu0 0.0
    %1708 = vmatpush1.msra.mxu0 0.0
    %1709 = vmatprep.subr.mxu0 0.0
    %1710 = vmatpush1.msra.mxu0 0.0
    %1711 = vmatprep.subr.mxu0 0.0
    %1712 = vmatpush1.msra.mxu0 0.0
    %1713 = vmatprep.subr.mxu0 0.0
    %1714 = vmatpush1.msra.mxu0 0.0
    %1715 = vmatprep.subr.mxu0 0.0
    %1716 = vmatpush1.msra.mxu0 0.0
    %1717 = vmatprep.subr.mxu0 0.0
    %1718 = vmatpush1.msra.mxu0 0.0
    %1719 = vmatprep.subr.mxu0 0.0
    %1720 = vmatpush1.msra.mxu0 0.0
    %1721 = vmatprep.subr.mxu0 0.0
    %1722 = vmatpush1.msra.mxu0 0.0
    %1723 = vmatprep.subr.mxu0 0.0
    %1724 = vmatpush1.msra.mxu0 0.0
    %1725 = vmatprep.subr.mxu0 0.0
    %1726 = vmatpush1.msra.mxu0 0.0
    %1727 = vmatprep.subr.mxu0 0.0
    %1728 = vmatpush1.msra.mxu0 0.0
    %1729 = vmatprep.subr.mxu0 0.0
    %1730 = vmatpush1.msra.mxu0 0.0
    %1731 = vmatprep.subr.mxu0 0.0
    %1732 = vmatpush1.msra.mxu0 0.0
    %1733 = vmatprep.mubr.f32.mxu0 0.0
    %1734 = vmatmul.mubr.f32.gmra.mrb[0].mxu0 %v1593
    %v1735 = vpop.f32.mrb[0].mxu0
    %v1736 = vadd.f32 0.0, %v1735
    %v1737 = vpop.f32.mrb[0].mxu0
    %1738 = vdwg.mxu0
    %v1739 = vadd.f32 %v1595, %v1665
    %v1740 = vxor.u32 %v1739, 2147483648
    %v1741 = vmul.f32 %v1740, 1.442695
    %v1742 = vpow.pop %v1741
    %v1743 = vadd.f32 %v1742, 1.0
    %v1744 = vrcp.pop %v1743
    %v1745 = vmul.f32 1.0, %v1744
    %v1746 = vadd.f32 %v1596, %v1667
    %v1747 = vxor.u32 %v1746, 2147483648
    %v1748 = vmul.f32 %v1747, 1.442695
    %v1749 = vpow.pop %v1748
    %v1750 = vadd.f32 %v1749, 1.0
    %v1751 = vrcp.pop %v1750
    %v1752 = vmul.f32 1.0, %v1751
    %v1753 = vadd.f32 %v1736, %v582
    %v1754 = vmul.f32 %v1745, %v1753
    %v1755 = vadd.f32 %v1597, %v1754
    %v1756 = vtanh.pop %v1755
    %v1757 = vsub.f32 1.0, %v1752
    %v1758 = vmul.f32 %v1757, %v1756
    %v1759 = vmul.f32 %v1752, %v1593
    %v1760 = vadd.f32 %v1758, %v1759
    %1761 = vst [vmem:[#allocation2 + $0x38] sm:$0xff] %v1760
    %v1762 = vld [vmem:[#allocation2] sm:$0xff]
    %v1763 = vld [vmem:[#allocation2 + $0x8] sm:$0xff]
    %v1764 = vld [vmem:[#allocation2 + $0x10] sm:$0xff]
    %v1765 = vld [vmem:[#allocation2 + $0x18] sm:$0xff]
    %v1766 = vld [vmem:[#allocation2 + $0x20] sm:$0xff]
    %v1767 = vld [vmem:[#allocation2 + $0x28] sm:$0xff]
    %v1768 = vld [vmem:[#allocation2 + $0x30] sm:$0xff]
    %v1769 = vld [vmem:[#allocation2 + $0x38] sm:$0xff]
    %s1770 = scalar_lea.vmem [#allocation5], 384
    %v1771 = vld [vmem:[%s1770] sm:$0xff]
    %v1772 = vld [vmem:[%s1770 + $0x8] sm:$0xff]
    %v1773 = vld [vmem:[%s1770 + $0x10] sm:$0xff]
    %v1774 = vld [vmem:[%s1770 + $0x18] sm:$0xff]
    %v1775 = vld [vmem:[%s1770 + $0x20] sm:$0xff]
    %v1776 = vld [vmem:[%s1770 + $0x28] sm:$0xff]
    %v1777 = vld [vmem:[%s1770 + $0x30] sm:$0xff]
    %v1778 = vld [vmem:[%s1770 + $0x38] sm:$0xff]
    %v1779 = vld [vmem:[%s1770 + $0x40] sm:$0xff]
    %v1780 = vld [vmem:[%s1770 + $0x48] sm:$0xff]
    %v1781 = vld [vmem:[%s1770 + $0x50] sm:$0xff]
    %v1782 = vld [vmem:[%s1770 + $0x58] sm:$0xff]
    %v1783 = vld [vmem:[%s1770 + $0x60] sm:$0xff]
    %v1784 = vld [vmem:[%s1770 + $0x68] sm:$0xff]
    %v1785 = vld [vmem:[%s1770 + $0x70] sm:$0xff]
    %v1786 = vld [vmem:[%s1770 + $0x78] sm:$0xff]
    %v1787 = vld [vmem:[%s1770 + $0x80] sm:$0xff]
    %v1788 = vld [vmem:[%s1770 + $0x88] sm:$0xff]
    %v1789 = vld [vmem:[%s1770 + $0x90] sm:$0xff]
    %v1790 = vld [vmem:[%s1770 + $0x98] sm:$0xff]
    %v1791 = vld [vmem:[%s1770 + $0xa0] sm:$0xff]
    %v1792 = vld [vmem:[%s1770 + $0xa8] sm:$0xff]
    %v1793 = vld [vmem:[%s1770 + $0xb0] sm:$0xff]
    %v1794 = vld [vmem:[%s1770 + $0xb8] sm:$0xff]
    %v1795 = vld [vmem:[%s1770 + $0xc0] sm:$0xff]
    %v1796 = vld [vmem:[%s1770 + $0xc8] sm:$0xff]
    %v1797 = vld [vmem:[%s1770 + $0xd0] sm:$0xff]
    %v1798 = vld [vmem:[%s1770 + $0xd8] sm:$0xff]
    %v1799 = vld [vmem:[%s1770 + $0xe0] sm:$0xff]
    %v1800 = vld [vmem:[%s1770 + $0xe8] sm:$0xff]
    %v1801 = vld [vmem:[%s1770 + $0xf0] sm:$0xff]
    %v1802 = vld [vmem:[%s1770 + $0xf8] sm:$0xff]
    %v1803 = vld [vmem:[%s1770 + $0x100] sm:$0xff]
    %v1804 = vld [vmem:[%s1770 + $0x108] sm:$0xff]
    %v1805 = vld [vmem:[%s1770 + $0x110] sm:$0xff]
    %v1806 = vld [vmem:[%s1770 + $0x118] sm:$0xff]
    %v1807 = vld [vmem:[%s1770 + $0x120] sm:$0xff]
    %v1808 = vld [vmem:[%s1770 + $0x128] sm:$0xff]
    %v1809 = vld [vmem:[%s1770 + $0x130] sm:$0xff]
    %v1810 = vld [vmem:[%s1770 + $0x138] sm:$0xff]
    %v1811 = vld [vmem:[%s1770 + $0x140] sm:$0xff]
    %v1812 = vld [vmem:[%s1770 + $0x148] sm:$0xff]
    %v1813 = vld [vmem:[%s1770 + $0x150] sm:$0xff]
    %v1814 = vld [vmem:[%s1770 + $0x158] sm:$0xff]
    %v1815 = vld [vmem:[%s1770 + $0x160] sm:$0xff]
    %v1816 = vld [vmem:[%s1770 + $0x168] sm:$0xff]
    %v1817 = vld [vmem:[%s1770 + $0x170] sm:$0xff]
    %v1818 = vld [vmem:[%s1770 + $0x178] sm:$0xff]
    %s1819 = scalar_lea.vmem [#allocation7], 384
    %v1820 = vld [vmem:[%s1819] sm:$0xff]
    %v1821 = vld [vmem:[%s1819 + $0x8] sm:$0xff]
    %v1822 = vld [vmem:[%s1819 + $0x10] sm:$0xff]
    %v1823 = vld [vmem:[%s1819 + $0x18] sm:$0xff]
    %v1824 = vld [vmem:[%s1819 + $0x20] sm:$0xff]
    %v1825 = vld [vmem:[%s1819 + $0x28] sm:$0xff]
    %v1826 = vld [vmem:[%s1819 + $0x30] sm:$0xff]
    %v1827 = vld [vmem:[%s1819 + $0x38] sm:$0xff]
    %v1828 = vld [vmem:[%s1819 + $0x40] sm:$0xff]
    %v1829 = vld [vmem:[%s1819 + $0x48] sm:$0xff]
    %v1830 = vld [vmem:[%s1819 + $0x50] sm:$0xff]
    %v1831 = vld [vmem:[%s1819 + $0x58] sm:$0xff]
    %v1832 = vld [vmem:[%s1819 + $0x60] sm:$0xff]
    %v1833 = vld [vmem:[%s1819 + $0x68] sm:$0xff]
    %v1834 = vld [vmem:[%s1819 + $0x70] sm:$0xff]
    %v1835 = vld [vmem:[%s1819 + $0x78] sm:$0xff]
    %v1836 = vld [vmem:[%s1819 + $0x80] sm:$0xff]
    %v1837 = vld [vmem:[%s1819 + $0x88] sm:$0xff]
    %v1838 = vld [vmem:[%s1819 + $0x90] sm:$0xff]
    %v1839 = vld [vmem:[%s1819 + $0x98] sm:$0xff]
    %v1840 = vld [vmem:[%s1819 + $0xa0] sm:$0xff]
    %v1841 = vld [vmem:[%s1819 + $0xa8] sm:$0xff]
    %v1842 = vld [vmem:[%s1819 + $0xb0] sm:$0xff]
    %v1843 = vld [vmem:[%s1819 + $0xb8] sm:$0xff]
    %v1844 = vld [vmem:[%s1819 + $0xc0] sm:$0xff]
    %v1845 = vld [vmem:[%s1819 + $0xc8] sm:$0xff]
    %v1846 = vld [vmem:[%s1819 + $0xd0] sm:$0xff]
    %v1847 = vld [vmem:[%s1819 + $0xd8] sm:$0xff]
    %v1848 = vld [vmem:[%s1819 + $0xe0] sm:$0xff]
    %v1849 = vld [vmem:[%s1819 + $0xe8] sm:$0xff]
    %v1850 = vld [vmem:[%s1819 + $0xf0] sm:$0xff]
    %v1851 = vld [vmem:[%s1819 + $0xf8] sm:$0xff]
    %v1852 = vld [vmem:[%s1819 + $0x100] sm:$0xff]
    %v1853 = vld [vmem:[%s1819 + $0x108] sm:$0xff]
    %v1854 = vld [vmem:[%s1819 + $0x110] sm:$0xff]
    %v1855 = vld [vmem:[%s1819 + $0x118] sm:$0xff]
    %v1856 = vld [vmem:[%s1819 + $0x120] sm:$0xff]
    %v1857 = vld [vmem:[%s1819 + $0x128] sm:$0xff]
    %v1858 = vld [vmem:[%s1819 + $0x130] sm:$0xff]
    %v1859 = vld [vmem:[%s1819 + $0x138] sm:$0xff]
    %v1860 = vld [vmem:[%s1819 + $0x140] sm:$0xff]
    %v1861 = vld [vmem:[%s1819 + $0x148] sm:$0xff]
    %v1862 = vld [vmem:[%s1819 + $0x150] sm:$0xff]
    %v1863 = vld [vmem:[%s1819 + $0x158] sm:$0xff]
    %v1864 = vld [vmem:[%s1819 + $0x160] sm:$0xff]
    %v1865 = vld [vmem:[%s1819 + $0x168] sm:$0xff]
    %v1866 = vld [vmem:[%s1819 + $0x170] sm:$0xff]
    %v1867 = vld [vmem:[%s1819 + $0x178] sm:$0xff]
    %s1868 = scalar_lea.vmem %s3, 3
    %v1869 = vld [vmem:[%s1868] sm:$0x7]
    %s1870 = scalar_lea.vmem %s4, 1
    %v1871 = vld [vmem:[%s1870] sm:$0x1]
    %v1873 = vlaneseq
    %v1874 = vshrl.u32 %v1873, 7
    %v1875 = vsub.s32 0, %v1874
    %v1876 = vrot.slane %v1869, %v1875
    %v1877 = vlaneseq
    %v1878 = vshrl.u32 %v1877, 7
    %v1879 = vsub.s32 1, %v1878
    %v1880 = vrot.slane %v1869, %v1879
    %v1881 = vlaneseq
    %v1882 = vshrl.u32 %v1881, 7
    %v1883 = vsub.s32 2, %v1882
    %v1884 = vrot.slane %v1869, %v1883
    %1888 = vmatprep.subr.mxu0 %v1772
    %1889 = vmatpush1.msra.mxu0 %v1771
    %1890 = vmatprep.subr.mxu0 %v1775
    %1891 = vmatpush1.msra.mxu0 %v1774
    %1892 = vmatprep.subr.mxu0 %v1778
    %1893 = vmatpush1.msra.mxu0 %v1777
    %1894 = vmatprep.subr.mxu0 %v1781
    %1895 = vmatpush1.msra.mxu0 %v1780
    %1896 = vmatprep.subr.mxu0 %v1784
    %1897 = vmatpush1.msra.mxu0 %v1783
    %1898 = vmatprep.subr.mxu0 %v1787
    %1899 = vmatpush1.msra.mxu0 %v1786
    %1900 = vmatprep.subr.mxu0 %v1790
    %1901 = vmatpush1.msra.mxu0 %v1789
    %1902 = vmatprep.subr.mxu0 %v1793
    %1903 = vmatpush1.msra.mxu0 %v1792
    %1904 = vmatprep.subr.mxu0 %v1796
    %1905 = vmatpush1.msra.mxu0 %v1795
    %1906 = vmatprep.subr.mxu0 %v1799
    %1907 = vmatpush1.msra.mxu0 %v1798
    %1908 = vmatprep.subr.mxu0 %v1802
    %1909 = vmatpush1.msra.mxu0 %v1801
    %1910 = vmatprep.subr.mxu0 %v1805
    %1911 = vmatpush1.msra.mxu0 %v1804
    %1912 = vmatprep.subr.mxu0 %v1808
    %1913 = vmatpush1.msra.mxu0 %v1807
    %1914 = vmatprep.subr.mxu0 %v1811
    %1915 = vmatpush1.msra.mxu0 %v1810
    %1916 = vmatprep.subr.mxu0 %v1814
    %1917 = vmatpush1.msra.mxu0 %v1813
    %1918 = vmatprep.subr.mxu0 %v1817
    %1919 = vmatpush1.msra.mxu0 %v1816
    %1920 = vmatprep.subr.mxu0 0.0
    %1921 = vmatpush1.msra.mxu0 0.0
    %1922 = vmatprep.subr.mxu0 0.0
    %1923 = vmatpush1.msra.mxu0 0.0
    %1924 = vmatprep.subr.mxu0 0.0
    %1925 = vmatpush1.msra.mxu0 0.0
    %1926 = vmatprep.subr.mxu0 0.0
    %1927 = vmatpush1.msra.mxu0 0.0
    %1928 = vmatprep.subr.mxu0 0.0
    %1929 = vmatpush1.msra.mxu0 0.0
    %1930 = vmatprep.subr.mxu0 0.0
    %1931 = vmatpush1.msra.mxu0 0.0
    %1932 = vmatprep.subr.mxu0 0.0
    %1933 = vmatpush1.msra.mxu0 0.0
    %1934 = vmatprep.subr.mxu0 0.0
    %1935 = vmatpush1.msra.mxu0 0.0
    %1936 = vmatprep.subr.mxu0 0.0
    %1937 = vmatpush1.msra.mxu0 0.0
    %1938 = vmatprep.subr.mxu0 0.0
    %1939 = vmatpush1.msra.mxu0 0.0
    %1940 = vmatprep.subr.mxu0 0.0
    %1941 = vmatpush1.msra.mxu0 0.0
    %1942 = vmatprep.subr.mxu0 0.0
    %1943 = vmatpush1.msra.mxu0 0.0
    %1944 = vmatprep.subr.mxu0 0.0
    %1945 = vmatpush1.msra.mxu0 0.0
    %1946 = vmatprep.subr.mxu0 0.0
    %1947 = vmatpush1.msra.mxu0 0.0
    %1948 = vmatprep.subr.mxu0 0.0
    %1949 = vmatpush1.msra.mxu0 0.0
    %1950 = vmatprep.subr.mxu0 0.0
    %1951 = vmatpush1.msra.mxu0 0.0
    %1952 = vmatprep.mubr.f32.mxu0 0.0
    %1953 = vmatmul.mubr.f32.gmra.mrb[0].mxu0 %v1762
    %v1954 = vpop.f32.mrb[0].mxu0
    %v1955 = vadd.f32 %v1876, %v1954
    %v1956 = vpop.f32.mrb[0].mxu0
    %v1957 = vadd.f32 %v1880, %v1956
    %1958 = vmatprep.mubr.f32.mxu0 0.0
    %1959 = vmatmul.mubr.f32.gmra.mrb[0].mxu0 %v1763
    %v1960 = vpop.f32.mrb[0].mxu0
    %v1961 = vadd.f32 %v1876, %v1960
    %v1962 = vpop.f32.mrb[0].mxu0
    %v1963 = vadd.f32 %v1880, %v1962
    %1964 = vmatprep.mubr.f32.mxu0 0.0
    %1965 = vmatmul.mubr.f32.gmra.mrb[0].mxu0 %v1764
    %v1966 = vpop.f32.mrb[0].mxu0
    %v1967 = vadd.f32 %v1876, %v1966
    %v1968 = vpop.f32.mrb[0].mxu0
    %v1969 = vadd.f32 %v1880, %v1968
    %1970 = vmatprep.mubr.f32.mxu0 0.0
    %1971 = vmatmul.mubr.f32.gmra.mrb[0].mxu0 %v1765
    %v1972 = vpop.f32.mrb[0].mxu0
    %v1973 = vadd.f32 %v1876, %v1972
    %v1974 = vpop.f32.mrb[0].mxu0
    %v1975 = vadd.f32 %v1880, %v1974
    %1976 = vmatprep.mubr.f32.mxu0 0.0
    %1977 = vmatmul.mubr.f32.gmra.mrb[0].mxu0 %v1766
    %v1978 = vpop.f32.mrb[0].mxu0
    %v1979 = vadd.f32 %v1876, %v1978
    %v1980 = vpop.f32.mrb[0].mxu0
    %v1981 = vadd.f32 %v1880, %v1980
    %1982 = vmatprep.mubr.f32.mxu0 0.0
    %1983 = vmatmul.mubr.f32.gmra.mrb[0].mxu0 %v1767
    %v1984 = vpop.f32.mrb[0].mxu0
    %v1985 = vadd.f32 %v1876, %v1984
    %v1986 = vpop.f32.mrb[0].mxu0
    %v1987 = vadd.f32 %v1880, %v1986
    %1988 = vmatprep.mubr.f32.mxu0 0.0
    %1989 = vmatmul.mubr.f32.gmra.mrb[0].mxu0 %v1768
    %v1990 = vpop.f32.mrb[0].mxu0
    %v1991 = vadd.f32 %v1876, %v1990
    %v1992 = vpop.f32.mrb[0].mxu0
    %v1993 = vadd.f32 %v1880, %v1992
    %1994 = vmatprep.mubr.f32.mxu0 0.0
    %1995 = vmatmul.mubr.f32.gmra.mrb[0].mxu0 %v1769
    %v1996 = vpop.f32.mrb[0].mxu0
    %v1997 = vadd.f32 %v1876, %v1996
    %v1998 = vpop.f32.mrb[0].mxu0
    %v1999 = vadd.f32 %v1880, %v1998
    %2000 = vdwg.mxu0
    %2001 = vmatprep.subr.mxu0 0.0
    %2002 = vmatpush1.msra.mxu0 %v1773
    %2003 = vmatprep.subr.mxu0 0.0
    %2004 = vmatpush1.msra.mxu0 %v1776
    %2005 = vmatprep.subr.mxu0 0.0
    %2006 = vmatpush1.msra.mxu0 %v1779
    %2007 = vmatprep.subr.mxu0 0.0
    %2008 = vmatpush1.msra.mxu0 %v1782
    %2009 = vmatprep.subr.mxu0 0.0
    %2010 = vmatpush1.msra.mxu0 %v1785
    %2011 = vmatprep.subr.mxu0 0.0
    %2012 = vmatpush1.msra.mxu0 %v1788
    %2013 = vmatprep.subr.mxu0 0.0
    %2014 = vmatpush1.msra.mxu0 %v1791
    %2015 = vmatprep.subr.mxu0 0.0
    %2016 = vmatpush1.msra.mxu0 %v1794
    %2017 = vmatprep.subr.mxu0 0.0
    %2018 = vmatpush1.msra.mxu0 %v1797
    %2019 = vmatprep.subr.mxu0 0.0
    %2020 = vmatpush1.msra.mxu0 %v1800
    %2021 = vmatprep.subr.mxu0 0.0
    %2022 = vmatpush1.msra.mxu0 %v1803
    %2023 = vmatprep.subr.mxu0 0.0
    %2024 = vmatpush1.msra.mxu0 %v1806
    %2025 = vmatprep.subr.mxu0 0.0
    %2026 = vmatpush1.msra.mxu0 %v1809
    %2027 = vmatprep.subr.mxu0 0.0
    %2028 = vmatpush1.msra.mxu0 %v1812
    %2029 = vmatprep.subr.mxu0 0.0
    %2030 = vmatpush1.msra.mxu0 %v1815
    %2031 = vmatprep.subr.mxu0 0.0
    %2032 = vmatpush1.msra.mxu0 %v1818
    %2033 = vmatprep.subr.mxu0 0.0
    %2034 = vmatpush1.msra.mxu0 0.0
    %2035 = vmatprep.subr.mxu0 0.0
    %2036 = vmatpush1.msra.mxu0 0.0
    %2037 = vmatprep.subr.mxu0 0.0
    %2038 = vmatpush1.msra.mxu0 0.0
    %2039 = vmatprep.subr.mxu0 0.0
    %2040 = vmatpush1.msra.mxu0 0.0
    %2041 = vmatprep.subr.mxu0 0.0
    %2042 = vmatpush1.msra.mxu0 0.0
    %2043 = vmatprep.subr.mxu0 0.0
    %2044 = vmatpush1.msra.mxu0 0.0
    %2045 = vmatprep.subr.mxu0 0.0
    %2046 = vmatpush1.msra.mxu0 0.0
    %2047 = vmatprep.subr.mxu0 0.0
    %2048 = vmatpush1.msra.mxu0 0.0
    %2049 = vmatprep.subr.mxu0 0.0
    %2050 = vmatpush1.msra.mxu0 0.0
    %2051 = vmatprep.subr.mxu0 0.0
    %2052 = vmatpush1.msra.mxu0 0.0
    %2053 = vmatprep.subr.mxu0 0.0
    %2054 = vmatpush1.msra.mxu0 0.0
    %2055 = vmatprep.subr.mxu0 0.0
    %2056 = vmatpush1.msra.mxu0 0.0
    %2057 = vmatprep.subr.mxu0 0.0
    %2058 = vmatpush1.msra.mxu0 0.0
    %2059 = vmatprep.subr.mxu0 0.0
    %2060 = vmatpush1.msra.mxu0 0.0
    %2061 = vmatprep.subr.mxu0 0.0
    %2062 = vmatpush1.msra.mxu0 0.0
    %2063 = vmatprep.subr.mxu0 0.0
    %2064 = vmatpush1.msra.mxu0 0.0
    %2065 = vmatprep.mubr.f32.mxu0 0.0
    %2066 = vmatmul.mubr.f32.gmra.mrb[0].mxu0 %v1762
    %v2067 = vpop.f32.mrb[0].mxu0
    %v2068 = vadd.f32 %v1884, %v2067
    %v2069 = vpop.f32.mrb[0].mxu0
    %2070 = vmatprep.mubr.f32.mxu0 0.0
    %2071 = vmatmul.mubr.f32.gmra.mrb[0].mxu0 %v1763
    %v2072 = vpop.f32.mrb[0].mxu0
    %v2073 = vadd.f32 %v1884, %v2072
    %v2074 = vpop.f32.mrb[0].mxu0
    %2075 = vmatprep.mubr.f32.mxu0 0.0
    %2076 = vmatmul.mubr.f32.gmra.mrb[0].mxu0 %v1764
    %v2077 = vpop.f32.mrb[0].mxu0
    %v2078 = vadd.f32 %v1884, %v2077
    %v2079 = vpop.f32.mrb[0].mxu0
    %2080 = vmatprep.mubr.f32.mxu0 0.0
    %2081 = vmatmul.mubr.f32.gmra.mrb[0].mxu0 %v1765
    %v2082 = vpop.f32.mrb[0].mxu0
    %v2083 = vadd.f32 %v1884, %v2082
    %v2084 = vpop.f32.mrb[0].mxu0
    %2085 = vmatprep.mubr.f32.mxu0 0.0
    %2086 = vmatmul.mubr.f32.gmra.mrb[0].mxu0 %v1766
    %v2087 = vpop.f32.mrb[0].mxu0
    %v2088 = vadd.f32 %v1884, %v2087
    %v2089 = vpop.f32.mrb[0].mxu0
    %2090 = vmatprep.mubr.f32.mxu0 0.0
    %2091 = vmatmul.mubr.f32.gmra.mrb[0].mxu0 %v1767
    %v2092 = vpop.f32.mrb[0].mxu0
    %v2093 = vadd.f32 %v1884, %v2092
    %v2094 = vpop.f32.mrb[0].mxu0
    %2095 = vmatprep.mubr.f32.mxu0 0.0
    %2096 = vmatmul.mubr.f32.gmra.mrb[0].mxu0 %v1768
    %v2097 = vpop.f32.mrb[0].mxu0
    %v2098 = vadd.f32 %v1884, %v2097
    %v2099 = vpop.f32.mrb[0].mxu0
    %2100 = vmatprep.mubr.f32.mxu0 0.0
    %2101 = vmatmul.mubr.f32.gmra.mrb[0].mxu0 %v1769
    %v2102 = vpop.f32.mrb[0].mxu0
    %v2103 = vadd.f32 %v1884, %v2102
    %v2104 = vpop.f32.mrb[0].mxu0
    %2105 = vdwg.mxu0
    %2106 = vst [vmem:[#allocation3] sm:$0xff] %v1955
    %2107 = vst [vmem:[#allocation3 + $0x8] sm:$0xff] %v1957
    %2108 = vst [vmem:[#allocation3 + $0x10] sm:$0xff] %v2068
    %2109 = vst [vmem:[#allocation3 + $0x18] sm:$0xff] %v1961
    %2110 = vst [vmem:[#allocation3 + $0x20] sm:$0xff] %v1963
    %2111 = vst [vmem:[#allocation3 + $0x28] sm:$0xff] %v2073
    %2112 = vst [vmem:[#allocation3 + $0x30] sm:$0xff] %v1967
    %2113 = vst [vmem:[#allocation3 + $0x38] sm:$0xff] %v1969
    %2114 = vst [vmem:[#allocation3 + $0x40] sm:$0xff] %v2078
    %2115 = vst [vmem:[#allocation3 + $0x48] sm:$0xff] %v1973
    %2116 = vst [vmem:[#allocation3 + $0x50] sm:$0xff] %v1975
    %2117 = vst [vmem:[#allocation3 + $0x58] sm:$0xff] %v2083
    %2118 = vst [vmem:[#allocation3 + $0x60] sm:$0xff] %v1979
    %2119 = vst [vmem:[#allocation3 + $0x68] sm:$0xff] %v1981
    %2120 = vst [vmem:[#allocation3 + $0x70] sm:$0xff] %v2088
    %2121 = vst [vmem:[#allocation3 + $0x78] sm:$0xff] %v1985
    %2122 = vst [vmem:[#allocation3 + $0x80] sm:$0xff] %v1987
    %2123 = vst [vmem:[#allocation3 + $0x88] sm:$0xff] %v2093
    %2124 = vst [vmem:[#allocation3 + $0x90] sm:$0xff] %v1991
    %2125 = vst [vmem:[#allocation3 + $0x98] sm:$0xff] %v1993
    %2126 = vst [vmem:[#allocation3 + $0xa0] sm:$0xff] %v2098
    %2127 = vst [vmem:[#allocation3 + $0xa8] sm:$0xff] %v1997
    %2128 = vst [vmem:[#allocation3 + $0xb0] sm:$0xff] %v1999
    %2129 = vst [vmem:[#allocation3 + $0xb8] sm:$0xff] %v2103
    %v2130 = vld [vmem:[#allocation3] sm:$0xff]
    %v2131 = vld [vmem:[#allocation3 + $0x8] sm:$0xff]
    %v2132 = vld [vmem:[#allocation3 + $0x10] sm:$0xff]
    %2133 = vmatprep.subr.mxu0 %v1821
    %2134 = vmatpush1.msra.mxu0 %v1820
    %2135 = vmatprep.subr.mxu0 %v1824
    %2136 = vmatpush1.msra.mxu0 %v1823
    %2137 = vmatprep.subr.mxu0 %v1827
    %2138 = vmatpush1.msra.mxu0 %v1826
    %2139 = vmatprep.subr.mxu0 %v1830
    %2140 = vmatpush1.msra.mxu0 %v1829
    %2141 = vmatprep.subr.mxu0 %v1833
    %2142 = vmatpush1.msra.mxu0 %v1832
    %2143 = vmatprep.subr.mxu0 %v1836
    %2144 = vmatpush1.msra.mxu0 %v1835
    %2145 = vmatprep.subr.mxu0 %v1839
    %2146 = vmatpush1.msra.mxu0 %v1838
    %2147 = vmatprep.subr.mxu0 %v1842
    %2148 = vmatpush1.msra.mxu0 %v1841
    %2149 = vmatprep.subr.mxu0 %v1845
    %2150 = vmatpush1.msra.mxu0 %v1844
    %2151 = vmatprep.subr.mxu0 %v1848
    %2152 = vmatpush1.msra.mxu0 %v1847
    %2153 = vmatprep.subr.mxu0 %v1851
    %2154 = vmatpush1.msra.mxu0 %v1850
    %2155 = vmatprep.subr.mxu0 %v1854
    %2156 = vmatpush1.msra.mxu0 %v1853
    %2157 = vmatprep.subr.mxu0 %v1857
    %2158 = vmatpush1.msra.mxu0 %v1856
    %2159 = vmatprep.subr.mxu0 %v1860
    %2160 = vmatpush1.msra.mxu0 %v1859
    %2161 = vmatprep.subr.mxu0 %v1863
    %2162 = vmatpush1.msra.mxu0 %v1862
    %2163 = vmatprep.subr.mxu0 %v1866
    %2164 = vmatpush1.msra.mxu0 %v1865
    %2165 = vmatprep.subr.mxu0 0.0
    %2166 = vmatpush1.msra.mxu0 0.0
    %2167 = vmatprep.subr.mxu0 0.0
    %2168 = vmatpush1.msra.mxu0 0.0
    %2169 = vmatprep.subr.mxu0 0.0
    %2170 = vmatpush1.msra.mxu0 0.0
    %2171 = vmatprep.subr.mxu0 0.0
    %2172 = vmatpush1.msra.mxu0 0.0
    %2173 = vmatprep.subr.mxu0 0.0
    %2174 = vmatpush1.msra.mxu0 0.0
    %2175 = vmatprep.subr.mxu0 0.0
    %2176 = vmatpush1.msra.mxu0 0.0
    %2177 = vmatprep.subr.mxu0 0.0
    %2178 = vmatpush1.msra.mxu0 0.0
    %2179 = vmatprep.subr.mxu0 0.0
    %2180 = vmatpush1.msra.mxu0 0.0
    %2181 = vmatprep.subr.mxu0 0.0
    %2182 = vmatpush1.msra.mxu0 0.0
    %2183 = vmatprep.subr.mxu0 0.0
    %2184 = vmatpush1.msra.mxu0 0.0
    %2185 = vmatprep.subr.mxu0 0.0
    %2186 = vmatpush1.msra.mxu0 0.0
    %2187 = vmatprep.subr.mxu0 0.0
    %2188 = vmatpush1.msra.mxu0 0.0
    %2189 = vmatprep.subr.mxu0 0.0
    %2190 = vmatpush1.msra.mxu0 0.0
    %2191 = vmatprep.subr.mxu0 0.0
    %2192 = vmatpush1.msra.mxu0 0.0
    %2193 = vmatprep.subr.mxu0 0.0
    %2194 = vmatpush1.msra.mxu0 0.0
    %2195 = vmatprep.subr.mxu0 0.0
    %2196 = vmatpush1.msra.mxu0 0.0
    %2197 = vmatprep.mubr.f32.mxu0 0.0
    %2198 = vmatmul.mubr.f32.gmra.mrb[0].mxu0 0.0
    %v2199 = vpop.f32.mrb[0].mxu0
    %v2200 = vadd.f32 0.0, %v2199
    %v2201 = vpop.f32.mrb[0].mxu0
    %v2202 = vadd.f32 0.0, %v2201
    %2203 = vdwg.mxu0
    %2204 = vmatprep.subr.mxu0 0.0
    %2205 = vmatpush1.msra.mxu0 %v1822
    %2206 = vmatprep.subr.mxu0 0.0
    %2207 = vmatpush1.msra.mxu0 %v1825
    %2208 = vmatprep.subr.mxu0 0.0
    %2209 = vmatpush1.msra.mxu0 %v1828
    %2210 = vmatprep.subr.mxu0 0.0
    %2211 = vmatpush1.msra.mxu0 %v1831
    %2212 = vmatprep.subr.mxu0 0.0
    %2213 = vmatpush1.msra.mxu0 %v1834
    %2214 = vmatprep.subr.mxu0 0.0
    %2215 = vmatpush1.msra.mxu0 %v1837
    %2216 = vmatprep.subr.mxu0 0.0
    %2217 = vmatpush1.msra.mxu0 %v1840
    %2218 = vmatprep.subr.mxu0 0.0
    %2219 = vmatpush1.msra.mxu0 %v1843
    %2220 = vmatprep.subr.mxu0 0.0
    %2221 = vmatpush1.msra.mxu0 %v1846
    %2222 = vmatprep.subr.mxu0 0.0
    %2223 = vmatpush1.msra.mxu0 %v1849
    %2224 = vmatprep.subr.mxu0 0.0
    %2225 = vmatpush1.msra.mxu0 %v1852
    %2226 = vmatprep.subr.mxu0 0.0
    %2227 = vmatpush1.msra.mxu0 %v1855
    %2228 = vmatprep.subr.mxu0 0.0
    %2229 = vmatpush1.msra.mxu0 %v1858
    %2230 = vmatprep.subr.mxu0 0.0
    %2231 = vmatpush1.msra.mxu0 %v1861
    %2232 = vmatprep.subr.mxu0 0.0
    %2233 = vmatpush1.msra.mxu0 %v1864
    %2234 = vmatprep.subr.mxu0 0.0
    %2235 = vmatpush1.msra.mxu0 %v1867
    %2236 = vmatprep.subr.mxu0 0.0
    %2237 = vmatpush1.msra.mxu0 0.0
    %2238 = vmatprep.subr.mxu0 0.0
    %2239 = vmatpush1.msra.mxu0 0.0
    %2240 = vmatprep.subr.mxu0 0.0
    %2241 = vmatpush1.msra.mxu0 0.0
    %2242 = vmatprep.subr.mxu0 0.0
    %2243 = vmatpush1.msra.mxu0 0.0
    %2244 = vmatprep.subr.mxu0 0.0
    %2245 = vmatpush1.msra.mxu0 0.0
    %2246 = vmatprep.subr.mxu0 0.0
    %2247 = vmatpush1.msra.mxu0 0.0
    %2248 = vmatprep.subr.mxu0 0.0
    %2249 = vmatpush1.msra.mxu0 0.0
    %2250 = vmatprep.subr.mxu0 0.0
    %2251 = vmatpush1.msra.mxu0 0.0
    %2252 = vmatprep.subr.mxu0 0.0
    %2253 = vmatpush1.msra.mxu0 0.0
    %2254 = vmatprep.subr.mxu0 0.0
    %2255 = vmatpush1.msra.mxu0 0.0
    %2256 = vmatprep.subr.mxu0 0.0
    %2257 = vmatpush1.msra.mxu0 0.0
    %2258 = vmatprep.subr.mxu0 0.0
    %2259 = vmatpush1.msra.mxu0 0.0
    %2260 = vmatprep.subr.mxu0 0.0
    %2261 = vmatpush1.msra.mxu0 0.0
    %2262 = vmatprep.subr.mxu0 0.0
    %2263 = vmatpush1.msra.mxu0 0.0
    %2264 = vmatprep.subr.mxu0 0.0
    %2265 = vmatpush1.msra.mxu0 0.0
    %2266 = vmatprep.subr.mxu0 0.0
    %2267 = vmatpush1.msra.mxu0 0.0
    %2268 = vmatprep.mubr.f32.mxu0 0.0
    %2269 = vmatmul.mubr.f32.gmra.mrb[0].mxu0 0.0
    %v2270 = vpop.f32.mrb[0].mxu0
    %v2271 = vadd.f32 0.0, %v2270
    %v2272 = vpop.f32.mrb[0].mxu0
    %2273 = vdwg.mxu0
    %v2274 = vadd.f32 %v2130, %v2200
    %v2275 = vxor.u32 %v2274, 2147483648
    %v2276 = vmul.f32 %v2275, 1.442695
    %v2277 = vpow.pop %v2276
    %v2278 = vadd.f32 %v2277, 1.0
    %v2279 = vrcp.pop %v2278
    %v2280 = vmul.f32 1.0, %v2279
    %v2281 = vadd.f32 %v2131, %v2202
    %v2282 = vxor.u32 %v2281, 2147483648
    %v2283 = vmul.f32 %v2282, 1.442695
    %v2284 = vpow.pop %v2283
    %v2285 = vadd.f32 %v2284, 1.0
    %v2286 = vrcp.pop %v2285
    %v2287 = vmul.f32 1.0, %v2286
    %v2289 = vlaneseq
    %v2290 = vshrl.u32 %v2289, 7
    %v2291 = vsub.s32 0, %v2290
    %v2292 = vrot.slane %v1871, %v2291
    %v2294 = vadd.f32 %v2271, %v2292
    %v2295 = vmul.f32 %v2280, %v2294
    %v2296 = vadd.f32 %v2132, %v2295
    %v2297 = vtanh.pop %v2296
    %v2298 = vsub.f32 1.0, %v2287
    %v2299 = vmul.f32 %v2298, %v2297
    %v2300 = vmul.f32 %v2287, 0.0
    %v2301 = vadd.f32 %v2299, %v2300
    %2302 = vst [vmem:[#allocation2] sm:$0xff] %v2301
    %v2303 = vld [vmem:[#allocation3 + $0x18] sm:$0xff]
    %v2304 = vld [vmem:[#allocation3 + $0x20] sm:$0xff]
    %v2305 = vld [vmem:[#allocation3 + $0x28] sm:$0xff]
    %2306 = vmatprep.subr.mxu0 %v1821
    %2307 = vmatpush1.msra.mxu0 %v1820
    %2308 = vmatprep.subr.mxu0 %v1824
    %2309 = vmatpush1.msra.mxu0 %v1823
    %2310 = vmatprep.subr.mxu0 %v1827
    %2311 = vmatpush1.msra.mxu0 %v1826
    %2312 = vmatprep.subr.mxu0 %v1830
    %2313 = vmatpush1.msra.mxu0 %v1829
    %2314 = vmatprep.subr.mxu0 %v1833
    %2315 = vmatpush1.msra.mxu0 %v1832
    %2316 = vmatprep.subr.mxu0 %v1836
    %2317 = vmatpush1.msra.mxu0 %v1835
    %2318 = vmatprep.subr.mxu0 %v1839
    %2319 = vmatpush1.msra.mxu0 %v1838
    %2320 = vmatprep.subr.mxu0 %v1842
    %2321 = vmatpush1.msra.mxu0 %v1841
    %2322 = vmatprep.subr.mxu0 %v1845
    %2323 = vmatpush1.msra.mxu0 %v1844
    %2324 = vmatprep.subr.mxu0 %v1848
    %2325 = vmatpush1.msra.mxu0 %v1847
    %2326 = vmatprep.subr.mxu0 %v1851
    %2327 = vmatpush1.msra.mxu0 %v1850
    %2328 = vmatprep.subr.mxu0 %v1854
    %2329 = vmatpush1.msra.mxu0 %v1853
    %2330 = vmatprep.subr.mxu0 %v1857
    %2331 = vmatpush1.msra.mxu0 %v1856
    %2332 = vmatprep.subr.mxu0 %v1860
    %2333 = vmatpush1.msra.mxu0 %v1859
    %2334 = vmatprep.subr.mxu0 %v1863
    %2335 = vmatpush1.msra.mxu0 %v1862
    %2336 = vmatprep.subr.mxu0 %v1866
    %2337 = vmatpush1.msra.mxu0 %v1865
    %2338 = vmatprep.subr.mxu0 0.0
    %2339 = vmatpush1.msra.mxu0 0.0
    %2340 = vmatprep.subr.mxu0 0.0
    %2341 = vmatpush1.msra.mxu0 0.0
    %2342 = vmatprep.subr.mxu0 0.0
    %2343 = vmatpush1.msra.mxu0 0.0
    %2344 = vmatprep.subr.mxu0 0.0
    %2345 = vmatpush1.msra.mxu0 0.0
    %2346 = vmatprep.subr.mxu0 0.0
    %2347 = vmatpush1.msra.mxu0 0.0
    %2348 = vmatprep.subr.mxu0 0.0
    %2349 = vmatpush1.msra.mxu0 0.0
    %2350 = vmatprep.subr.mxu0 0.0
    %2351 = vmatpush1.msra.mxu0 0.0
    %2352 = vmatprep.subr.mxu0 0.0
    %2353 = vmatpush1.msra.mxu0 0.0
    %2354 = vmatprep.subr.mxu0 0.0
    %2355 = vmatpush1.msra.mxu0 0.0
    %2356 = vmatprep.subr.mxu0 0.0
    %2357 = vmatpush1.msra.mxu0 0.0
    %2358 = vmatprep.subr.mxu0 0.0
    %2359 = vmatpush1.msra.mxu0 0.0
    %2360 = vmatprep.subr.mxu0 0.0
    %2361 = vmatpush1.msra.mxu0 0.0
    %2362 = vmatprep.subr.mxu0 0.0
    %2363 = vmatpush1.msra.mxu0 0.0
    %2364 = vmatprep.subr.mxu0 0.0
    %2365 = vmatpush1.msra.mxu0 0.0
    %2366 = vmatprep.subr.mxu0 0.0
    %2367 = vmatpush1.msra.mxu0 0.0
    %2368 = vmatprep.subr.mxu0 0.0
    %2369 = vmatpush1.msra.mxu0 0.0
    %2370 = vmatprep.mubr.f32.mxu0 0.0
    %2371 = vmatmul.mubr.f32.gmra.mrb[0].mxu0 %v2301
    %v2372 = vpop.f32.mrb[0].mxu0
    %v2373 = vadd.f32 0.0, %v2372
    %v2374 = vpop.f32.mrb[0].mxu0
    %v2375 = vadd.f32 0.0, %v2374
    %2376 = vdwg.mxu0
    %2377 = vmatprep.subr.mxu0 0.0
    %2378 = vmatpush1.msra.mxu0 %v1822
    %2379 = vmatprep.subr.mxu0 0.0
    %2380 = vmatpush1.msra.mxu0 %v1825
    %2381 = vmatprep.subr.mxu0 0.0
    %2382 = vmatpush1.msra.mxu0 %v1828
    %2383 = vmatprep.subr.mxu0 0.0
    %2384 = vmatpush1.msra.mxu0 %v1831
    %2385 = vmatprep.subr.mxu0 0.0
    %2386 = vmatpush1.msra.mxu0 %v1834
    %2387 = vmatprep.subr.mxu0 0.0
    %2388 = vmatpush1.msra.mxu0 %v1837
    %2389 = vmatprep.subr.mxu0 0.0
    %2390 = vmatpush1.msra.mxu0 %v1840
    %2391 = vmatprep.subr.mxu0 0.0
    %2392 = vmatpush1.msra.mxu0 %v1843
    %2393 = vmatprep.subr.mxu0 0.0
    %2394 = vmatpush1.msra.mxu0 %v1846
    %2395 = vmatprep.subr.mxu0 0.0
    %2396 = vmatpush1.msra.mxu0 %v1849
    %2397 = vmatprep.subr.mxu0 0.0
    %2398 = vmatpush1.msra.mxu0 %v1852
    %2399 = vmatprep.subr.mxu0 0.0
    %2400 = vmatpush1.msra.mxu0 %v1855
    %2401 = vmatprep.subr.mxu0 0.0
    %2402 = vmatpush1.msra.mxu0 %v1858
    %2403 = vmatprep.subr.mxu0 0.0
    %2404 = vmatpush1.msra.mxu0 %v1861
    %2405 = vmatprep.subr.mxu0 0.0
    %2406 = vmatpush1.msra.mxu0 %v1864
    %2407 = vmatprep.subr.mxu0 0.0
    %2408 = vmatpush1.msra.mxu0 %v1867
    %2409 = vmatprep.subr.mxu0 0.0
    %2410 = vmatpush1.msra.mxu0 0.0
    %2411 = vmatprep.subr.mxu0 0.0
    %2412 = vmatpush1.msra.mxu0 0.0
    %2413 = vmatprep.subr.mxu0 0.0
    %2414 = vmatpush1.msra.mxu0 0.0
    %2415 = vmatprep.subr.mxu0 0.0
    %2416 = vmatpush1.msra.mxu0 0.0
    %2417 = vmatprep.subr.mxu0 0.0
    %2418 = vmatpush1.msra.mxu0 0.0
    %2419 = vmatprep.subr.mxu0 0.0
    %2420 = vmatpush1.msra.mxu0 0.0
    %2421 = vmatprep.subr.mxu0 0.0
    %2422 = vmatpush1.msra.mxu0 0.0
    %2423 = vmatprep.subr.mxu0 0.0
    %2424 = vmatpush1.msra.mxu0 0.0
    %2425 = vmatprep.subr.mxu0 0.0
    %2426 = vmatpush1.msra.mxu0 0.0
    %2427 = vmatprep.subr.mxu0 0.0
    %2428 = vmatpush1.msra.mxu0 0.0
    %2429 = vmatprep.subr.mxu0 0.0
    %2430 = vmatpush1.msra.mxu0 0.0
    %2431 = vmatprep.subr.mxu0 0.0
    %2432 = vmatpush1.msra.mxu0 0.0
    %2433 = vmatprep.subr.mxu0 0.0
    %2434 = vmatpush1.msra.mxu0 0.0
    %2435 = vmatprep.subr.mxu0 0.0
    %2436 = vmatpush1.msra.mxu0 0.0
    %2437 = vmatprep.subr.mxu0 0.0
    %2438 = vmatpush1.msra.mxu0 0.0
    %2439 = vmatprep.subr.mxu0 0.0
    %2440 = vmatpush1.msra.mxu0 0.0
    %2441 = vmatprep.mubr.f32.mxu0 0.0
    %2442 = vmatmul.mubr.f32.gmra.mrb[0].mxu0 %v2301
    %v2443 = vpop.f32.mrb[0].mxu0
    %v2444 = vadd.f32 0.0, %v2443
    %v2445 = vpop.f32.mrb[0].mxu0
    %2446 = vdwg.mxu0
    %v2447 = vadd.f32 %v2303, %v2373
    %v2448 = vxor.u32 %v2447, 2147483648
    %v2449 = vmul.f32 %v2448, 1.442695
    %v2450 = vpow.pop %v2449
    %v2451 = vadd.f32 %v2450, 1.0
    %v2452 = vrcp.pop %v2451
    %v2453 = vmul.f32 1.0, %v2452
    %v2454 = vadd.f32 %v2304, %v2375
    %v2455 = vxor.u32 %v2454, 2147483648
    %v2456 = vmul.f32 %v2455, 1.442695
    %v2457 = vpow.pop %v2456
    %v2458 = vadd.f32 %v2457, 1.0
    %v2459 = vrcp.pop %v2458
    %v2460 = vmul.f32 1.0, %v2459
    %v2461 = vadd.f32 %v2444, %v2292
    %v2462 = vmul.f32 %v2453, %v2461
    %v2463 = vadd.f32 %v2305, %v2462
    %v2464 = vtanh.pop %v2463
    %v2465 = vsub.f32 1.0, %v2460
    %v2466 = vmul.f32 %v2465, %v2464
    %v2467 = vmul.f32 %v2460, %v2301
    %v2468 = vadd.f32 %v2466, %v2467
    %2469 = vst [vmem:[#allocation2 + $0x8] sm:$0xff] %v2468
    %v2470 = vld [vmem:[#allocation3 + $0x30] sm:$0xff]
    %v2471 = vld [vmem:[#allocation3 + $0x38] sm:$0xff]
    %v2472 = vld [vmem:[#allocation3 + $0x40] sm:$0xff]
    %2473 = vmatprep.subr.mxu0 %v1821
    %2474 = vmatpush1.msra.mxu0 %v1820
    %2475 = vmatprep.subr.mxu0 %v1824
    %2476 = vmatpush1.msra.mxu0 %v1823
    %2477 = vmatprep.subr.mxu0 %v1827
    %2478 = vmatpush1.msra.mxu0 %v1826
    %2479 = vmatprep.subr.mxu0 %v1830
    %2480 = vmatpush1.msra.mxu0 %v1829
    %2481 = vmatprep.subr.mxu0 %v1833
    %2482 = vmatpush1.msra.mxu0 %v1832
    %2483 = vmatprep.subr.mxu0 %v1836
    %2484 = vmatpush1.msra.mxu0 %v1835
    %2485 = vmatprep.subr.mxu0 %v1839
    %2486 = vmatpush1.msra.mxu0 %v1838
    %2487 = vmatprep.subr.mxu0 %v1842
    %2488 = vmatpush1.msra.mxu0 %v1841
    %2489 = vmatprep.subr.mxu0 %v1845
    %2490 = vmatpush1.msra.mxu0 %v1844
    %2491 = vmatprep.subr.mxu0 %v1848
    %2492 = vmatpush1.msra.mxu0 %v1847
    %2493 = vmatprep.subr.mxu0 %v1851
    %2494 = vmatpush1.msra.mxu0 %v1850
    %2495 = vmatprep.subr.mxu0 %v1854
    %2496 = vmatpush1.msra.mxu0 %v1853
    %2497 = vmatprep.subr.mxu0 %v1857
    %2498 = vmatpush1.msra.mxu0 %v1856
    %2499 = vmatprep.subr.mxu0 %v1860
    %2500 = vmatpush1.msra.mxu0 %v1859
    %2501 = vmatprep.subr.mxu0 %v1863
    %2502 = vmatpush1.msra.mxu0 %v1862
    %2503 = vmatprep.subr.mxu0 %v1866
    %2504 = vmatpush1.msra.mxu0 %v1865
    %2505 = vmatprep.subr.mxu0 0.0
    %2506 = vmatpush1.msra.mxu0 0.0
    %2507 = vmatprep.subr.mxu0 0.0
    %2508 = vmatpush1.msra.mxu0 0.0
    %2509 = vmatprep.subr.mxu0 0.0
    %2510 = vmatpush1.msra.mxu0 0.0
    %2511 = vmatprep.subr.mxu0 0.0
    %2512 = vmatpush1.msra.mxu0 0.0
    %2513 = vmatprep.subr.mxu0 0.0
    %2514 = vmatpush1.msra.mxu0 0.0
    %2515 = vmatprep.subr.mxu0 0.0
    %2516 = vmatpush1.msra.mxu0 0.0
    %2517 = vmatprep.subr.mxu0 0.0
    %2518 = vmatpush1.msra.mxu0 0.0
    %2519 = vmatprep.subr.mxu0 0.0
    %2520 = vmatpush1.msra.mxu0 0.0
    %2521 = vmatprep.subr.mxu0 0.0
    %2522 = vmatpush1.msra.mxu0 0.0
    %2523 = vmatprep.subr.mxu0 0.0
    %2524 = vmatpush1.msra.mxu0 0.0
    %2525 = vmatprep.subr.mxu0 0.0
    %2526 = vmatpush1.msra.mxu0 0.0
    %2527 = vmatprep.subr.mxu0 0.0
    %2528 = vmatpush1.msra.mxu0 0.0
    %2529 = vmatprep.subr.mxu0 0.0
    %2530 = vmatpush1.msra.mxu0 0.0
    %2531 = vmatprep.subr.mxu0 0.0
    %2532 = vmatpush1.msra.mxu0 0.0
    %2533 = vmatprep.subr.mxu0 0.0
    %2534 = vmatpush1.msra.mxu0 0.0
    %2535 = vmatprep.subr.mxu0 0.0
    %2536 = vmatpush1.msra.mxu0 0.0
    %2537 = vmatprep.mubr.f32.mxu0 0.0
    %2538 = vmatmul.mubr.f32.gmra.mrb[0].mxu0 %v2468
    %v2539 = vpop.f32.mrb[0].mxu0
    %v2540 = vadd.f32 0.0, %v2539
    %v2541 = vpop.f32.mrb[0].mxu0
    %v2542 = vadd.f32 0.0, %v2541
    %2543 = vdwg.mxu0
    %2544 = vmatprep.subr.mxu0 0.0
    %2545 = vmatpush1.msra.mxu0 %v1822
    %2546 = vmatprep.subr.mxu0 0.0
    %2547 = vmatpush1.msra.mxu0 %v1825
    %2548 = vmatprep.subr.mxu0 0.0
    %2549 = vmatpush1.msra.mxu0 %v1828
    %2550 = vmatprep.subr.mxu0 0.0
    %2551 = vmatpush1.msra.mxu0 %v1831
    %2552 = vmatprep.subr.mxu0 0.0
    %2553 = vmatpush1.msra.mxu0 %v1834
    %2554 = vmatprep.subr.mxu0 0.0
    %2555 = vmatpush1.msra.mxu0 %v1837
    %2556 = vmatprep.subr.mxu0 0.0
    %2557 = vmatpush1.msra.mxu0 %v1840
    %2558 = vmatprep.subr.mxu0 0.0
    %2559 = vmatpush1.msra.mxu0 %v1843
    %2560 = vmatprep.subr.mxu0 0.0
    %2561 = vmatpush1.msra.mxu0 %v1846
    %2562 = vmatprep.subr.mxu0 0.0
    %2563 = vmatpush1.msra.mxu0 %v1849
    %2564 = vmatprep.subr.mxu0 0.0
    %2565 = vmatpush1.msra.mxu0 %v1852
    %2566 = vmatprep.subr.mxu0 0.0
    %2567 = vmatpush1.msra.mxu0 %v1855
    %2568 = vmatprep.subr.mxu0 0.0
    %2569 = vmatpush1.msra.mxu0 %v1858
    %2570 = vmatprep.subr.mxu0 0.0
    %2571 = vmatpush1.msra.mxu0 %v1861
    %2572 = vmatprep.subr.mxu0 0.0
    %2573 = vmatpush1.msra.mxu0 %v1864
    %2574 = vmatprep.subr.mxu0 0.0
    %2575 = vmatpush1.msra.mxu0 %v1867
    %2576 = vmatprep.subr.mxu0 0.0
    %2577 = vmatpush1.msra.mxu0 0.0
    %2578 = vmatprep.subr.mxu0 0.0
    %2579 = vmatpush1.msra.mxu0 0.0
    %2580 = vmatprep.subr.mxu0 0.0
    %2581 = vmatpush1.msra.mxu0 0.0
    %2582 = vmatprep.subr.mxu0 0.0
    %2583 = vmatpush1.msra.mxu0 0.0
    %2584 = vmatprep.subr.mxu0 0.0
    %2585 = vmatpush1.msra.mxu0 0.0
    %2586 = vmatprep.subr.mxu0 0.0
    %2587 = vmatpush1.msra.mxu0 0.0
    %2588 = vmatprep.subr.mxu0 0.0
    %2589 = vmatpush1.msra.mxu0 0.0
    %2590 = vmatprep.subr.mxu0 0.0
    %2591 = vmatpush1.msra.mxu0 0.0
    %2592 = vmatprep.subr.mxu0 0.0
    %2593 = vmatpush1.msra.mxu0 0.0
    %2594 = vmatprep.subr.mxu0 0.0
    %2595 = vmatpush1.msra.mxu0 0.0
    %2596 = vmatprep.subr.mxu0 0.0
    %2597 = vmatpush1.msra.mxu0 0.0
    %2598 = vmatprep.subr.mxu0 0.0
    %2599 = vmatpush1.msra.mxu0 0.0
    %2600 = vmatprep.subr.mxu0 0.0
    %2601 = vmatpush1.msra.mxu0 0.0
    %2602 = vmatprep.subr.mxu0 0.0
    %2603 = vmatpush1.msra.mxu0 0.0
    %2604 = vmatprep.subr.mxu0 0.0
    %2605 = vmatpush1.msra.mxu0 0.0
    %2606 = vmatprep.subr.mxu0 0.0
    %2607 = vmatpush1.msra.mxu0 0.0
    %2608 = vmatprep.mubr.f32.mxu0 0.0
    %2609 = vmatmul.mubr.f32.gmra.mrb[0].mxu0 %v2468
    %v2610 = vpop.f32.mrb[0].mxu0
    %v2611 = vadd.f32 0.0, %v2610
    %v2612 = vpop.f32.mrb[0].mxu0
    %2613 = vdwg.mxu0
    %v2614 = vadd.f32 %v2470, %v2540
    %v2615 = vxor.u32 %v2614, 2147483648
    %v2616 = vmul.f32 %v2615, 1.442695
    %v2617 = vpow.pop %v2616
    %v2618 = vadd.f32 %v2617, 1.0
    %v2619 = vrcp.pop %v2618
    %v2620 = vmul.f32 1.0, %v2619
    %v2621 = vadd.f32 %v2471, %v2542
    %v2622 = vxor.u32 %v2621, 2147483648
    %v2623 = vmul.f32 %v2622, 1.442695
    %v2624 = vpow.pop %v2623
    %v2625 = vadd.f32 %v2624, 1.0
    %v2626 = vrcp.pop %v2625
    %v2627 = vmul.f32 1.0, %v2626
    %v2628 = vadd.f32 %v2611, %v2292
    %v2629 = vmul.f32 %v2620, %v2628
    %v2630 = vadd.f32 %v2472, %v2629
    %v2631 = vtanh.pop %v2630
    %v2632 = vsub.f32 1.0, %v2627
    %v2633 = vmul.f32 %v2632, %v2631
    %v2634 = vmul.f32 %v2627, %v2468
    %v2635 = vadd.f32 %v2633, %v2634
    %2636 = vst [vmem:[#allocation2 + $0x10] sm:$0xff] %v2635
    %v2637 = vld [vmem:[#allocation3 + $0x48] sm:$0xff]
    %v2638 = vld [vmem:[#allocation3 + $0x50] sm:$0xff]
    %v2639 = vld [vmem:[#allocation3 + $0x58] sm:$0xff]
    %2640 = vmatprep.subr.mxu0 %v1821
    %2641 = vmatpush1.msra.mxu0 %v1820
    %2642 = vmatprep.subr.mxu0 %v1824
    %2643 = vmatpush1.msra.mxu0 %v1823
    %2644 = vmatprep.subr.mxu0 %v1827
    %2645 = vmatpush1.msra.mxu0 %v1826
    %2646 = vmatprep.subr.mxu0 %v1830
    %2647 = vmatpush1.msra.mxu0 %v1829
    %2648 = vmatprep.subr.mxu0 %v1833
    %2649 = vmatpush1.msra.mxu0 %v1832
    %2650 = vmatprep.subr.mxu0 %v1836
    %2651 = vmatpush1.msra.mxu0 %v1835
    %2652 = vmatprep.subr.mxu0 %v1839
    %2653 = vmatpush1.msra.mxu0 %v1838
    %2654 = vmatprep.subr.mxu0 %v1842
    %2655 = vmatpush1.msra.mxu0 %v1841
    %2656 = vmatprep.subr.mxu0 %v1845
    %2657 = vmatpush1.msra.mxu0 %v1844
    %2658 = vmatprep.subr.mxu0 %v1848
    %2659 = vmatpush1.msra.mxu0 %v1847
    %2660 = vmatprep.subr.mxu0 %v1851
    %2661 = vmatpush1.msra.mxu0 %v1850
    %2662 = vmatprep.subr.mxu0 %v1854
    %2663 = vmatpush1.msra.mxu0 %v1853
    %2664 = vmatprep.subr.mxu0 %v1857
    %2665 = vmatpush1.msra.mxu0 %v1856
    %2666 = vmatprep.subr.mxu0 %v1860
    %2667 = vmatpush1.msra.mxu0 %v1859
    %2668 = vmatprep.subr.mxu0 %v1863
    %2669 = vmatpush1.msra.mxu0 %v1862
    %2670 = vmatprep.subr.mxu0 %v1866
    %2671 = vmatpush1.msra.mxu0 %v1865
    %2672 = vmatprep.subr.mxu0 0.0
    %2673 = vmatpush1.msra.mxu0 0.0
    %2674 = vmatprep.subr.mxu0 0.0
    %2675 = vmatpush1.msra.mxu0 0.0
    %2676 = vmatprep.subr.mxu0 0.0
    %2677 = vmatpush1.msra.mxu0 0.0
    %2678 = vmatprep.subr.mxu0 0.0
    %2679 = vmatpush1.msra.mxu0 0.0
    %2680 = vmatprep.subr.mxu0 0.0
    %2681 = vmatpush1.msra.mxu0 0.0
    %2682 = vmatprep.subr.mxu0 0.0
    %2683 = vmatpush1.msra.mxu0 0.0
    %2684 = vmatprep.subr.mxu0 0.0
    %2685 = vmatpush1.msra.mxu0 0.0
    %2686 = vmatprep.subr.mxu0 0.0
    %2687 = vmatpush1.msra.mxu0 0.0
    %2688 = vmatprep.subr.mxu0 0.0
    %2689 = vmatpush1.msra.mxu0 0.0
    %2690 = vmatprep.subr.mxu0 0.0
    %2691 = vmatpush1.msra.mxu0 0.0
    %2692 = vmatprep.subr.mxu0 0.0
    %2693 = vmatpush1.msra.mxu0 0.0
    %2694 = vmatprep.subr.mxu0 0.0
    %2695 = vmatpush1.msra.mxu0 0.0
    %2696 = vmatprep.subr.mxu0 0.0
    %2697 = vmatpush1.msra.mxu0 0.0
    %2698 = vmatprep.subr.mxu0 0.0
    %2699 = vmatpush1.msra.mxu0 0.0
    %2700 = vmatprep.subr.mxu0 0.0
    %2701 = vmatpush1.msra.mxu0 0.0
    %2702 = vmatprep.subr.mxu0 0.0
    %2703 = vmatpush1.msra.mxu0 0.0
    %2704 = vmatprep.mubr.f32.mxu0 0.0
    %2705 = vmatmul.mubr.f32.gmra.mrb[0].mxu0 %v2635
    %v2706 = vpop.f32.mrb[0].mxu0
    %v2707 = vadd.f32 0.0, %v2706
    %v2708 = vpop.f32.mrb[0].mxu0
    %v2709 = vadd.f32 0.0, %v2708
    %2710 = vdwg.mxu0
    %2711 = vmatprep.subr.mxu0 0.0
    %2712 = vmatpush1.msra.mxu0 %v1822
    %2713 = vmatprep.subr.mxu0 0.0
    %2714 = vmatpush1.msra.mxu0 %v1825
    %2715 = vmatprep.subr.mxu0 0.0
    %2716 = vmatpush1.msra.mxu0 %v1828
    %2717 = vmatprep.subr.mxu0 0.0
    %2718 = vmatpush1.msra.mxu0 %v1831
    %2719 = vmatprep.subr.mxu0 0.0
    %2720 = vmatpush1.msra.mxu0 %v1834
    %2721 = vmatprep.subr.mxu0 0.0
    %2722 = vmatpush1.msra.mxu0 %v1837
    %2723 = vmatprep.subr.mxu0 0.0
    %2724 = vmatpush1.msra.mxu0 %v1840
    %2725 = vmatprep.subr.mxu0 0.0
    %2726 = vmatpush1.msra.mxu0 %v1843
    %2727 = vmatprep.subr.mxu0 0.0
    %2728 = vmatpush1.msra.mxu0 %v1846
    %2729 = vmatprep.subr.mxu0 0.0
    %2730 = vmatpush1.msra.mxu0 %v1849
    %2731 = vmatprep.subr.mxu0 0.0
    %2732 = vmatpush1.msra.mxu0 %v1852
    %2733 = vmatprep.subr.mxu0 0.0
    %2734 = vmatpush1.msra.mxu0 %v1855
    %2735 = vmatprep.subr.mxu0 0.0
    %2736 = vmatpush1.msra.mxu0 %v1858
    %2737 = vmatprep.subr.mxu0 0.0
    %2738 = vmatpush1.msra.mxu0 %v1861
    %2739 = vmatprep.subr.mxu0 0.0
    %2740 = vmatpush1.msra.mxu0 %v1864
    %2741 = vmatprep.subr.mxu0 0.0
    %2742 = vmatpush1.msra.mxu0 %v1867
    %2743 = vmatprep.subr.mxu0 0.0
    %2744 = vmatpush1.msra.mxu0 0.0
    %2745 = vmatprep.subr.mxu0 0.0
    %2746 = vmatpush1.msra.mxu0 0.0
    %2747 = vmatprep.subr.mxu0 0.0
    %2748 = vmatpush1.msra.mxu0 0.0
    %2749 = vmatprep.subr.mxu0 0.0
    %2750 = vmatpush1.msra.mxu0 0.0
    %2751 = vmatprep.subr.mxu0 0.0
    %2752 = vmatpush1.msra.mxu0 0.0
    %2753 = vmatprep.subr.mxu0 0.0
    %2754 = vmatpush1.msra.mxu0 0.0
    %2755 = vmatprep.subr.mxu0 0.0
    %2756 = vmatpush1.msra.mxu0 0.0
    %2757 = vmatprep.subr.mxu0 0.0
    %2758 = vmatpush1.msra.mxu0 0.0
    %2759 = vmatprep.subr.mxu0 0.0
    %2760 = vmatpush1.msra.mxu0 0.0
    %2761 = vmatprep.subr.mxu0 0.0
    %2762 = vmatpush1.msra.mxu0 0.0
    %2763 = vmatprep.subr.mxu0 0.0
    %2764 = vmatpush1.msra.mxu0 0.0
    %2765 = vmatprep.subr.mxu0 0.0
    %2766 = vmatpush1.msra.mxu0 0.0
    %2767 = vmatprep.subr.mxu0 0.0
    %2768 = vmatpush1.msra.mxu0 0.0
    %2769 = vmatprep.subr.mxu0 0.0
    %2770 = vmatpush1.msra.mxu0 0.0
    %2771 = vmatprep.subr.mxu0 0.0
    %2772 = vmatpush1.msra.mxu0 0.0
    %2773 = vmatprep.subr.mxu0 0.0
    %2774 = vmatpush1.msra.mxu0 0.0
    %2775 = vmatprep.mubr.f32.mxu0 0.0
    %2776 = vmatmul.mubr.f32.gmra.mrb[0].mxu0 %v2635
    %v2777 = vpop.f32.mrb[0].mxu0
    %v2778 = vadd.f32 0.0, %v2777
    %v2779 = vpop.f32.mrb[0].mxu0
    %2780 = vdwg.mxu0
    %v2781 = vadd.f32 %v2637, %v2707
    %v2782 = vxor.u32 %v2781, 2147483648
    %v2783 = vmul.f32 %v2782, 1.442695
    %v2784 = vpow.pop %v2783
    %v2785 = vadd.f32 %v2784, 1.0
    %v2786 = vrcp.pop %v2785
    %v2787 = vmul.f32 1.0, %v2786
    %v2788 = vadd.f32 %v2638, %v2709
    %v2789 = vxor.u32 %v2788, 2147483648
    %v2790 = vmul.f32 %v2789, 1.442695
    %v2791 = vpow.pop %v2790
    %v2792 = vadd.f32 %v2791, 1.0
    %v2793 = vrcp.pop %v2792
    %v2794 = vmul.f32 1.0, %v2793
    %v2795 = vadd.f32 %v2778, %v2292
    %v2796 = vmul.f32 %v2787, %v2795
    %v2797 = vadd.f32 %v2639, %v2796
    %v2798 = vtanh.pop %v2797
    %v2799 = vsub.f32 1.0, %v2794
    %v2800 = vmul.f32 %v2799, %v2798
    %v2801 = vmul.f32 %v2794, %v2635
    %v2802 = vadd.f32 %v2800, %v2801
    %2803 = vst [vmem:[#allocation2 + $0x18] sm:$0xff] %v2802
    %v2804 = vld [vmem:[#allocation3 + $0x60] sm:$0xff]
    %v2805 = vld [vmem:[#allocation3 + $0x68] sm:$0xff]
    %v2806 = vld [vmem:[#allocation3 + $0x70] sm:$0xff]
    %2807 = vmatprep.subr.mxu0 %v1821
    %2808 = vmatpush1.msra.mxu0 %v1820
    %2809 = vmatprep.subr.mxu0 %v1824
    %2810 = vmatpush1.msra.mxu0 %v1823
    %2811 = vmatprep.subr.mxu0 %v1827
    %2812 = vmatpush1.msra.mxu0 %v1826
    %2813 = vmatprep.subr.mxu0 %v1830
    %2814 = vmatpush1.msra.mxu0 %v1829
    %2815 = vmatprep.subr.mxu0 %v1833
    %2816 = vmatpush1.msra.mxu0 %v1832
    %2817 = vmatprep.subr.mxu0 %v1836
    %2818 = vmatpush1.msra.mxu0 %v1835
    %2819 = vmatprep.subr.mxu0 %v1839
    %2820 = vmatpush1.msra.mxu0 %v1838
    %2821 = vmatprep.subr.mxu0 %v1842
    %2822 = vmatpush1.msra.mxu0 %v1841
    %2823 = vmatprep.subr.mxu0 %v1845
    %2824 = vmatpush1.msra.mxu0 %v1844
    %2825 = vmatprep.subr.mxu0 %v1848
    %2826 = vmatpush1.msra.mxu0 %v1847
    %2827 = vmatprep.subr.mxu0 %v1851
    %2828 = vmatpush1.msra.mxu0 %v1850
    %2829 = vmatprep.subr.mxu0 %v1854
    %2830 = vmatpush1.msra.mxu0 %v1853
    %2831 = vmatprep.subr.mxu0 %v1857
    %2832 = vmatpush1.msra.mxu0 %v1856
    %2833 = vmatprep.subr.mxu0 %v1860
    %2834 = vmatpush1.msra.mxu0 %v1859
    %2835 = vmatprep.subr.mxu0 %v1863
    %2836 = vmatpush1.msra.mxu0 %v1862
    %2837 = vmatprep.subr.mxu0 %v1866
    %2838 = vmatpush1.msra.mxu0 %v1865
    %2839 = vmatprep.subr.mxu0 0.0
    %2840 = vmatpush1.msra.mxu0 0.0
    %2841 = vmatprep.subr.mxu0 0.0
    %2842 = vmatpush1.msra.mxu0 0.0
    %2843 = vmatprep.subr.mxu0 0.0
    %2844 = vmatpush1.msra.mxu0 0.0
    %2845 = vmatprep.subr.mxu0 0.0
    %2846 = vmatpush1.msra.mxu0 0.0
    %2847 = vmatprep.subr.mxu0 0.0
    %2848 = vmatpush1.msra.mxu0 0.0
    %2849 = vmatprep.subr.mxu0 0.0
    %2850 = vmatpush1.msra.mxu0 0.0
    %2851 = vmatprep.subr.mxu0 0.0
    %2852 = vmatpush1.msra.mxu0 0.0
    %2853 = vmatprep.subr.mxu0 0.0
    %2854 = vmatpush1.msra.mxu0 0.0
    %2855 = vmatprep.subr.mxu0 0.0
    %2856 = vmatpush1.msra.mxu0 0.0
    %2857 = vmatprep.subr.mxu0 0.0
    %2858 = vmatpush1.msra.mxu0 0.0
    %2859 = vmatprep.subr.mxu0 0.0
    %2860 = vmatpush1.msra.mxu0 0.0
    %2861 = vmatprep.subr.mxu0 0.0
    %2862 = vmatpush1.msra.mxu0 0.0
    %2863 = vmatprep.subr.mxu0 0.0
    %2864 = vmatpush1.msra.mxu0 0.0
    %2865 = vmatprep.subr.mxu0 0.0
    %2866 = vmatpush1.msra.mxu0 0.0
    %2867 = vmatprep.subr.mxu0 0.0
    %2868 = vmatpush1.msra.mxu0 0.0
    %2869 = vmatprep.subr.mxu0 0.0
    %2870 = vmatpush1.msra.mxu0 0.0
    %2871 = vmatprep.mubr.f32.mxu0 0.0
    %2872 = vmatmul.mubr.f32.gmra.mrb[0].mxu0 %v2802
    %v2873 = vpop.f32.mrb[0].mxu0
    %v2874 = vadd.f32 0.0, %v2873
    %v2875 = vpop.f32.mrb[0].mxu0
    %v2876 = vadd.f32 0.0, %v2875
    %2877 = vdwg.mxu0
    %2878 = vmatprep.subr.mxu0 0.0
    %2879 = vmatpush1.msra.mxu0 %v1822
    %2880 = vmatprep.subr.mxu0 0.0
    %2881 = vmatpush1.msra.mxu0 %v1825
    %2882 = vmatprep.subr.mxu0 0.0
    %2883 = vmatpush1.msra.mxu0 %v1828
    %2884 = vmatprep.subr.mxu0 0.0
    %2885 = vmatpush1.msra.mxu0 %v1831
    %2886 = vmatprep.subr.mxu0 0.0
    %2887 = vmatpush1.msra.mxu0 %v1834
    %2888 = vmatprep.subr.mxu0 0.0
    %2889 = vmatpush1.msra.mxu0 %v1837
    %2890 = vmatprep.subr.mxu0 0.0
    %2891 = vmatpush1.msra.mxu0 %v1840
    %2892 = vmatprep.subr.mxu0 0.0
    %2893 = vmatpush1.msra.mxu0 %v1843
    %2894 = vmatprep.subr.mxu0 0.0
    %2895 = vmatpush1.msra.mxu0 %v1846
    %2896 = vmatprep.subr.mxu0 0.0
    %2897 = vmatpush1.msra.mxu0 %v1849
    %2898 = vmatprep.subr.mxu0 0.0
    %2899 = vmatpush1.msra.mxu0 %v1852
    %2900 = vmatprep.subr.mxu0 0.0
    %2901 = vmatpush1.msra.mxu0 %v1855
    %2902 = vmatprep.subr.mxu0 0.0
    %2903 = vmatpush1.msra.mxu0 %v1858
    %2904 = vmatprep.subr.mxu0 0.0
    %2905 = vmatpush1.msra.mxu0 %v1861
    %2906 = vmatprep.subr.mxu0 0.0
    %2907 = vmatpush1.msra.mxu0 %v1864
    %2908 = vmatprep.subr.mxu0 0.0
    %2909 = vmatpush1.msra.mxu0 %v1867
    %2910 = vmatprep.subr.mxu0 0.0
    %2911 = vmatpush1.msra.mxu0 0.0
    %2912 = vmatprep.subr.mxu0 0.0
    %2913 = vmatpush1.msra.mxu0 0.0
    %2914 = vmatprep.subr.mxu0 0.0
    %2915 = vmatpush1.msra.mxu0 0.0
    %2916 = vmatprep.subr.mxu0 0.0
    %2917 = vmatpush1.msra.mxu0 0.0
    %2918 = vmatprep.subr.mxu0 0.0
    %2919 = vmatpush1.msra.mxu0 0.0
    %2920 = vmatprep.subr.mxu0 0.0
    %2921 = vmatpush1.msra.mxu0 0.0
    %2922 = vmatprep.subr.mxu0 0.0
    %2923 = vmatpush1.msra.mxu0 0.0
    %2924 = vmatprep.subr.mxu0 0.0
    %2925 = vmatpush1.msra.mxu0 0.0
    %2926 = vmatprep.subr.mxu0 0.0
    %2927 = vmatpush1.msra.mxu0 0.0
    %2928 = vmatprep.subr.mxu0 0.0
    %2929 = vmatpush1.msra.mxu0 0.0
    %2930 = vmatprep.subr.mxu0 0.0
    %2931 = vmatpush1.msra.mxu0 0.0
    %2932 = vmatprep.subr.mxu0 0.0
    %2933 = vmatpush1.msra.mxu0 0.0
    %2934 = vmatprep.subr.mxu0 0.0
    %2935 = vmatpush1.msra.mxu0 0.0
    %2936 = vmatprep.subr.mxu0 0.0
    %2937 = vmatpush1.msra.mxu0 0.0
    %2938 = vmatprep.subr.mxu0 0.0
    %2939 = vmatpush1.msra.mxu0 0.0
    %2940 = vmatprep.subr.mxu0 0.0
    %2941 = vmatpush1.msra.mxu0 0.0
    %2942 = vmatprep.mubr.f32.mxu0 0.0
    %2943 = vmatmul.mubr.f32.gmra.mrb[0].mxu0 %v2802
    %v2944 = vpop.f32.mrb[0].mxu0
    %v2945 = vadd.f32 0.0, %v2944
    %v2946 = vpop.f32.mrb[0].mxu0
    %2947 = vdwg.mxu0
    %v2948 = vadd.f32 %v2804, %v2874
    %v2949 = vxor.u32 %v2948, 2147483648
    %v2950 = vmul.f32 %v2949, 1.442695
    %v2951 = vpow.pop %v2950
    %v2952 = vadd.f32 %v2951, 1.0
    %v2953 = vrcp.pop %v2952
    %v2954 = vmul.f32 1.0, %v2953
    %v2955 = vadd.f32 %v2805, %v2876
    %v2956 = vxor.u32 %v2955, 2147483648
    %v2957 = vmul.f32 %v2956, 1.442695
    %v2958 = vpow.pop %v2957
    %v2959 = vadd.f32 %v2958, 1.0
    %v2960 = vrcp.pop %v2959
    %v2961 = vmul.f32 1.0, %v2960
    %v2962 = vadd.f32 %v2945, %v2292
    %v2963 = vmul.f32 %v2954, %v2962
    %v2964 = vadd.f32 %v2806, %v2963
    %v2965 = vtanh.pop %v2964
    %v2966 = vsub.f32 1.0, %v2961
    %v2967 = vmul.f32 %v2966, %v2965
    %v2968 = vmul.f32 %v2961, %v2802
    %v2969 = vadd.f32 %v2967, %v2968
    %2970 = vst [vmem:[#allocation2 + $0x20] sm:$0xff] %v2969
    %v2971 = vld [vmem:[#allocation3 + $0x78] sm:$0xff]
    %v2972 = vld [vmem:[#allocation3 + $0x80] sm:$0xff]
    %v2973 = vld [vmem:[#allocation3 + $0x88] sm:$0xff]
    %2974 = vmatprep.subr.mxu0 %v1821
    %2975 = vmatpush1.msra.mxu0 %v1820
    %2976 = vmatprep.subr.mxu0 %v1824
    %2977 = vmatpush1.msra.mxu0 %v1823
    %2978 = vmatprep.subr.mxu0 %v1827
    %2979 = vmatpush1.msra.mxu0 %v1826
    %2980 = vmatprep.subr.mxu0 %v1830
    %2981 = vmatpush1.msra.mxu0 %v1829
    %2982 = vmatprep.subr.mxu0 %v1833
    %2983 = vmatpush1.msra.mxu0 %v1832
    %2984 = vmatprep.subr.mxu0 %v1836
    %2985 = vmatpush1.msra.mxu0 %v1835
    %2986 = vmatprep.subr.mxu0 %v1839
    %2987 = vmatpush1.msra.mxu0 %v1838
    %2988 = vmatprep.subr.mxu0 %v1842
    %2989 = vmatpush1.msra.mxu0 %v1841
    %2990 = vmatprep.subr.mxu0 %v1845
    %2991 = vmatpush1.msra.mxu0 %v1844
    %2992 = vmatprep.subr.mxu0 %v1848
    %2993 = vmatpush1.msra.mxu0 %v1847
    %2994 = vmatprep.subr.mxu0 %v1851
    %2995 = vmatpush1.msra.mxu0 %v1850
    %2996 = vmatprep.subr.mxu0 %v1854
    %2997 = vmatpush1.msra.mxu0 %v1853
    %2998 = vmatprep.subr.mxu0 %v1857
    %2999 = vmatpush1.msra.mxu0 %v1856
    %3000 = vmatprep.subr.mxu0 %v1860
    %3001 = vmatpush1.msra.mxu0 %v1859
    %3002 = vmatprep.subr.mxu0 %v1863
    %3003 = vmatpush1.msra.mxu0 %v1862
    %3004 = vmatprep.subr.mxu0 %v1866
    %3005 = vmatpush1.msra.mxu0 %v1865
    %3006 = vmatprep.subr.mxu0 0.0
    %3007 = vmatpush1.msra.mxu0 0.0
    %3008 = vmatprep.subr.mxu0 0.0
    %3009 = vmatpush1.msra.mxu0 0.0
    %3010 = vmatprep.subr.mxu0 0.0
    %3011 = vmatpush1.msra.mxu0 0.0
    %3012 = vmatprep.subr.mxu0 0.0
    %3013 = vmatpush1.msra.mxu0 0.0
    %3014 = vmatprep.subr.mxu0 0.0
    %3015 = vmatpush1.msra.mxu0 0.0
    %3016 = vmatprep.subr.mxu0 0.0
    %3017 = vmatpush1.msra.mxu0 0.0
    %3018 = vmatprep.subr.mxu0 0.0
    %3019 = vmatpush1.msra.mxu0 0.0
    %3020 = vmatprep.subr.mxu0 0.0
    %3021 = vmatpush1.msra.mxu0 0.0
    %3022 = vmatprep.subr.mxu0 0.0
    %3023 = vmatpush1.msra.mxu0 0.0
    %3024 = vmatprep.subr.mxu0 0.0
    %3025 = vmatpush1.msra.mxu0 0.0
    %3026 = vmatprep.subr.mxu0 0.0
    %3027 = vmatpush1.msra.mxu0 0.0
    %3028 = vmatprep.subr.mxu0 0.0
    %3029 = vmatpush1.msra.mxu0 0.0
    %3030 = vmatprep.subr.mxu0 0.0
    %3031 = vmatpush1.msra.mxu0 0.0
    %3032 = vmatprep.subr.mxu0 0.0
    %3033 = vmatpush1.msra.mxu0 0.0
    %3034 = vmatprep.subr.mxu0 0.0
    %3035 = vmatpush1.msra.mxu0 0.0
    %3036 = vmatprep.subr.mxu0 0.0
    %3037 = vmatpush1.msra.mxu0 0.0
    %3038 = vmatprep.mubr.f32.mxu0 0.0
    %3039 = vmatmul.mubr.f32.gmra.mrb[0].mxu0 %v2969
    %v3040 = vpop.f32.mrb[0].mxu0
    %v3041 = vadd.f32 0.0, %v3040
    %v3042 = vpop.f32.mrb[0].mxu0
    %v3043 = vadd.f32 0.0, %v3042
    %3044 = vdwg.mxu0
    %3045 = vmatprep.subr.mxu0 0.0
    %3046 = vmatpush1.msra.mxu0 %v1822
    %3047 = vmatprep.subr.mxu0 0.0
    %3048 = vmatpush1.msra.mxu0 %v1825
    %3049 = vmatprep.subr.mxu0 0.0
    %3050 = vmatpush1.msra.mxu0 %v1828
    %3051 = vmatprep.subr.mxu0 0.0
    %3052 = vmatpush1.msra.mxu0 %v1831
    %3053 = vmatprep.subr.mxu0 0.0
    %3054 = vmatpush1.msra.mxu0 %v1834
    %3055 = vmatprep.subr.mxu0 0.0
    %3056 = vmatpush1.msra.mxu0 %v1837
    %3057 = vmatprep.subr.mxu0 0.0
    %3058 = vmatpush1.msra.mxu0 %v1840
    %3059 = vmatprep.subr.mxu0 0.0
    %3060 = vmatpush1.msra.mxu0 %v1843
    %3061 = vmatprep.subr.mxu0 0.0
    %3062 = vmatpush1.msra.mxu0 %v1846
    %3063 = vmatprep.subr.mxu0 0.0
    %3064 = vmatpush1.msra.mxu0 %v1849
    %3065 = vmatprep.subr.mxu0 0.0
    %3066 = vmatpush1.msra.mxu0 %v1852
    %3067 = vmatprep.subr.mxu0 0.0
    %3068 = vmatpush1.msra.mxu0 %v1855
    %3069 = vmatprep.subr.mxu0 0.0
    %3070 = vmatpush1.msra.mxu0 %v1858
    %3071 = vmatprep.subr.mxu0 0.0
    %3072 = vmatpush1.msra.mxu0 %v1861
    %3073 = vmatprep.subr.mxu0 0.0
    %3074 = vmatpush1.msra.mxu0 %v1864
    %3075 = vmatprep.subr.mxu0 0.0
    %3076 = vmatpush1.msra.mxu0 %v1867
    %3077 = vmatprep.subr.mxu0 0.0
    %3078 = vmatpush1.msra.mxu0 0.0
    %3079 = vmatprep.subr.mxu0 0.0
    %3080 = vmatpush1.msra.mxu0 0.0
    %3081 = vmatprep.subr.mxu0 0.0
    %3082 = vmatpush1.msra.mxu0 0.0
    %3083 = vmatprep.subr.mxu0 0.0
    %3084 = vmatpush1.msra.mxu0 0.0
    %3085 = vmatprep.subr.mxu0 0.0
    %3086 = vmatpush1.msra.mxu0 0.0
    %3087 = vmatprep.subr.mxu0 0.0
    %3088 = vmatpush1.msra.mxu0 0.0
    %3089 = vmatprep.subr.mxu0 0.0
    %3090 = vmatpush1.msra.mxu0 0.0
    %3091 = vmatprep.subr.mxu0 0.0
    %3092 = vmatpush1.msra.mxu0 0.0
    %3093 = vmatprep.subr.mxu0 0.0
    %3094 = vmatpush1.msra.mxu0 0.0
    %3095 = vmatprep.subr.mxu0 0.0
    %3096 = vmatpush1.msra.mxu0 0.0
    %3097 = vmatprep.subr.mxu0 0.0
    %3098 = vmatpush1.msra.mxu0 0.0
    %3099 = vmatprep.subr.mxu0 0.0
    %3100 = vmatpush1.msra.mxu0 0.0
    %3101 = vmatprep.subr.mxu0 0.0
    %3102 = vmatpush1.msra.mxu0 0.0
    %3103 = vmatprep.subr.mxu0 0.0
    %3104 = vmatpush1.msra.mxu0 0.0
    %3105 = vmatprep.subr.mxu0 0.0
    %3106 = vmatpush1.msra.mxu0 0.0
    %3107 = vmatprep.subr.mxu0 0.0
    %3108 = vmatpush1.msra.mxu0 0.0
    %3109 = vmatprep.mubr.f32.mxu0 0.0
    %3110 = vmatmul.mubr.f32.gmra.mrb[0].mxu0 %v2969
    %v3111 = vpop.f32.mrb[0].mxu0
    %v3112 = vadd.f32 0.0, %v3111
    %v3113 = vpop.f32.mrb[0].mxu0
    %3114 = vdwg.mxu0
    %v3115 = vadd.f32 %v2971, %v3041
    %v3116 = vxor.u32 %v3115, 2147483648
    %v3117 = vmul.f32 %v3116, 1.442695
    %v3118 = vpow.pop %v3117
    %v3119 = vadd.f32 %v3118, 1.0
    %v3120 = vrcp.pop %v3119
    %v3121 = vmul.f32 1.0, %v3120
    %v3122 = vadd.f32 %v2972, %v3043
    %v3123 = vxor.u32 %v3122, 2147483648
    %v3124 = vmul.f32 %v3123, 1.442695
    %v3125 = vpow.pop %v3124
    %v3126 = vadd.f32 %v3125, 1.0
    %v3127 = vrcp.pop %v3126
    %v3128 = vmul.f32 1.0, %v3127
    %v3129 = vadd.f32 %v3112, %v2292
    %v3130 = vmul.f32 %v3121, %v3129
    %v3131 = vadd.f32 %v2973, %v3130
    %v3132 = vtanh.pop %v3131
    %v3133 = vsub.f32 1.0, %v3128
    %v3134 = vmul.f32 %v3133, %v3132
    %v3135 = vmul.f32 %v3128, %v2969
    %v3136 = vadd.f32 %v3134, %v3135
    %3137 = vst [vmem:[#allocation2 + $0x28] sm:$0xff] %v3136
    %v3138 = vld [vmem:[#allocation3 + $0x90] sm:$0xff]
    %v3139 = vld [vmem:[#allocation3 + $0x98] sm:$0xff]
    %v3140 = vld [vmem:[#allocation3 + $0xa0] sm:$0xff]
    %3141 = vmatprep.subr.mxu0 %v1821
    %3142 = vmatpush1.msra.mxu0 %v1820
    %3143 = vmatprep.subr.mxu0 %v1824
    %3144 = vmatpush1.msra.mxu0 %v1823
    %3145 = vmatprep.subr.mxu0 %v1827
    %3146 = vmatpush1.msra.mxu0 %v1826
    %3147 = vmatprep.subr.mxu0 %v1830
    %3148 = vmatpush1.msra.mxu0 %v1829
    %3149 = vmatprep.subr.mxu0 %v1833
    %3150 = vmatpush1.msra.mxu0 %v1832
    %3151 = vmatprep.subr.mxu0 %v1836
    %3152 = vmatpush1.msra.mxu0 %v1835
    %3153 = vmatprep.subr.mxu0 %v1839
    %3154 = vmatpush1.msra.mxu0 %v1838
    %3155 = vmatprep.subr.mxu0 %v1842
    %3156 = vmatpush1.msra.mxu0 %v1841
    %3157 = vmatprep.subr.mxu0 %v1845
    %3158 = vmatpush1.msra.mxu0 %v1844
    %3159 = vmatprep.subr.mxu0 %v1848
    %3160 = vmatpush1.msra.mxu0 %v1847
    %3161 = vmatprep.subr.mxu0 %v1851
    %3162 = vmatpush1.msra.mxu0 %v1850
    %3163 = vmatprep.subr.mxu0 %v1854
    %3164 = vmatpush1.msra.mxu0 %v1853
    %3165 = vmatprep.subr.mxu0 %v1857
    %3166 = vmatpush1.msra.mxu0 %v1856
    %3167 = vmatprep.subr.mxu0 %v1860
    %3168 = vmatpush1.msra.mxu0 %v1859
    %3169 = vmatprep.subr.mxu0 %v1863
    %3170 = vmatpush1.msra.mxu0 %v1862
    %3171 = vmatprep.subr.mxu0 %v1866
    %3172 = vmatpush1.msra.mxu0 %v1865
    %3173 = vmatprep.subr.mxu0 0.0
    %3174 = vmatpush1.msra.mxu0 0.0
    %3175 = vmatprep.subr.mxu0 0.0
    %3176 = vmatpush1.msra.mxu0 0.0
    %3177 = vmatprep.subr.mxu0 0.0
    %3178 = vmatpush1.msra.mxu0 0.0
    %3179 = vmatprep.subr.mxu0 0.0
    %3180 = vmatpush1.msra.mxu0 0.0
    %3181 = vmatprep.subr.mxu0 0.0
    %3182 = vmatpush1.msra.mxu0 0.0
    %3183 = vmatprep.subr.mxu0 0.0
    %3184 = vmatpush1.msra.mxu0 0.0
    %3185 = vmatprep.subr.mxu0 0.0
    %3186 = vmatpush1.msra.mxu0 0.0
    %3187 = vmatprep.subr.mxu0 0.0
    %3188 = vmatpush1.msra.mxu0 0.0
    %3189 = vmatprep.subr.mxu0 0.0
    %3190 = vmatpush1.msra.mxu0 0.0
    %3191 = vmatprep.subr.mxu0 0.0
    %3192 = vmatpush1.msra.mxu0 0.0
    %3193 = vmatprep.subr.mxu0 0.0
    %3194 = vmatpush1.msra.mxu0 0.0
    %3195 = vmatprep.subr.mxu0 0.0
    %3196 = vmatpush1.msra.mxu0 0.0
    %3197 = vmatprep.subr.mxu0 0.0
    %3198 = vmatpush1.msra.mxu0 0.0
    %3199 = vmatprep.subr.mxu0 0.0
    %3200 = vmatpush1.msra.mxu0 0.0
    %3201 = vmatprep.subr.mxu0 0.0
    %3202 = vmatpush1.msra.mxu0 0.0
    %3203 = vmatprep.subr.mxu0 0.0
    %3204 = vmatpush1.msra.mxu0 0.0
    %3205 = vmatprep.mubr.f32.mxu0 0.0
    %3206 = vmatmul.mubr.f32.gmra.mrb[0].mxu0 %v3136
    %v3207 = vpop.f32.mrb[0].mxu0
    %v3208 = vadd.f32 0.0, %v3207
    %v3209 = vpop.f32.mrb[0].mxu0
    %v3210 = vadd.f32 0.0, %v3209
    %3211 = vdwg.mxu0
    %3212 = vmatprep.subr.mxu0 0.0
    %3213 = vmatpush1.msra.mxu0 %v1822
    %3214 = vmatprep.subr.mxu0 0.0
    %3215 = vmatpush1.msra.mxu0 %v1825
    %3216 = vmatprep.subr.mxu0 0.0
    %3217 = vmatpush1.msra.mxu0 %v1828
    %3218 = vmatprep.subr.mxu0 0.0
    %3219 = vmatpush1.msra.mxu0 %v1831
    %3220 = vmatprep.subr.mxu0 0.0
    %3221 = vmatpush1.msra.mxu0 %v1834
    %3222 = vmatprep.subr.mxu0 0.0
    %3223 = vmatpush1.msra.mxu0 %v1837
    %3224 = vmatprep.subr.mxu0 0.0
    %3225 = vmatpush1.msra.mxu0 %v1840
    %3226 = vmatprep.subr.mxu0 0.0
    %3227 = vmatpush1.msra.mxu0 %v1843
    %3228 = vmatprep.subr.mxu0 0.0
    %3229 = vmatpush1.msra.mxu0 %v1846
    %3230 = vmatprep.subr.mxu0 0.0
    %3231 = vmatpush1.msra.mxu0 %v1849
    %3232 = vmatprep.subr.mxu0 0.0
    %3233 = vmatpush1.msra.mxu0 %v1852
    %3234 = vmatprep.subr.mxu0 0.0
    %3235 = vmatpush1.msra.mxu0 %v1855
    %3236 = vmatprep.subr.mxu0 0.0
    %3237 = vmatpush1.msra.mxu0 %v1858
    %3238 = vmatprep.subr.mxu0 0.0
    %3239 = vmatpush1.msra.mxu0 %v1861
    %3240 = vmatprep.subr.mxu0 0.0
    %3241 = vmatpush1.msra.mxu0 %v1864
    %3242 = vmatprep.subr.mxu0 0.0
    %3243 = vmatpush1.msra.mxu0 %v1867
    %3244 = vmatprep.subr.mxu0 0.0
    %3245 = vmatpush1.msra.mxu0 0.0
    %3246 = vmatprep.subr.mxu0 0.0
    %3247 = vmatpush1.msra.mxu0 0.0
    %3248 = vmatprep.subr.mxu0 0.0
    %3249 = vmatpush1.msra.mxu0 0.0
    %3250 = vmatprep.subr.mxu0 0.0
    %3251 = vmatpush1.msra.mxu0 0.0
    %3252 = vmatprep.subr.mxu0 0.0
    %3253 = vmatpush1.msra.mxu0 0.0
    %3254 = vmatprep.subr.mxu0 0.0
    %3255 = vmatpush1.msra.mxu0 0.0
    %3256 = vmatprep.subr.mxu0 0.0
    %3257 = vmatpush1.msra.mxu0 0.0
    %3258 = vmatprep.subr.mxu0 0.0
    %3259 = vmatpush1.msra.mxu0 0.0
    %3260 = vmatprep.subr.mxu0 0.0
    %3261 = vmatpush1.msra.mxu0 0.0
    %3262 = vmatprep.subr.mxu0 0.0
    %3263 = vmatpush1.msra.mxu0 0.0
    %3264 = vmatprep.subr.mxu0 0.0
    %3265 = vmatpush1.msra.mxu0 0.0
    %3266 = vmatprep.subr.mxu0 0.0
    %3267 = vmatpush1.msra.mxu0 0.0
    %3268 = vmatprep.subr.mxu0 0.0
    %3269 = vmatpush1.msra.mxu0 0.0
    %3270 = vmatprep.subr.mxu0 0.0
    %3271 = vmatpush1.msra.mxu0 0.0
    %3272 = vmatprep.subr.mxu0 0.0
    %3273 = vmatpush1.msra.mxu0 0.0
    %3274 = vmatprep.subr.mxu0 0.0
    %3275 = vmatpush1.msra.mxu0 0.0
    %3276 = vmatprep.mubr.f32.mxu0 0.0
    %3277 = vmatmul.mubr.f32.gmra.mrb[0].mxu0 %v3136
    %v3278 = vpop.f32.mrb[0].mxu0
    %v3279 = vadd.f32 0.0, %v3278
    %v3280 = vpop.f32.mrb[0].mxu0
    %3281 = vdwg.mxu0
    %v3282 = vadd.f32 %v3138, %v3208
    %v3283 = vxor.u32 %v3282, 2147483648
    %v3284 = vmul.f32 %v3283, 1.442695
    %v3285 = vpow.pop %v3284
    %v3286 = vadd.f32 %v3285, 1.0
    %v3287 = vrcp.pop %v3286
    %v3288 = vmul.f32 1.0, %v3287
    %v3289 = vadd.f32 %v3139, %v3210
    %v3290 = vxor.u32 %v3289, 2147483648
    %v3291 = vmul.f32 %v3290, 1.442695
    %v3292 = vpow.pop %v3291
    %v3293 = vadd.f32 %v3292, 1.0
    %v3294 = vrcp.pop %v3293
    %v3295 = vmul.f32 1.0, %v3294
    %v3296 = vadd.f32 %v3279, %v2292
    %v3297 = vmul.f32 %v3288, %v3296
    %v3298 = vadd.f32 %v3140, %v3297
    %v3299 = vtanh.pop %v3298
    %v3300 = vsub.f32 1.0, %v3295
    %v3301 = vmul.f32 %v3300, %v3299
    %v3302 = vmul.f32 %v3295, %v3136
    %v3303 = vadd.f32 %v3301, %v3302
    %3304 = vst [vmem:[#allocation2 + $0x30] sm:$0xff] %v3303
    %v3305 = vld [vmem:[#allocation3 + $0xa8] sm:$0xff]
    %v3306 = vld [vmem:[#allocation3 + $0xb0] sm:$0xff]
    %v3307 = vld [vmem:[#allocation3 + $0xb8] sm:$0xff]
    %3308 = vmatprep.subr.mxu0 %v1821
    %3309 = vmatpush1.msra.mxu0 %v1820
    %3310 = vmatprep.subr.mxu0 %v1824
    %3311 = vmatpush1.msra.mxu0 %v1823
    %3312 = vmatprep.subr.mxu0 %v1827
    %3313 = vmatpush1.msra.mxu0 %v1826
    %3314 = vmatprep.subr.mxu0 %v1830
    %3315 = vmatpush1.msra.mxu0 %v1829
    %3316 = vmatprep.subr.mxu0 %v1833
    %3317 = vmatpush1.msra.mxu0 %v1832
    %3318 = vmatprep.subr.mxu0 %v1836
    %3319 = vmatpush1.msra.mxu0 %v1835
    %3320 = vmatprep.subr.mxu0 %v1839
    %3321 = vmatpush1.msra.mxu0 %v1838
    %3322 = vmatprep.subr.mxu0 %v1842
    %3323 = vmatpush1.msra.mxu0 %v1841
    %3324 = vmatprep.subr.mxu0 %v1845
    %3325 = vmatpush1.msra.mxu0 %v1844
    %3326 = vmatprep.subr.mxu0 %v1848
    %3327 = vmatpush1.msra.mxu0 %v1847
    %3328 = vmatprep.subr.mxu0 %v1851
    %3329 = vmatpush1.msra.mxu0 %v1850
    %3330 = vmatprep.subr.mxu0 %v1854
    %3331 = vmatpush1.msra.mxu0 %v1853
    %3332 = vmatprep.subr.mxu0 %v1857
    %3333 = vmatpush1.msra.mxu0 %v1856
    %3334 = vmatprep.subr.mxu0 %v1860
    %3335 = vmatpush1.msra.mxu0 %v1859
    %3336 = vmatprep.subr.mxu0 %v1863
    %3337 = vmatpush1.msra.mxu0 %v1862
    %3338 = vmatprep.subr.mxu0 %v1866
    %3339 = vmatpush1.msra.mxu0 %v1865
    %3340 = vmatprep.subr.mxu0 0.0
    %3341 = vmatpush1.msra.mxu0 0.0
    %3342 = vmatprep.subr.mxu0 0.0
    %3343 = vmatpush1.msra.mxu0 0.0
    %3344 = vmatprep.subr.mxu0 0.0
    %3345 = vmatpush1.msra.mxu0 0.0
    %3346 = vmatprep.subr.mxu0 0.0
    %3347 = vmatpush1.msra.mxu0 0.0
    %3348 = vmatprep.subr.mxu0 0.0
    %3349 = vmatpush1.msra.mxu0 0.0
    %3350 = vmatprep.subr.mxu0 0.0
    %3351 = vmatpush1.msra.mxu0 0.0
    %3352 = vmatprep.subr.mxu0 0.0
    %3353 = vmatpush1.msra.mxu0 0.0
    %3354 = vmatprep.subr.mxu0 0.0
    %3355 = vmatpush1.msra.mxu0 0.0
    %3356 = vmatprep.subr.mxu0 0.0
    %3357 = vmatpush1.msra.mxu0 0.0
    %3358 = vmatprep.subr.mxu0 0.0
    %3359 = vmatpush1.msra.mxu0 0.0
    %3360 = vmatprep.subr.mxu0 0.0
    %3361 = vmatpush1.msra.mxu0 0.0
    %3362 = vmatprep.subr.mxu0 0.0
    %3363 = vmatpush1.msra.mxu0 0.0
    %3364 = vmatprep.subr.mxu0 0.0
    %3365 = vmatpush1.msra.mxu0 0.0
    %3366 = vmatprep.subr.mxu0 0.0
    %3367 = vmatpush1.msra.mxu0 0.0
    %3368 = vmatprep.subr.mxu0 0.0
    %3369 = vmatpush1.msra.mxu0 0.0
    %3370 = vmatprep.subr.mxu0 0.0
    %3371 = vmatpush1.msra.mxu0 0.0
    %3372 = vmatprep.mubr.f32.mxu0 0.0
    %3373 = vmatmul.mubr.f32.gmra.mrb[0].mxu0 %v3303
    %v3374 = vpop.f32.mrb[0].mxu0
    %v3375 = vadd.f32 0.0, %v3374
    %v3376 = vpop.f32.mrb[0].mxu0
    %v3377 = vadd.f32 0.0, %v3376
    %3378 = vdwg.mxu0
    %3379 = vmatprep.subr.mxu0 0.0
    %3380 = vmatpush1.msra.mxu0 %v1822
    %3381 = vmatprep.subr.mxu0 0.0
    %3382 = vmatpush1.msra.mxu0 %v1825
    %3383 = vmatprep.subr.mxu0 0.0
    %3384 = vmatpush1.msra.mxu0 %v1828
    %3385 = vmatprep.subr.mxu0 0.0
    %3386 = vmatpush1.msra.mxu0 %v1831
    %3387 = vmatprep.subr.mxu0 0.0
    %3388 = vmatpush1.msra.mxu0 %v1834
    %3389 = vmatprep.subr.mxu0 0.0
    %3390 = vmatpush1.msra.mxu0 %v1837
    %3391 = vmatprep.subr.mxu0 0.0
    %3392 = vmatpush1.msra.mxu0 %v1840
    %3393 = vmatprep.subr.mxu0 0.0
    %3394 = vmatpush1.msra.mxu0 %v1843
    %3395 = vmatprep.subr.mxu0 0.0
    %3396 = vmatpush1.msra.mxu0 %v1846
    %3397 = vmatprep.subr.mxu0 0.0
    %3398 = vmatpush1.msra.mxu0 %v1849
    %3399 = vmatprep.subr.mxu0 0.0
    %3400 = vmatpush1.msra.mxu0 %v1852
    %3401 = vmatprep.subr.mxu0 0.0
    %3402 = vmatpush1.msra.mxu0 %v1855
    %3403 = vmatprep.subr.mxu0 0.0
    %3404 = vmatpush1.msra.mxu0 %v1858
    %3405 = vmatprep.subr.mxu0 0.0
    %3406 = vmatpush1.msra.mxu0 %v1861
    %3407 = vmatprep.subr.mxu0 0.0
    %3408 = vmatpush1.msra.mxu0 %v1864
    %3409 = vmatprep.subr.mxu0 0.0
    %3410 = vmatpush1.msra.mxu0 %v1867
    %3411 = vmatprep.subr.mxu0 0.0
    %3412 = vmatpush1.msra.mxu0 0.0
    %3413 = vmatprep.subr.mxu0 0.0
    %3414 = vmatpush1.msra.mxu0 0.0
    %3415 = vmatprep.subr.mxu0 0.0
    %3416 = vmatpush1.msra.mxu0 0.0
    %3417 = vmatprep.subr.mxu0 0.0
    %3418 = vmatpush1.msra.mxu0 0.0
    %3419 = vmatprep.subr.mxu0 0.0
    %3420 = vmatpush1.msra.mxu0 0.0
    %3421 = vmatprep.subr.mxu0 0.0
    %3422 = vmatpush1.msra.mxu0 0.0
    %3423 = vmatprep.subr.mxu0 0.0
    %3424 = vmatpush1.msra.mxu0 0.0
    %3425 = vmatprep.subr.mxu0 0.0
    %3426 = vmatpush1.msra.mxu0 0.0
    %3427 = vmatprep.subr.mxu0 0.0
    %3428 = vmatpush1.msra.mxu0 0.0
    %3429 = vmatprep.subr.mxu0 0.0
    %3430 = vmatpush1.msra.mxu0 0.0
    %3431 = vmatprep.subr.mxu0 0.0
    %3432 = vmatpush1.msra.mxu0 0.0
    %3433 = vmatprep.subr.mxu0 0.0
    %3434 = vmatpush1.msra.mxu0 0.0
    %3435 = vmatprep.subr.mxu0 0.0
    %3436 = vmatpush1.msra.mxu0 0.0
    %3437 = vmatprep.subr.mxu0 0.0
    %3438 = vmatpush1.msra.mxu0 0.0
    %3439 = vmatprep.subr.mxu0 0.0
    %3440 = vmatpush1.msra.mxu0 0.0
    %3441 = vmatprep.subr.mxu0 0.0
    %3442 = vmatpush1.msra.mxu0 0.0
    %3443 = vmatprep.mubr.f32.mxu0 0.0
    %3444 = vmatmul.mubr.f32.gmra.mrb[0].mxu0 %v3303
    %v3445 = vpop.f32.mrb[0].mxu0
    %v3446 = vadd.f32 0.0, %v3445
    %v3447 = vpop.f32.mrb[0].mxu0
    %3448 = vdwg.mxu0
    %v3449 = vadd.f32 %v3305, %v3375
    %v3450 = vxor.u32 %v3449, 2147483648
    %v3451 = vmul.f32 %v3450, 1.442695
    %v3452 = vpow.pop %v3451
    %v3453 = vadd.f32 %v3452, 1.0
    %v3454 = vrcp.pop %v3453
    %v3455 = vmul.f32 1.0, %v3454
    %v3456 = vadd.f32 %v3306, %v3377
    %v3457 = vxor.u32 %v3456, 2147483648
    %v3458 = vmul.f32 %v3457, 1.442695
    %v3459 = vpow.pop %v3458
    %v3460 = vadd.f32 %v3459, 1.0
    %v3461 = vrcp.pop %v3460
    %v3462 = vmul.f32 1.0, %v3461
    %v3463 = vadd.f32 %v3446, %v2292
    %v3464 = vmul.f32 %v3455, %v3463
    %v3465 = vadd.f32 %v3307, %v3464
    %v3466 = vtanh.pop %v3465
    %v3467 = vsub.f32 1.0, %v3462
    %v3468 = vmul.f32 %v3467, %v3466
    %v3469 = vmul.f32 %v3462, %v3303
    %v3470 = vadd.f32 %v3468, %v3469
    %3471 = vst [vmem:[#allocation2 + $0x38] sm:$0xff] %v3470
    %v3472 = vld [vmem:[%s5] sm:$0x1]
    %v3473 = vld [vmem:[#allocation2] sm:$0xff]
    %v3474 = vld [vmem:[#allocation2 + $0x8] sm:$0xff]
    %v3475 = vld [vmem:[#allocation2 + $0x10] sm:$0xff]
    %v3476 = vld [vmem:[#allocation2 + $0x18] sm:$0xff]
    %v3477 = vld [vmem:[#allocation2 + $0x20] sm:$0xff]
    %v3478 = vld [vmem:[#allocation2 + $0x28] sm:$0xff]
    %v3479 = vld [vmem:[#allocation2 + $0x30] sm:$0xff]
    %v3480 = vld [vmem:[#allocation2 + $0x38] sm:$0xff]
    %v3481 = vld [vmem:[#allocation4] sm:$0x1]
    %3483 = vset.pattern.permute.xlu0 0
    %3484 = vperm.xlu0 %3483, %v3481
    %v3485 = vpop.permute.xlu0 %3484
    %v3487 = vlaneseq
    %v3488 = vshrl.u32 %v3487, 7
    %v3489 = vsub.s32 0, %v3488
    %v3490 = vrot.slane %v3485, %v3489
    %3491 = vmatprep.subr.mxu0 0.0
    %3492 = vmatpush1.xpose.msra.mxu0 %v3473
    %3493 = vmatprep.subr.mxu0 0.0
    %3494 = vmatpush1.xpose.msra.mxu0 %v3474
    %3495 = vmatprep.subr.mxu0 0.0
    %3496 = vmatpush1.xpose.msra.mxu0 %v3475
    %3497 = vmatprep.subr.mxu0 0.0
    %3498 = vmatpush1.xpose.msra.mxu0 %v3476
    %3499 = vmatprep.subr.mxu0 0.0
    %3500 = vmatpush1.xpose.msra.mxu0 %v3477
    %3501 = vmatprep.subr.mxu0 0.0
    %3502 = vmatpush1.xpose.msra.mxu0 %v3478
    %3503 = vmatprep.subr.mxu0 0.0
    %3504 = vmatpush1.xpose.msra.mxu0 %v3479
    %3505 = vmatprep.subr.mxu0 0.0
    %3506 = vmatpush1.xpose.msra.mxu0 %v3480
    %3507 = vmatprep.subr.mxu0 0.0
    %3508 = vmatpush1.xpose.msra.mxu0 0.0
    %3509 = vmatprep.subr.mxu0 0.0
    %3510 = vmatpush1.xpose.msra.mxu0 0.0
    %3511 = vmatprep.subr.mxu0 0.0
    %3512 = vmatpush1.xpose.msra.mxu0 0.0
    %3513 = vmatprep.subr.mxu0 0.0
    %3514 = vmatpush1.xpose.msra.mxu0 0.0
    %3515 = vmatprep.subr.mxu0 0.0
    %3516 = vmatpush1.xpose.msra.mxu0 0.0
    %3517 = vmatprep.subr.mxu0 0.0
    %3518 = vmatpush1.xpose.msra.mxu0 0.0
    %3519 = vmatprep.subr.mxu0 0.0
    %3520 = vmatpush1.xpose.msra.mxu0 0.0
    %3521 = vmatprep.subr.mxu0 0.0
    %3522 = vmatpush1.xpose.msra.mxu0 0.0
    %3523 = vmatprep.subr.mxu0 0.0
    %3524 = vmatpush1.xpose.msra.mxu0 0.0
    %3525 = vmatprep.subr.mxu0 0.0
    %3526 = vmatpush1.xpose.msra.mxu0 0.0
    %3527 = vmatprep.subr.mxu0 0.0
    %3528 = vmatpush1.xpose.msra.mxu0 0.0
    %3529 = vmatprep.subr.mxu0 0.0
    %3530 = vmatpush1.xpose.msra.mxu0 0.0
    %3531 = vmatprep.subr.mxu0 0.0
    %3532 = vmatpush1.xpose.msra.mxu0 0.0
    %3533 = vmatprep.subr.mxu0 0.0
    %3534 = vmatpush1.xpose.msra.mxu0 0.0
    %3535 = vmatprep.subr.mxu0 0.0
    %3536 = vmatpush1.xpose.msra.mxu0 0.0
    %3537 = vmatprep.subr.mxu0 0.0
    %3538 = vmatpush1.xpose.msra.mxu0 0.0
    %3539 = vmatprep.subr.mxu0 0.0
    %3540 = vmatpush1.xpose.msra.mxu0 0.0
    %3541 = vmatprep.subr.mxu0 0.0
    %3542 = vmatpush1.xpose.msra.mxu0 0.0
    %3543 = vmatprep.subr.mxu0 0.0
    %3544 = vmatpush1.xpose.msra.mxu0 0.0
    %3545 = vmatprep.subr.mxu0 0.0
    %3546 = vmatpush1.xpose.msra.mxu0 0.0
    %3547 = vmatprep.subr.mxu0 0.0
    %3548 = vmatpush1.xpose.msra.mxu0 0.0
    %3549 = vmatprep.subr.mxu0 0.0
    %3550 = vmatpush1.xpose.msra.mxu0 0.0
    %3551 = vmatprep.subr.mxu0 0.0
    %3552 = vmatpush1.xpose.msra.mxu0 0.0
    %3553 = vmatprep.subr.mxu0 0.0
    %3554 = vmatpush1.xpose.msra.mxu0 0.0
    %3555 = vmatprep.mubr.f32.mxu0 0.0
    %3556 = vmatmul.mubr.f32.gmra.mrb[0].mxu0 %v3472
    %v3557 = vpop.f32.mrb[0].mxu0
    %v3558 = vadd.f32 %v3490, %v3557
    %v3559 = vpop.f32.mrb[0].mxu0
    %3560 = vdwg.mxu0
    %vm3561 = vcmask 516096
    %3562 = vst.msk [vmem:[%s7] sm:$0x1] %vm3561, %v3558
    // Predicated region
    $region38: #{rnn_forward.1} parent=1 // pred_check
      _
    $region39: #{rnn_forward.1} parent=1 // pred_check_branch
      %3564 = sbr.rel (0) target = $region41
    $region40: #{rnn_forward.1} parent=1 // pred_region
      _
    $region41: #{rnn_forward.1} parent=1 // pred_fallthru
      _
    // Predicated region
    $region42: #{rnn_forward.1} parent=1 // pred_check
      _
    $region43: #{rnn_forward.1} parent=1 // pred_check_branch
      %3566 = sbr.rel (0) target = $region45
    $region44: #{rnn_forward.1} parent=1 // pred_region
      _
    $region45: #{rnn_forward.1} parent=1 // pred_fallthru
      _
    %3567 = vsyncpa [#allocation6], 1
    %3568 = vsyncpa [#allocation8], 1

</llo_original>
